<compile_context>
chip_gen: v6e
topology: v6e:2x2x1
jax: 0.10.0
libtpu: 0.0.40
codegen_flags: <defaults>
</compile_context>

<pallas_src>
from functools import partial

import jax
import jax.numpy as jnp
from jax.experimental import pallas as pl
from jax.experimental.pallas import tpu as pltpu

# ---- small-shape config (PyTorch defaults in parentheses) -------------------
B = 2        # batch
N1 = 8       # joints            (21)
N2 = 64      # local points      (512)
NS = 16      # nsample           (64)
D1 = 64      # latent_channel    (512)
D2 = 16      # in_channel        (192)
M = 64       # mlp width == D1   (512)
STACKS = 2   # stacks            (10)
CIN0 = D2 + 3
S_TILE = N1 * NS          # per-batch flattened (joint, neighbor) lane extent
SPAT = B * S_TILE         # full flattened spatial axis

assert M == D1, "GAT_GCN requires mlp[0] == latent_channel (residual adds)"
assert NS & (NS - 1) == 0, "log-step neighbor max needs power-of-two nsample"
# Per-batch lane tile must be 128-aligned for the batch grid (at PyTorch
# defaults 21*64=1344 -> pad the neighbor/joint axis to 1408).
assert S_TILE % 128 == 0

# packed conv-bias layout: gw | q0 q1 q2 | k0 k1 k2 | v0 v1 v2
OFF_GW = 0
OFF_Q0 = D1
OFF_Q1 = D1 + M
OFF_Q2 = D1 + 2 * M
OFF_K0 = D1 + 4 * M
OFF_K1 = D1 + 5 * M
OFF_K2 = D1 + 6 * M
OFF_V0 = D1 + 8 * M
OFF_V1 = D1 + 9 * M
OFF_V2 = D1 + 10 * M
NB = D1 + 11 * M


def pick_compute_dtype():
    """bf16 elementwise on chips with bf16 VALUs (v6e/v7x), f32 otherwise."""
    try:
        kind = jax.devices()[0].device_kind.lower()
    except Exception:
        return jnp.float32
    if "v6" in kind or "v7" in kind or "7x" in kind:
        return jnp.bfloat16
    return jnp.float32


def make_expand_matrix():
    """E[p, q] = 1 iff lane q belongs to joint p's NS contiguous neighbor lanes."""
    grp = jnp.arange(S_TILE, dtype=jnp.int32) // NS
    return (grp[None, :] == jnp.arange(N1, dtype=jnp.int32)[:, None]
            ).astype(jnp.bfloat16)                              # [N1, S_TILE]


# ----------------------------- Pallas kernel --------------------------------
def gat_kernel(np_ref, p1_ref, ga_ref, gww_ref, w_np_ref, w_pgv_ref,
               w_mm_ref, w_2m_ref, bias_ref, rw_ref, rb_ref, e_ref,
               out_ref, *, cdt):
    f32 = jnp.float32
    b = pl.program_id(0)
    S = S_TILE

    def mm(w, x):                      # bf16 MXU matmul, f32 accumulation
        return jnp.dot(w, x.astype(w.dtype), preferred_element_type=f32)

    def mmc(w, x):                     # matmul, then drop to compute dtype
        return mm(w, x).astype(cdt)

    def leaky(x):                      # nn.LeakyReLU(0.1) == max(x, 0.1*x)
        return jnp.maximum(x, 0.1 * x)

    def bias(off, size):               # packed conv biases, [size, 1]
        return bias_ref[pl.ds(off, size), :].astype(cdt)

    e_mat = e_ref[...]                 # bf16 [N1, S]

    def expand(x):                     # [C, N1] -> [C, S]: neighbor broadcast (MXU)
        return jnp.dot(x.astype(e_mat.dtype), e_mat,
                       preferred_element_type=f32).astype(cdt)

    def compact(x):                    # [C, S] -> [C, N1]: per-joint lane-group sum
        return jax.lax.dot_general(x.astype(e_mat.dtype), e_mat,
                                   (((1,), (1,)), ((), ())),
                                   preferred_element_type=f32)

    def mean_ns(x):                    # mean over the NS neighbor lanes (f32)
        return compact(x) * (1.0 / NS)

    def max_ns(x):                     # max over the NS neighbor lanes
        # Log-step rotation tree (XLU): after shifts NS/2..1, lane p*NS holds
        # max over lanes p*NS .. p*NS+NS-1 (the group is lane-contiguous).
        y = x
        s = NS // 2
        while s >= 1:
            y = jnp.maximum(y, pltpu.roll(y, S - s, axis=1))   # y[q] = max(y[q], y[q+s])
            s //= 2
        lane = jax.lax.broadcasted_iota(jnp.int32, y.shape, 1)
        y = jnp.where(lane % NS == 0, y, jnp.zeros_like(y))
        return compact(y).astype(cdt)  # one nonzero lane per group -> sum == max

    newp = np_ref[...]                 # bf16 [CIN0, S]  this batch's grouped feats
    p1 = p1_ref[b]                     # f32  [D1, N1]   this batch's joint embed

    # ---- point1_graph: per-channel joint mixing, unrolled VPU FMA ------------
    pg = p1[:, 0:1] * ga_ref[0]
    for i in range(1, N1):
        pg = pg + p1[:, i:i + 1] * ga_ref[i]
    pg = leaky(mm(gww_ref[...], pg) + bias_ref[pl.ds(OFF_GW, D1), :]).astype(cdt)

    h_pg = mm(w_pgv_ref[pl.ds(0, 2 * M), :], pg)      # f32 [2M, N1] = fuse_q | fuse_k

    # ------------------------------- Q branch ---------------------------------
    q = leaky(mmc(w_np_ref[pl.ds(0, M), :], newp) + bias(OFF_Q0, M)
              + expand(h_pg[:M]))
    q = leaky(mmc(w_mm_ref[0], q) + bias(OFF_Q1, M))
    q = mmc(w_2m_ref[0], q) + bias(OFF_Q2, 2 * M)                     # [2M, S]

    # ------------------------------- K branch ---------------------------------
    k = leaky(mmc(w_np_ref[pl.ds(M, M), :], newp) + bias(OFF_K0, M)
              + expand(h_pg[M:]))
    k = leaky(mmc(w_mm_ref[1], k) + bias(OFF_K1, M))
    k = max_ns(k)                                                     # [M, N1]
    k = mmc(w_2m_ref[1], k) + bias(OFF_K2, 2 * M)                     # [2M, N1]

    a = jax.nn.sigmoid(expand(k) * q)                                 # [2M, S]
    g1 = a[:M]
    g2 = a[M:]

    # ------------------------------- V branch ---------------------------------
    p1e = mmc(w_pgv_ref[pl.ds(2 * M, M), :], g2 * expand(pg))         # fuse_v2 path
    v = leaky(mmc(w_np_ref[pl.ds(2 * M, M), :], newp) * g1 + p1e) + expand(p1)
    v_res = mean_ns(v)                                                # f32 [M, N1]
    v = mmc(w_mm_ref[2], v) + bias(OFF_V0, M)
    v = leaky(v * g1 + p1e)
    v = leaky(mmc(w_mm_ref[3], v) + bias(OFF_V1, M))
    v = max_ns(v)                                                     # [M, N1]
    v = leaky(mmc(w_mm_ref[4], v) + bias(OFF_V2, M))

    embed = v.astype(f32) + v_res                                     # GAT_GCN output
    joint8 = mm(rw_ref[...], embed) + rb_ref[...]                     # [8, N1] (rows 3:8 zero)

    # channels-last output slab: [N1, D1 + 8] (lane axis = channels)
    out_ref[0] = jnp.concatenate([embed, joint8], axis=0).T


def _cost_numbers(operands):
    """Rough advisory cost for XLA scheduling (overlap weight traffic)."""
    s = S_TILE
    matmul = 2 * B * (D1 * D1 * N1 + 2 * M * D1 * N1 + 3 * M * CIN0 * s
                      + 2 * (M * M * s) + 2 * (2 * M * M * s) + 2 * M * M * N1
                      + M * D1 * s + 2 * M * M * N1 + 8 * M * N1
                      + (6 * M + 2 * D1) * N1 * s + 4 * M * N1 * s)
    vpu = 2 * B * (D1 * N1 * N1 + 24 * M * s)
    transc = B * 2 * M * s
    bytes_acc = B * N1 * (D1 + 8) * 4 + sum(
        int(a.size) * a.dtype.itemsize for a in operands)
    return int(matmul + vpu), int(transc), int(bytes_acc)


def gat_regress_step(new_points, embed_cf, stack_w, rw8, rb8, e_mat, compute_dtype):
    """One stack iteration: embed = GAT_GCN(...); joint = regress(embed)."""
    operands = (new_points, embed_cf, *stack_w, rw8, rb8, e_mat)
    in_specs = [
        pl.BlockSpec((CIN0, S_TILE), lambda b: (0, b)),      # grouped feats, per batch
        pl.BlockSpec((B, D1, N1), lambda b: (0, 0, 0)),      # joint embeddings (full)
        pl.BlockSpec((N1, D1, N1), lambda b: (0, 0, 0)),     # graph_a (src-joint major)
        pl.BlockSpec((D1, D1), lambda b: (0, 0)),            # graph_w weight
        pl.BlockSpec((3 * M, CIN0), lambda b: (0, 0)),       # qw0 | kw0 | fuse_v1
        pl.BlockSpec((3 * M, D1), lambda b: (0, 0)),         # fuse_q | fuse_k | fuse_v2
        pl.BlockSpec((5, M, M), lambda b: (0, 0, 0)),        # qw1,kw1,vw0,vw1,vw2
        pl.BlockSpec((2, 2 * M, M), lambda b: (0, 0, 0)),    # qw2, kw2
        pl.BlockSpec((NB, 1), lambda b: (0, 0)),             # packed conv biases
        pl.BlockSpec((8, M), lambda b: (0, 0)),              # regress weight (padded)
        pl.BlockSpec((8, 1), lambda b: (0, 0)),              # regress bias (padded)
        pl.BlockSpec((N1, S_TILE), lambda b: (0, 0)),        # expand/reduce matrix E
    ]
    flops, transc, bytes_acc = _cost_numbers(operands)
    return pl.pallas_call(
        partial(gat_kernel, cdt=compute_dtype),
        grid=(B,),
        in_specs=in_specs,
        out_specs=pl.BlockSpec((1, N1, D1 + 8), lambda b: (b, 0, 0)),
        out_shape=jax.ShapeDtypeStruct((B, N1, D1 + 8), jnp.float32),
        compiler_params=pltpu.CompilerParams(
            dimension_semantics=("parallel",),          # megacore split on v7x
            vmem_limit_bytes=32 * 1024 * 1024),
        cost_estimate=pl.CostEstimate(flops=flops, transcendentals=transc,
                                      bytes_accessed=bytes_acc),
    )(*operands)


# ----------------------------- JAX glue --------------------------------------
def knn_group(joint, pc1, feat1):
    """kNN grouping (radius=None branch): bf16 [CIN0, B*N1*NS], NS-minor flatten."""
    xyz1 = jnp.transpose(joint, (0, 2, 1))       # [B, N1, 3]
    xyz2 = jnp.transpose(pc1, (0, 2, 1))         # [B, N2, 3]
    pts2 = jnp.transpose(feat1, (0, 2, 1))       # [B, N2, D2]
    sqr = jnp.sum((xyz1[:, :, None, :] - xyz2[:, None, :, :]) ** 2, axis=-1)
    _, idx = jax.lax.top_k(-sqr, NS)             # nearest NS neighbors
    gather = jax.vmap(lambda pts, i: pts[i])
    neighbor_xyz = gather(xyz2, idx)             # [B, N1, NS, 3]
    direction = neighbor_xyz - xyz1[:, :, None, :]
    grouped_p2 = gather(pts2, idx)               # [B, N1, NS, D2]
    newp = jnp.concatenate([grouped_p2, direction], axis=-1)     # [B, N1, NS, CIN0]
    # -> [CIN0, B, N1, NS] -> [CIN0, B*N1*NS]  (batch-major, neighbor-minor)
    newp = jnp.transpose(newp, (3, 0, 1, 2)).reshape(CIN0, SPAT)
    return newp.astype(jnp.bfloat16)


def hand_model_forward(joint, pc1, embed, feat1, stack_params, rw8, rb8, e_mat,
                       *, compute_dtype):
    """HandModel.forward refinement loop (regress weights shared across stacks)."""
    for i in range(STACKS):
        new_points = knn_group(joint, pc1, feat1)
        out = gat_regress_step(new_points, embed, stack_params[i], rw8, rb8,
                               e_mat, compute_dtype)
        embed = jnp.transpose(out[:, :, :D1], (0, 2, 1))         # [B, D1, N1]
        joint = jnp.transpose(out[:, :, D1:D1 + 3], (0, 2, 1))   # [B, 3, N1]
    return joint


# ----------------------------- parameters ------------------------------------
def init_params(key):
    def dense(k, shape, fan_in, dtype=jnp.bfloat16):
        w = jax.random.normal(k, shape, jnp.float32) / jnp.sqrt(float(fan_in))
        return w.astype(dtype)

    def bvec(k, n):
        return 0.01 * jax.random.normal(k, (n, 1), jnp.float32)

    stack_params = []
    for s in range(STACKS):
        ks = jax.random.split(jax.random.fold_in(key, s), 32)
        # graph_a is per-channel [D1, N1, N1] in PyTorch (shared over batch);
        # stored source-joint-major [N1, D1, N1] for leading-dim ref indexing.
        ga = dense(ks[0], (N1, D1, N1), N1, jnp.float32)
        gww = dense(ks[1], (D1, D1), D1)                        # graph_w Conv1d weight
        # fused new_points head: qw0 | kw0 | fuse_v1  -> [3M, CIN0]
        w_np = jnp.concatenate([dense(ks[2], (M, CIN0), CIN0),
                                dense(ks[3], (M, CIN0), CIN0),
                                dense(ks[4], (M, CIN0), CIN0)], axis=0)
        # fused point1_graph head: fuse_q | fuse_k | fuse_v2 -> [3M, D1]
        w_pgv = jnp.concatenate([dense(ks[5], (M, D1), D1),
                                 dense(ks[6], (M, D1), D1),
                                 dense(ks[7], (M, D1), D1)], axis=0)
        # square M->M convs: qw1, kw1, vw0, vw1, vw2 -> [5, M, M]
        w_mm = jnp.stack([dense(ks[8], (M, M), M),
                          dense(ks[9], (M, M), M),
                          dense(ks[10], (M, M), M),
                          dense(ks[11], (M, M), M),
                          dense(ks[12], (M, M), M)], axis=0)
        # M -> 2M convs: qw2, kw2 -> [2, 2M, M]
        w_2m = jnp.stack([dense(ks[13], (2 * M, M), M),
                          dense(ks[14], (2 * M, M), M)], axis=0)
        # packed conv biases: gw | q0 q1 q2 | k0 k1 k2 | v0 v1 v2   -> [NB, 1]
        biases = jnp.concatenate(
            [bvec(ks[15], D1),
             bvec(ks[16], M), bvec(ks[17], M), bvec(ks[18], 2 * M),
             bvec(ks[19], M), bvec(ks[20], M), bvec(ks[21], 2 * M),
             bvec(ks[22], M), bvec(ks[23], M), bvec(ks[24], M)], axis=0)
        assert biases.shape == (NB, 1)
        stack_params.append((ga, gww, w_np, w_pgv, w_mm, w_2m, biases))

    kr = jax.random.split(jax.random.fold_in(key, 999), 2)
    rw = dense(kr[0], (3, M), M)                       # regress: Conv1d(512 -> 3)
    rb = 0.01 * jax.random.normal(kr[1], (3, 1), jnp.float32)
    # pad the regress head 3 -> 8 channels so joint shares the embed output slab
    rw8 = jnp.concatenate([rw, jnp.zeros((5, M), rw.dtype)], axis=0)
    rb8 = jnp.concatenate([rb, jnp.zeros((5, 1), rb.dtype)], axis=0)
    return stack_params, rw8, rb8


# ------------------------------- main -----------------------------------------
if __name__ == "__main__":
    key = jax.random.PRNGKey(0)
    k1, k2, k3, k4, kw = jax.random.split(key, 5)
    # Stand-ins for HandModel.encode() outputs (see TODO(synk) above).
    joint = 0.1 * jax.random.normal(k1, (B, 3, N1), jnp.float32)    # regress_1 output
    pc1 = jax.random.normal(k2, (B, 3, N2), jnp.float32)            # encoder pc1
    embed = jax.random.normal(k3, (B, D1, N1), jnp.float32)         # fold1 latents
    feat1 = jax.random.normal(k4, (B, D2, N2), jnp.float32)         # fused feat1

    stack_params, rw8, rb8 = init_params(kw)
    e_mat = make_expand_matrix()
    cdt = pick_compute_dtype()

    fwd = jax.jit(partial(hand_model_forward, compute_dtype=cdt))
    out = fwd(joint, pc1, embed, feat1, stack_params, rw8, rb8, e_mat)
    out = jax.block_until_ready(out)

    assert out.shape == (B, 3, N1), out.shape
    assert bool(jnp.all(jnp.isfinite(out)))
    print("KERNEL_OK")
</pallas_src>

<mosaic_0001>
module attributes {stable_mosaic.version = 11 : i64} {
  func.func @gat_kernel(%arg0: i32, %arg1: memref<19x128xbf16, #tpu.memory_space<vmem>>, %arg2: memref<2x64x8xf32, #tpu.memory_space<vmem>>, %arg3: memref<8x64x8xf32, #tpu.memory_space<vmem>>, %arg4: memref<64x64xbf16, #tpu.memory_space<vmem>>, %arg5: memref<192x19xbf16, #tpu.memory_space<vmem>>, %arg6: memref<192x64xbf16, #tpu.memory_space<vmem>>, %arg7: memref<5x64x64xbf16, #tpu.memory_space<vmem>>, %arg8: memref<2x128x64xbf16, #tpu.memory_space<vmem>>, %arg9: memref<768x1xf32, #tpu.memory_space<vmem>>, %arg10: memref<8x64xbf16, #tpu.memory_space<vmem>>, %arg11: memref<8x1xf32, #tpu.memory_space<vmem>>, %arg12: memref<8x128xbf16, #tpu.memory_space<vmem>>, %arg13: memref<1x8x72xf32, #tpu.memory_space<vmem>>) attributes {dimension_semantics = [#tpu.dimension_semantics<parallel>], iteration_bounds = array<i64: 2>, scalar_prefetch = 0 : i64, scratch_operands = 0 : i64, tpu.core_type = #tpu.core_type<tc>, window_params = [{transform_indices = @transform_0, window_bounds = array<i64: 19, 128>}, {pipeline_mode = #tpu.pipeline_mode<synchronous>, transform_indices = @transform_1, window_bounds = array<i64: 2, 64, 8>}, {pipeline_mode = #tpu.pipeline_mode<synchronous>, transform_indices = @transform_2, window_bounds = array<i64: 8, 64, 8>}, {pipeline_mode = #tpu.pipeline_mode<synchronous>, transform_indices = @transform_3, window_bounds = array<i64: 64, 64>}, {pipeline_mode = #tpu.pipeline_mode<synchronous>, transform_indices = @transform_4, window_bounds = array<i64: 192, 19>}, {pipeline_mode = #tpu.pipeline_mode<synchronous>, transform_indices = @transform_5, window_bounds = array<i64: 192, 64>}, {pipeline_mode = #tpu.pipeline_mode<synchronous>, transform_indices = @transform_6, window_bounds = array<i64: 5, 64, 64>}, {pipeline_mode = #tpu.pipeline_mode<synchronous>, transform_indices = @transform_7, window_bounds = array<i64: 2, 128, 64>}, {pipeline_mode = #tpu.pipeline_mode<synchronous>, transform_indices = @transform_8, window_bounds = array<i64: 768, 1>}, {pipeline_mode = #tpu.pipeline_mode<synchronous>, transform_indices = @transform_9, window_bounds = array<i64: 8, 64>}, {pipeline_mode = #tpu.pipeline_mode<synchronous>, transform_indices = @transform_10, window_bounds = array<i64: 8, 1>}, {pipeline_mode = #tpu.pipeline_mode<synchronous>, transform_indices = @transform_11, window_bounds = array<i64: 8, 128>}, {transform_indices = @transform_12, window_bounds = array<i64: 1, 8, 72>}]} {
    %c0 = arith.constant 0 : index
    %c0_0 = arith.constant 0 : index
    %0 = vector.load %arg12[%c0, %c0_0] : memref<8x128xbf16, #tpu.memory_space<vmem>>, vector<8x128xbf16>
    %c0_1 = arith.constant 0 : index
    %c0_2 = arith.constant 0 : index
    %1 = vector.load %arg1[%c0_1, %c0_2] : memref<19x128xbf16, #tpu.memory_space<vmem>>, vector<19x128xbf16>
    %2 = arith.index_cast %arg0 : i32 to index
    %c0_3 = arith.constant 0 : index
    %c0_4 = arith.constant 0 : index
    %3 = vector.load %arg2[%2, %c0_3, %c0_4] : memref<2x64x8xf32, #tpu.memory_space<vmem>>, vector<1x64x8xf32>
    %4 = vector.shape_cast %3 : vector<1x64x8xf32> to vector<64x8xf32>
    %5 = vector.extract_strided_slice %4 {offsets = [0, 0], sizes = [64, 1], strides = [1, 1]} : vector<64x8xf32> to vector<64x1xf32>
    %c0_5 = arith.constant 0 : index
    %c0_6 = arith.constant 0 : index
    %c0_7 = arith.constant 0 : index
    %6 = vector.load %arg3[%c0_5, %c0_6, %c0_7] : memref<8x64x8xf32, #tpu.memory_space<vmem>>, vector<1x64x8xf32>
    %7 = vector.shape_cast %6 : vector<1x64x8xf32> to vector<64x8xf32>
    %8 = vector.broadcast %5 : vector<64x1xf32> to vector<64x8xf32>
    %9 = arith.mulf %8, %7 : vector<64x8xf32>
    %10 = vector.extract_strided_slice %4 {offsets = [0, 1], sizes = [64, 1], strides = [1, 1]} : vector<64x8xf32> to vector<64x1xf32>
    %c1 = arith.constant 1 : index
    %c0_8 = arith.constant 0 : index
    %c0_9 = arith.constant 0 : index
    %11 = vector.load %arg3[%c1, %c0_8, %c0_9] : memref<8x64x8xf32, #tpu.memory_space<vmem>>, vector<1x64x8xf32>
    %12 = vector.shape_cast %11 : vector<1x64x8xf32> to vector<64x8xf32>
    %13 = vector.broadcast %10 : vector<64x1xf32> to vector<64x8xf32>
    %14 = arith.mulf %13, %12 : vector<64x8xf32>
    %15 = arith.addf %9, %14 : vector<64x8xf32>
    %16 = vector.extract_strided_slice %4 {offsets = [0, 2], sizes = [64, 1], strides = [1, 1]} : vector<64x8xf32> to vector<64x1xf32>
    %c2 = arith.constant 2 : index
    %c0_10 = arith.constant 0 : index
    %c0_11 = arith.constant 0 : index
    %17 = vector.load %arg3[%c2, %c0_10, %c0_11] : memref<8x64x8xf32, #tpu.memory_space<vmem>>, vector<1x64x8xf32>
    %18 = vector.shape_cast %17 : vector<1x64x8xf32> to vector<64x8xf32>
    %19 = vector.broadcast %16 : vector<64x1xf32> to vector<64x8xf32>
    %20 = arith.mulf %19, %18 : vector<64x8xf32>
    %21 = arith.addf %15, %20 : vector<64x8xf32>
    %22 = vector.extract_strided_slice %4 {offsets = [0, 3], sizes = [64, 1], strides = [1, 1]} : vector<64x8xf32> to vector<64x1xf32>
    %c3 = arith.constant 3 : index
    %c0_12 = arith.constant 0 : index
    %c0_13 = arith.constant 0 : index
    %23 = vector.load %arg3[%c3, %c0_12, %c0_13] : memref<8x64x8xf32, #tpu.memory_space<vmem>>, vector<1x64x8xf32>
    %24 = vector.shape_cast %23 : vector<1x64x8xf32> to vector<64x8xf32>
    %25 = vector.broadcast %22 : vector<64x1xf32> to vector<64x8xf32>
    %26 = arith.mulf %25, %24 : vector<64x8xf32>
    %27 = arith.addf %21, %26 : vector<64x8xf32>
    %28 = vector.extract_strided_slice %4 {offsets = [0, 4], sizes = [64, 1], strides = [1, 1]} : vector<64x8xf32> to vector<64x1xf32>
    %c4 = arith.constant 4 : index
    %c0_14 = arith.constant 0 : index
    %c0_15 = arith.constant 0 : index
    %29 = vector.load %arg3[%c4, %c0_14, %c0_15] : memref<8x64x8xf32, #tpu.memory_space<vmem>>, vector<1x64x8xf32>
    %30 = vector.shape_cast %29 : vector<1x64x8xf32> to vector<64x8xf32>
    %31 = vector.broadcast %28 : vector<64x1xf32> to vector<64x8xf32>
    %32 = arith.mulf %31, %30 : vector<64x8xf32>
    %33 = arith.addf %27, %32 : vector<64x8xf32>
    %34 = vector.extract_strided_slice %4 {offsets = [0, 5], sizes = [64, 1], strides = [1, 1]} : vector<64x8xf32> to vector<64x1xf32>
    %c5 = arith.constant 5 : index
    %c0_16 = arith.constant 0 : index
    %c0_17 = arith.constant 0 : index
    %35 = vector.load %arg3[%c5, %c0_16, %c0_17] : memref<8x64x8xf32, #tpu.memory_space<vmem>>, vector<1x64x8xf32>
    %36 = vector.shape_cast %35 : vector<1x64x8xf32> to vector<64x8xf32>
    %37 = vector.broadcast %34 : vector<64x1xf32> to vector<64x8xf32>
    %38 = arith.mulf %37, %36 : vector<64x8xf32>
    %39 = arith.addf %33, %38 : vector<64x8xf32>
    %40 = vector.extract_strided_slice %4 {offsets = [0, 6], sizes = [64, 1], strides = [1, 1]} : vector<64x8xf32> to vector<64x1xf32>
    %c6 = arith.constant 6 : index
    %c0_18 = arith.constant 0 : index
    %c0_19 = arith.constant 0 : index
    %41 = vector.load %arg3[%c6, %c0_18, %c0_19] : memref<8x64x8xf32, #tpu.memory_space<vmem>>, vector<1x64x8xf32>
    %42 = vector.shape_cast %41 : vector<1x64x8xf32> to vector<64x8xf32>
    %43 = vector.broadcast %40 : vector<64x1xf32> to vector<64x8xf32>
    %44 = arith.mulf %43, %42 : vector<64x8xf32>
    %45 = arith.addf %39, %44 : vector<64x8xf32>
    %46 = vector.extract_strided_slice %4 {offsets = [0, 7], sizes = [64, 1], strides = [1, 1]} : vector<64x8xf32> to vector<64x1xf32>
    %c7 = arith.constant 7 : index
    %c0_20 = arith.constant 0 : index
    %c0_21 = arith.constant 0 : index
    %47 = vector.load %arg3[%c7, %c0_20, %c0_21] : memref<8x64x8xf32, #tpu.memory_space<vmem>>, vector<1x64x8xf32>
    %48 = vector.shape_cast %47 : vector<1x64x8xf32> to vector<64x8xf32>
    %49 = vector.broadcast %46 : vector<64x1xf32> to vector<64x8xf32>
    %50 = arith.mulf %49, %48 : vector<64x8xf32>
    %51 = arith.addf %45, %50 : vector<64x8xf32>
    %c0_22 = arith.constant 0 : index
    %c0_23 = arith.constant 0 : index
    %52 = vector.load %arg4[%c0_22, %c0_23] : memref<64x64xbf16, #tpu.memory_space<vmem>>, vector<64x64xbf16>
    %53 = arith.truncf %51 : vector<64x8xf32> to vector<64x8xbf16>
    %cst = arith.constant dense<0.000000e+00> : vector<64x8xf32>
    %54 = tpu.matmul %52, %53, %cst {dimension_numbers = #tpu.dot_dimension_numbers<[1], [0], [0], [1], [0, 0, 1, 1], [], []>} : vector<64x64xbf16>, vector<64x8xbf16>, vector<64x8xf32> -> vector<64x8xf32>
    %c0_24 = arith.constant 0 : index
    %c0_25 = arith.constant 0 : index
    %55 = vector.load %arg9[%c0_24, %c0_25] : memref<768x1xf32, #tpu.memory_space<vmem>>, vector<64x1xf32>
    %56 = vector.broadcast %55 : vector<64x1xf32> to vector<64x8xf32>
    %57 = arith.addf %54, %56 : vector<64x8xf32>
    %cst_26 = arith.constant 1.000000e-01 : f32
    %58 = vector.broadcast %cst_26 : f32 to vector<64x8xf32>
    %59 = arith.mulf %58, %57 : vector<64x8xf32>
    %60 = arith.maximumf %57, %59 : vector<64x8xf32>
    %c0_27 = arith.constant 0 : index
    %c0_28 = arith.constant 0 : index
    %61 = vector.load %arg6[%c0_27, %c0_28] : memref<192x64xbf16, #tpu.memory_space<vmem>>, vector<128x64xbf16>
    %62 = arith.truncf %60 : vector<64x8xf32> to vector<64x8xbf16>
    %cst_29 = arith.constant dense<0.000000e+00> : vector<128x8xf32>
    %63 = tpu.matmul %61, %62, %cst_29 {dimension_numbers = #tpu.dot_dimension_numbers<[1], [0], [0], [1], [0, 0, 1, 1], [], []>} : vector<128x64xbf16>, vector<64x8xbf16>, vector<128x8xf32> -> vector<128x8xf32>
    %c0_30 = arith.constant 0 : index
    %c0_31 = arith.constant 0 : index
    %64 = vector.load %arg5[%c0_30, %c0_31] : memref<192x19xbf16, #tpu.memory_space<vmem>>, vector<64x19xbf16>
    %cst_32 = arith.constant dense<0.000000e+00> : vector<64x128xf32>
    %65 = tpu.matmul %64, %1, %cst_32 {dimension_numbers = #tpu.dot_dimension_numbers<[1], [0], [0], [1], [0, 0, 1, 1], [], []>} : vector<64x19xbf16>, vector<19x128xbf16>, vector<64x128xf32> -> vector<64x128xf32>
    %c64 = arith.constant 64 : index
    %c0_33 = arith.constant 0 : index
    %66 = vector.load %arg9[%c64, %c0_33] : memref<768x1xf32, #tpu.memory_space<vmem>>, vector<64x1xf32>
    %67 = vector.broadcast %66 : vector<64x1xf32> to vector<64x128xf32>
    %68 = arith.addf %65, %67 : vector<64x128xf32>
    %69 = vector.extract_strided_slice %63 {offsets = [0, 0], sizes = [64, 8], strides = [1, 1]} : vector<128x8xf32> to vector<64x8xf32>
    %70 = arith.truncf %69 : vector<64x8xf32> to vector<64x8xbf16>
    %cst_34 = arith.constant dense<0.000000e+00> : vector<64x128xf32>
    %71 = tpu.matmul %70, %0, %cst_34 {dimension_numbers = #tpu.dot_dimension_numbers<[1], [0], [0], [1], [0, 0, 1, 1], [], []>} : vector<64x8xbf16>, vector<8x128xbf16>, vector<64x128xf32> -> vector<64x128xf32>
    %72 = arith.addf %68, %71 : vector<64x128xf32>
    %cst_35 = arith.constant 1.000000e-01 : f32
    %73 = vector.broadcast %cst_35 : f32 to vector<64x128xf32>
    %74 = arith.mulf %73, %72 : vector<64x128xf32>
    %75 = arith.maximumf %72, %74 : vector<64x128xf32>
    %c0_36 = arith.constant 0 : index
    %c0_37 = arith.constant 0 : index
    %c0_38 = arith.constant 0 : index
    %76 = vector.load %arg7[%c0_36, %c0_37, %c0_38] : memref<5x64x64xbf16, #tpu.memory_space<vmem>>, vector<1x64x64xbf16>
    %77 = vector.shape_cast %76 : vector<1x64x64xbf16> to vector<64x64xbf16>
    %78 = arith.truncf %75 : vector<64x128xf32> to vector<64x128xbf16>
    %cst_39 = arith.constant dense<0.000000e+00> : vector<64x128xf32>
    %79 = tpu.matmul %77, %78, %cst_39 {dimension_numbers = #tpu.dot_dimension_numbers<[1], [0], [0], [1], [0, 0, 1, 1], [], []>} : vector<64x64xbf16>, vector<64x128xbf16>, vector<64x128xf32> -> vector<64x128xf32>
    %c128 = arith.constant 128 : index
    %c0_40 = arith.constant 0 : index
    %80 = vector.load %arg9[%c128, %c0_40] : memref<768x1xf32, #tpu.memory_space<vmem>>, vector<64x1xf32>
    %81 = vector.broadcast %80 : vector<64x1xf32> to vector<64x128xf32>
    %82 = arith.addf %79, %81 : vector<64x128xf32>
    %cst_41 = arith.constant 1.000000e-01 : f32
    %83 = vector.broadcast %cst_41 : f32 to vector<64x128xf32>
    %84 = arith.mulf %83, %82 : vector<64x128xf32>
    %85 = arith.maximumf %82, %84 : vector<64x128xf32>
    %c0_42 = arith.constant 0 : index
    %c0_43 = arith.constant 0 : index
    %c0_44 = arith.constant 0 : index
    %86 = vector.load %arg8[%c0_42, %c0_43, %c0_44] : memref<2x128x64xbf16, #tpu.memory_space<vmem>>, vector<1x128x64xbf16>
    %87 = vector.shape_cast %86 : vector<1x128x64xbf16> to vector<128x64xbf16>
    %88 = arith.truncf %85 : vector<64x128xf32> to vector<64x128xbf16>
    %cst_45 = arith.constant dense<0.000000e+00> : vector<128x128xf32>
    %89 = tpu.matmul %87, %88, %cst_45 {dimension_numbers = #tpu.dot_dimension_numbers<[1], [0], [0], [1], [0, 0, 1, 1], [], []>} : vector<128x64xbf16>, vector<64x128xbf16>, vector<128x128xf32> -> vector<128x128xf32>
    %c192 = arith.constant 192 : index
    %c0_46 = arith.constant 0 : index
    %90 = vector.load %arg9[%c192, %c0_46] : memref<768x1xf32, #tpu.memory_space<vmem>>, vector<128x1xf32>
    %91 = vector.broadcast %90 : vector<128x1xf32> to vector<128x128xf32>
    %92 = arith.addf %89, %91 : vector<128x128xf32>
    %c64_47 = arith.constant 64 : index
    %c0_48 = arith.constant 0 : index
    %93 = vector.load %arg5[%c64_47, %c0_48] : memref<192x19xbf16, #tpu.memory_space<vmem>>, vector<64x19xbf16>
    %cst_49 = arith.constant dense<0.000000e+00> : vector<64x128xf32>
    %94 = tpu.matmul %93, %1, %cst_49 {dimension_numbers = #tpu.dot_dimension_numbers<[1], [0], [0], [1], [0, 0, 1, 1], [], []>} : vector<64x19xbf16>, vector<19x128xbf16>, vector<64x128xf32> -> vector<64x128xf32>
    %c320 = arith.constant 320 : index
    %c0_50 = arith.constant 0 : index
    %95 = vector.load %arg9[%c320, %c0_50] : memref<768x1xf32, #tpu.memory_space<vmem>>, vector<64x1xf32>
    %96 = vector.broadcast %95 : vector<64x1xf32> to vector<64x128xf32>
    %97 = arith.addf %94, %96 : vector<64x128xf32>
    %98 = vector.extract_strided_slice %63 {offsets = [64, 0], sizes = [64, 8], strides = [1, 1]} : vector<128x8xf32> to vector<64x8xf32>
    %99 = arith.truncf %98 : vector<64x8xf32> to vector<64x8xbf16>
    %cst_51 = arith.constant dense<0.000000e+00> : vector<64x128xf32>
    %100 = tpu.matmul %99, %0, %cst_51 {dimension_numbers = #tpu.dot_dimension_numbers<[1], [0], [0], [1], [0, 0, 1, 1], [], []>} : vector<64x8xbf16>, vector<8x128xbf16>, vector<64x128xf32> -> vector<64x128xf32>
    %101 = arith.addf %97, %100 : vector<64x128xf32>
    %cst_52 = arith.constant 1.000000e-01 : f32
    %102 = vector.broadcast %cst_52 : f32 to vector<64x128xf32>
    %103 = arith.mulf %102, %101 : vector<64x128xf32>
    %104 = arith.maximumf %101, %103 : vector<64x128xf32>
    %c1_53 = arith.constant 1 : index
    %c0_54 = arith.constant 0 : index
    %c0_55 = arith.constant 0 : index
    %105 = vector.load %arg7[%c1_53, %c0_54, %c0_55] : memref<5x64x64xbf16, #tpu.memory_space<vmem>>, vector<1x64x64xbf16>
    %106 = vector.shape_cast %105 : vector<1x64x64xbf16> to vector<64x64xbf16>
    %107 = arith.truncf %104 : vector<64x128xf32> to vector<64x128xbf16>
    %cst_56 = arith.constant dense<0.000000e+00> : vector<64x128xf32>
    %108 = tpu.matmul %106, %107, %cst_56 {dimension_numbers = #tpu.dot_dimension_numbers<[1], [0], [0], [1], [0, 0, 1, 1], [], []>} : vector<64x64xbf16>, vector<64x128xbf16>, vector<64x128xf32> -> vector<64x128xf32>
    %c384 = arith.constant 384 : index
    %c0_57 = arith.constant 0 : index
    %109 = vector.load %arg9[%c384, %c0_57] : memref<768x1xf32, #tpu.memory_space<vmem>>, vector<64x1xf32>
    %110 = vector.broadcast %109 : vector<64x1xf32> to vector<64x128xf32>
    %111 = arith.addf %108, %110 : vector<64x128xf32>
    %cst_58 = arith.constant 1.000000e-01 : f32
    %112 = vector.broadcast %cst_58 : f32 to vector<64x128xf32>
    %113 = arith.mulf %112, %111 : vector<64x128xf32>
    %114 = arith.maximumf %111, %113 : vector<64x128xf32>
    %c120_i32 = arith.constant 120 : i32
    %115 = tpu.dynamic_rotate %114 by %c120_i32 dim 1 : vector<64x128xf32>, i32 -> vector<64x128xf32>
    %116 = arith.maximumf %114, %115 : vector<64x128xf32>
    %c124_i32 = arith.constant 124 : i32
    %117 = tpu.dynamic_rotate %116 by %c124_i32 dim 1 : vector<64x128xf32>, i32 -> vector<64x128xf32>
    %118 = arith.maximumf %116, %117 : vector<64x128xf32>
    %c126_i32 = arith.constant 126 : i32
    %119 = tpu.dynamic_rotate %118 by %c126_i32 dim 1 : vector<64x128xf32>, i32 -> vector<64x128xf32>
    %120 = arith.maximumf %118, %119 : vector<64x128xf32>
    %c127_i32 = arith.constant 127 : i32
    %121 = tpu.dynamic_rotate %120 by %c127_i32 dim 1 : vector<64x128xf32>, i32 -> vector<64x128xf32>
    %122 = arith.maximumf %120, %121 : vector<64x128xf32>
    %123 = tpu.iota {dimensions = array<i32: 1>} : vector<64x128xi32>
    %c16_i32 = arith.constant 16 : i32
    %c0_i32 = arith.constant 0 : i32
    %124 = arith.cmpi eq, %c16_i32, %c0_i32 : i32
    %c1_i32 = arith.constant 1 : i32
    %125 = arith.select %124, %c1_i32, %c16_i32 : i32
    %126 = vector.broadcast %125 : i32 to vector<64x128xi32>
    %127 = arith.remsi %123, %126 : vector<64x128xi32>
    %c0_i32_59 = arith.constant 0 : i32
    %128 = vector.broadcast %c0_i32_59 : i32 to vector<64x128xi32>
    %129 = arith.cmpi ne, %127, %128 : vector<64x128xi32>
    %c0_i32_60 = arith.constant 0 : i32
    %130 = vector.broadcast %c0_i32_60 : i32 to vector<64x128xi32>
    %131 = arith.cmpi slt, %127, %130 : vector<64x128xi32>
    %c0_i32_61 = arith.constant 0 : i32
    %132 = arith.cmpi slt, %125, %c0_i32_61 : i32
    %133 = vector.broadcast %132 : i1 to vector<64x128xi1>
    %134 = vector.broadcast %133 : vector<64x128xi1> to vector<64x128xi1>
    %135 = arith.xori %131, %134 : vector<64x128xi1>
    %136 = arith.andi %135, %129 : vector<64x128xi1>
    %137 = vector.broadcast %125 : i32 to vector<64x128xi32>
    %138 = arith.addi %127, %137 : vector<64x128xi32>
    %139 = arith.select %136, %138, %127 : vector<64x128xi1>, vector<64x128xi32>
    %c0_i32_62 = arith.constant 0 : i32
    %140 = vector.broadcast %c0_i32_62 : i32 to vector<64x128xi32>
    %141 = arith.cmpi eq, %139, %140 : vector<64x128xi32>
    %cst_63 = arith.constant 0.000000e+00 : f32
    %142 = vector.broadcast %cst_63 : f32 to vector<64x128xf32>
    %143 = arith.select %141, %122, %142 : vector<64x128xi1>, vector<64x128xf32>
    %144 = arith.truncf %143 : vector<64x128xf32> to vector<64x128xbf16>
    %cst_64 = arith.constant dense<0.000000e+00> : vector<64x8xf32>
    %145 = tpu.matmul %144, %0, %cst_64 {dimension_numbers = #tpu.dot_dimension_numbers<[1], [1], [0], [0], [0, 0, 1, 0], [], []>} : vector<64x128xbf16>, vector<8x128xbf16>, vector<64x8xf32> -> vector<64x8xf32>
    %c1_65 = arith.constant 1 : index
    %c0_66 = arith.constant 0 : index
    %c0_67 = arith.constant 0 : index
    %146 = vector.load %arg8[%c1_65, %c0_66, %c0_67] : memref<2x128x64xbf16, #tpu.memory_space<vmem>>, vector<1x128x64xbf16>
    %147 = vector.shape_cast %146 : vector<1x128x64xbf16> to vector<128x64xbf16>
    %148 = arith.truncf %145 : vector<64x8xf32> to vector<64x8xbf16>
    %cst_68 = arith.constant dense<0.000000e+00> : vector<128x8xf32>
    %149 = tpu.matmul %147, %148, %cst_68 {dimension_numbers = #tpu.dot_dimension_numbers<[1], [0], [0], [1], [0, 0, 1, 1], [], []>} : vector<128x64xbf16>, vector<64x8xbf16>, vector<128x8xf32> -> vector<128x8xf32>
    %c448 = arith.constant 448 : index
    %c0_69 = arith.constant 0 : index
    %150 = vector.load %arg9[%c448, %c0_69] : memref<768x1xf32, #tpu.memory_space<vmem>>, vector<128x1xf32>
    %151 = vector.broadcast %150 : vector<128x1xf32> to vector<128x8xf32>
    %152 = arith.addf %149, %151 : vector<128x8xf32>
    %153 = arith.truncf %152 : vector<128x8xf32> to vector<128x8xbf16>
    %cst_70 = arith.constant dense<0.000000e+00> : vector<128x128xf32>
    %154 = tpu.matmul %153, %0, %cst_70 {dimension_numbers = #tpu.dot_dimension_numbers<[1], [0], [0], [1], [0, 0, 1, 1], [], []>} : vector<128x8xbf16>, vector<8x128xbf16>, vector<128x128xf32> -> vector<128x128xf32>
    %155 = arith.mulf %154, %92 : vector<128x128xf32>
    %156 = arith.negf %155 : vector<128x128xf32>
    %157 = math.exp %156 : vector<128x128xf32>
    %cst_71 = arith.constant 1.000000e+00 : f32
    %158 = vector.broadcast %cst_71 : f32 to vector<128x128xf32>
    %159 = arith.addf %158, %157 : vector<128x128xf32>
    %160 = arith.divf %158, %159 : vector<128x128xf32>
    %161 = vector.extract_strided_slice %160 {offsets = [0, 0], sizes = [64, 128], strides = [1, 1]} : vector<128x128xf32> to vector<64x128xf32>
    %162 = vector.extract_strided_slice %160 {offsets = [64, 0], sizes = [64, 128], strides = [1, 1]} : vector<128x128xf32> to vector<64x128xf32>
    %c128_72 = arith.constant 128 : index
    %c0_73 = arith.constant 0 : index
    %163 = vector.load %arg6[%c128_72, %c0_73] : memref<192x64xbf16, #tpu.memory_space<vmem>>, vector<64x64xbf16>
    %164 = arith.truncf %60 : vector<64x8xf32> to vector<64x8xbf16>
    %cst_74 = arith.constant dense<0.000000e+00> : vector<64x128xf32>
    %165 = tpu.matmul %164, %0, %cst_74 {dimension_numbers = #tpu.dot_dimension_numbers<[1], [0], [0], [1], [0, 0, 1, 1], [], []>} : vector<64x8xbf16>, vector<8x128xbf16>, vector<64x128xf32> -> vector<64x128xf32>
    %166 = arith.mulf %162, %165 : vector<64x128xf32>
    %167 = arith.truncf %166 : vector<64x128xf32> to vector<64x128xbf16>
    %cst_75 = arith.constant dense<0.000000e+00> : vector<64x128xf32>
    %168 = tpu.matmul %163, %167, %cst_75 {dimension_numbers = #tpu.dot_dimension_numbers<[1], [0], [0], [1], [0, 0, 1, 1], [], []>} : vector<64x64xbf16>, vector<64x128xbf16>, vector<64x128xf32> -> vector<64x128xf32>
    %c128_76 = arith.constant 128 : index
    %c0_77 = arith.constant 0 : index
    %169 = vector.load %arg5[%c128_76, %c0_77] : memref<192x19xbf16, #tpu.memory_space<vmem>>, vector<64x19xbf16>
    %cst_78 = arith.constant dense<0.000000e+00> : vector<64x128xf32>
    %170 = tpu.matmul %169, %1, %cst_78 {dimension_numbers = #tpu.dot_dimension_numbers<[1], [0], [0], [1], [0, 0, 1, 1], [], []>} : vector<64x19xbf16>, vector<19x128xbf16>, vector<64x128xf32> -> vector<64x128xf32>
    %171 = arith.mulf %170, %161 : vector<64x128xf32>
    %172 = arith.addf %171, %168 : vector<64x128xf32>
    %cst_79 = arith.constant 1.000000e-01 : f32
    %173 = vector.broadcast %cst_79 : f32 to vector<64x128xf32>
    %174 = arith.mulf %173, %172 : vector<64x128xf32>
    %175 = arith.maximumf %172, %174 : vector<64x128xf32>
    %176 = arith.truncf %4 : vector<64x8xf32> to vector<64x8xbf16>
    %cst_80 = arith.constant dense<0.000000e+00> : vector<64x128xf32>
    %177 = tpu.matmul %176, %0, %cst_80 {dimension_numbers = #tpu.dot_dimension_numbers<[1], [0], [0], [1], [0, 0, 1, 1], [], []>} : vector<64x8xbf16>, vector<8x128xbf16>, vector<64x128xf32> -> vector<64x128xf32>
    %178 = arith.addf %175, %177 : vector<64x128xf32>
    %179 = arith.truncf %178 : vector<64x128xf32> to vector<64x128xbf16>
    %cst_81 = arith.constant dense<0.000000e+00> : vector<64x8xf32>
    %180 = tpu.matmul %179, %0, %cst_81 {dimension_numbers = #tpu.dot_dimension_numbers<[1], [1], [0], [0], [0, 0, 1, 0], [], []>} : vector<64x128xbf16>, vector<8x128xbf16>, vector<64x8xf32> -> vector<64x8xf32>
    %cst_82 = arith.constant 6.250000e-02 : f32
    %181 = vector.broadcast %cst_82 : f32 to vector<64x8xf32>
    %182 = arith.mulf %180, %181 : vector<64x8xf32>
    %c2_83 = arith.constant 2 : index
    %c0_84 = arith.constant 0 : index
    %c0_85 = arith.constant 0 : index
    %183 = vector.load %arg7[%c2_83, %c0_84, %c0_85] : memref<5x64x64xbf16, #tpu.memory_space<vmem>>, vector<1x64x64xbf16>
    %184 = vector.shape_cast %183 : vector<1x64x64xbf16> to vector<64x64xbf16>
    %185 = arith.truncf %178 : vector<64x128xf32> to vector<64x128xbf16>
    %cst_86 = arith.constant dense<0.000000e+00> : vector<64x128xf32>
    %186 = tpu.matmul %184, %185, %cst_86 {dimension_numbers = #tpu.dot_dimension_numbers<[1], [0], [0], [1], [0, 0, 1, 1], [], []>} : vector<64x64xbf16>, vector<64x128xbf16>, vector<64x128xf32> -> vector<64x128xf32>
    %c576 = arith.constant 576 : index
    %c0_87 = arith.constant 0 : index
    %187 = vector.load %arg9[%c576, %c0_87] : memref<768x1xf32, #tpu.memory_space<vmem>>, vector<64x1xf32>
    %188 = vector.broadcast %187 : vector<64x1xf32> to vector<64x128xf32>
    %189 = arith.addf %186, %188 : vector<64x128xf32>
    %190 = arith.mulf %189, %161 : vector<64x128xf32>
    %191 = arith.addf %190, %168 : vector<64x128xf32>
    %cst_88 = arith.constant 1.000000e-01 : f32
    %192 = vector.broadcast %cst_88 : f32 to vector<64x128xf32>
    %193 = arith.mulf %192, %191 : vector<64x128xf32>
    %194 = arith.maximumf %191, %193 : vector<64x128xf32>
    %c3_89 = arith.constant 3 : index
    %c0_90 = arith.constant 0 : index
    %c0_91 = arith.constant 0 : index
    %195 = vector.load %arg7[%c3_89, %c0_90, %c0_91] : memref<5x64x64xbf16, #tpu.memory_space<vmem>>, vector<1x64x64xbf16>
    %196 = vector.shape_cast %195 : vector<1x64x64xbf16> to vector<64x64xbf16>
    %197 = arith.truncf %194 : vector<64x128xf32> to vector<64x128xbf16>
    %cst_92 = arith.constant dense<0.000000e+00> : vector<64x128xf32>
    %198 = tpu.matmul %196, %197, %cst_92 {dimension_numbers = #tpu.dot_dimension_numbers<[1], [0], [0], [1], [0, 0, 1, 1], [], []>} : vector<64x64xbf16>, vector<64x128xbf16>, vector<64x128xf32> -> vector<64x128xf32>
    %c640 = arith.constant 640 : index
    %c0_93 = arith.constant 0 : index
    %199 = vector.load %arg9[%c640, %c0_93] : memref<768x1xf32, #tpu.memory_space<vmem>>, vector<64x1xf32>
    %200 = vector.broadcast %199 : vector<64x1xf32> to vector<64x128xf32>
    %201 = arith.addf %198, %200 : vector<64x128xf32>
    %cst_94 = arith.constant 1.000000e-01 : f32
    %202 = vector.broadcast %cst_94 : f32 to vector<64x128xf32>
    %203 = arith.mulf %202, %201 : vector<64x128xf32>
    %204 = arith.maximumf %201, %203 : vector<64x128xf32>
    %c120_i32_95 = arith.constant 120 : i32
    %205 = tpu.dynamic_rotate %204 by %c120_i32_95 dim 1 : vector<64x128xf32>, i32 -> vector<64x128xf32>
    %206 = arith.maximumf %204, %205 : vector<64x128xf32>
    %c124_i32_96 = arith.constant 124 : i32
    %207 = tpu.dynamic_rotate %206 by %c124_i32_96 dim 1 : vector<64x128xf32>, i32 -> vector<64x128xf32>
    %208 = arith.maximumf %206, %207 : vector<64x128xf32>
    %c126_i32_97 = arith.constant 126 : i32
    %209 = tpu.dynamic_rotate %208 by %c126_i32_97 dim 1 : vector<64x128xf32>, i32 -> vector<64x128xf32>
    %210 = arith.maximumf %208, %209 : vector<64x128xf32>
    %c127_i32_98 = arith.constant 127 : i32
    %211 = tpu.dynamic_rotate %210 by %c127_i32_98 dim 1 : vector<64x128xf32>, i32 -> vector<64x128xf32>
    %212 = arith.maximumf %210, %211 : vector<64x128xf32>
    %213 = tpu.iota {dimensions = array<i32: 1>} : vector<64x128xi32>
    %c16_i32_99 = arith.constant 16 : i32
    %c0_i32_100 = arith.constant 0 : i32
    %214 = arith.cmpi eq, %c16_i32_99, %c0_i32_100 : i32
    %c1_i32_101 = arith.constant 1 : i32
    %215 = arith.select %214, %c1_i32_101, %c16_i32_99 : i32
    %216 = vector.broadcast %215 : i32 to vector<64x128xi32>
    %217 = arith.remsi %213, %216 : vector<64x128xi32>
    %c0_i32_102 = arith.constant 0 : i32
    %218 = vector.broadcast %c0_i32_102 : i32 to vector<64x128xi32>
    %219 = arith.cmpi ne, %217, %218 : vector<64x128xi32>
    %c0_i32_103 = arith.constant 0 : i32
    %220 = vector.broadcast %c0_i32_103 : i32 to vector<64x128xi32>
    %221 = arith.cmpi slt, %217, %220 : vector<64x128xi32>
    %c0_i32_104 = arith.constant 0 : i32
    %222 = arith.cmpi slt, %215, %c0_i32_104 : i32
    %223 = vector.broadcast %222 : i1 to vector<64x128xi1>
    %224 = vector.broadcast %223 : vector<64x128xi1> to vector<64x128xi1>
    %225 = arith.xori %221, %224 : vector<64x128xi1>
    %226 = arith.andi %225, %219 : vector<64x128xi1>
    %227 = vector.broadcast %215 : i32 to vector<64x128xi32>
    %228 = arith.addi %217, %227 : vector<64x128xi32>
    %229 = arith.select %226, %228, %217 : vector<64x128xi1>, vector<64x128xi32>
    %c0_i32_105 = arith.constant 0 : i32
    %230 = vector.broadcast %c0_i32_105 : i32 to vector<64x128xi32>
    %231 = arith.cmpi eq, %229, %230 : vector<64x128xi32>
    %cst_106 = arith.constant 0.000000e+00 : f32
    %232 = vector.broadcast %cst_106 : f32 to vector<64x128xf32>
    %233 = arith.select %231, %212, %232 : vector<64x128xi1>, vector<64x128xf32>
    %234 = arith.truncf %233 : vector<64x128xf32> to vector<64x128xbf16>
    %cst_107 = arith.constant dense<0.000000e+00> : vector<64x8xf32>
    %235 = tpu.matmul %234, %0, %cst_107 {dimension_numbers = #tpu.dot_dimension_numbers<[1], [1], [0], [0], [0, 0, 1, 0], [], []>} : vector<64x128xbf16>, vector<8x128xbf16>, vector<64x8xf32> -> vector<64x8xf32>
    %c4_108 = arith.constant 4 : index
    %c0_109 = arith.constant 0 : index
    %c0_110 = arith.constant 0 : index
    %236 = vector.load %arg7[%c4_108, %c0_109, %c0_110] : memref<5x64x64xbf16, #tpu.memory_space<vmem>>, vector<1x64x64xbf16>
    %237 = vector.shape_cast %236 : vector<1x64x64xbf16> to vector<64x64xbf16>
    %238 = arith.truncf %235 : vector<64x8xf32> to vector<64x8xbf16>
    %cst_111 = arith.constant dense<0.000000e+00> : vector<64x8xf32>
    %239 = tpu.matmul %237, %238, %cst_111 {dimension_numbers = #tpu.dot_dimension_numbers<[1], [0], [0], [1], [0, 0, 1, 1], [], []>} : vector<64x64xbf16>, vector<64x8xbf16>, vector<64x8xf32> -> vector<64x8xf32>
    %c704 = arith.constant 704 : index
    %c0_112 = arith.constant 0 : index
    %240 = vector.load %arg9[%c704, %c0_112] : memref<768x1xf32, #tpu.memory_space<vmem>>, vector<64x1xf32>
    %241 = vector.broadcast %240 : vector<64x1xf32> to vector<64x8xf32>
    %242 = arith.addf %239, %241 : vector<64x8xf32>
    %cst_113 = arith.constant 1.000000e-01 : f32
    %243 = vector.broadcast %cst_113 : f32 to vector<64x8xf32>
    %244 = arith.mulf %243, %242 : vector<64x8xf32>
    %245 = arith.maximumf %242, %244 : vector<64x8xf32>
    %246 = arith.addf %245, %182 : vector<64x8xf32>
    %c0_114 = arith.constant 0 : index
    %c0_115 = arith.constant 0 : index
    %247 = vector.load %arg10[%c0_114, %c0_115] : memref<8x64xbf16, #tpu.memory_space<vmem>>, vector<8x64xbf16>
    %248 = arith.truncf %246 : vector<64x8xf32> to vector<64x8xbf16>
    %cst_116 = arith.constant dense<0.000000e+00> : vector<8x8xf32>
    %249 = tpu.matmul %247, %248, %cst_116 {dimension_numbers = #tpu.dot_dimension_numbers<[1], [0], [0], [1], [0, 0, 1, 1], [], []>} : vector<8x64xbf16>, vector<64x8xbf16>, vector<8x8xf32> -> vector<8x8xf32>
    %c0_117 = arith.constant 0 : index
    %c0_118 = arith.constant 0 : index
    %250 = vector.load %arg11[%c0_117, %c0_118] : memref<8x1xf32, #tpu.memory_space<vmem>>, vector<8x1xf32>
    %251 = vector.broadcast %250 : vector<8x1xf32> to vector<8x8xf32>
    %252 = arith.addf %249, %251 : vector<8x8xf32>
    %253 = tpu.concatenate %246, %252 in 0 : vector<64x8xf32>, vector<8x8xf32> -> vector<72x8xf32>
    %254 = tpu.transpose %253, [1, 0] : vector<72x8xf32> -> vector<8x72xf32>
    %c0_119 = arith.constant 0 : index
    %c0_120 = arith.constant 0 : index
    %c0_121 = arith.constant 0 : index
    %255 = vector.load %arg13[%c0_119, %c0_120, %c0_121] : memref<1x8x72xf32, #tpu.memory_space<vmem>>, vector<1x8x72xf32>
    %256 = vector.shape_cast %255 : vector<1x8x72xf32> to vector<8x72xf32>
    %257 = vector.shape_cast %254 : vector<8x72xf32> to vector<1x8x72xf32>
    tpu.vector_store %arg13[%c0_119, %c0_120, %c0_121], %257 {strides = array<i32>} : memref<1x8x72xf32, #tpu.memory_space<vmem>>, vector<1x8x72xf32>,
    return
  }
  func.func @transform_0(%arg0: i32) -> (i32, i32) {
    %c0_i32 = arith.constant 0 : i32
    %c0_i32_0 = arith.constant 0 : i32
    return %c0_i32, %arg0 : i32, i32
  }
  func.func @transform_1(%arg0: i32) -> (i32, i32, i32) {
    %c0_i32 = arith.constant 0 : i32
    %c0_i32_0 = arith.constant 0 : i32
    %c0_i32_1 = arith.constant 0 : i32
    %c0_i32_2 = arith.constant 0 : i32
    return %c0_i32, %c0_i32_0, %c0_i32_1 : i32, i32, i32
  }
  func.func @transform_2(%arg0: i32) -> (i32, i32, i32) {
    %c0_i32 = arith.constant 0 : i32
    %c0_i32_0 = arith.constant 0 : i32
    %c0_i32_1 = arith.constant 0 : i32
    %c0_i32_2 = arith.constant 0 : i32
    return %c0_i32, %c0_i32_0, %c0_i32_1 : i32, i32, i32
  }
  func.func @transform_3(%arg0: i32) -> (i32, i32) {
    %c0_i32 = arith.constant 0 : i32
    %c0_i32_0 = arith.constant 0 : i32
    %c0_i32_1 = arith.constant 0 : i32
    return %c0_i32, %c0_i32_0 : i32, i32
  }
  func.func @transform_4(%arg0: i32) -> (i32, i32) {
    %c0_i32 = arith.constant 0 : i32
    %c0_i32_0 = arith.constant 0 : i32
    %c0_i32_1 = arith.constant 0 : i32
    return %c0_i32, %c0_i32_0 : i32, i32
  }
  func.func @transform_5(%arg0: i32) -> (i32, i32) {
    %c0_i32 = arith.constant 0 : i32
    %c0_i32_0 = arith.constant 0 : i32
    %c0_i32_1 = arith.constant 0 : i32
    return %c0_i32, %c0_i32_0 : i32, i32
  }
  func.func @transform_6(%arg0: i32) -> (i32, i32, i32) {
    %c0_i32 = arith.constant 0 : i32
    %c0_i32_0 = arith.constant 0 : i32
    %c0_i32_1 = arith.constant 0 : i32
    %c0_i32_2 = arith.constant 0 : i32
    return %c0_i32, %c0_i32_0, %c0_i32_1 : i32, i32, i32
  }
  func.func @transform_7(%arg0: i32) -> (i32, i32, i32) {
    %c0_i32 = arith.constant 0 : i32
    %c0_i32_0 = arith.constant 0 : i32
    %c0_i32_1 = arith.constant 0 : i32
    %c0_i32_2 = arith.constant 0 : i32
    return %c0_i32, %c0_i32_0, %c0_i32_1 : i32, i32, i32
  }
  func.func @transform_8(%arg0: i32) -> (i32, i32) {
    %c0_i32 = arith.constant 0 : i32
    %c0_i32_0 = arith.constant 0 : i32
    %c0_i32_1 = arith.constant 0 : i32
    return %c0_i32, %c0_i32_0 : i32, i32
  }
  func.func @transform_9(%arg0: i32) -> (i32, i32) {
    %c0_i32 = arith.constant 0 : i32
    %c0_i32_0 = arith.constant 0 : i32
    %c0_i32_1 = arith.constant 0 : i32
    return %c0_i32, %c0_i32_0 : i32, i32
  }
  func.func @transform_10(%arg0: i32) -> (i32, i32) {
    %c0_i32 = arith.constant 0 : i32
    %c0_i32_0 = arith.constant 0 : i32
    %c0_i32_1 = arith.constant 0 : i32
    return %c0_i32, %c0_i32_0 : i32, i32
  }
  func.func @transform_11(%arg0: i32) -> (i32, i32) {
    %c0_i32 = arith.constant 0 : i32
    %c0_i32_0 = arith.constant 0 : i32
    %c0_i32_1 = arith.constant 0 : i32
    return %c0_i32, %c0_i32_0 : i32, i32
  }
  func.func @transform_12(%arg0: i32) -> (i32, i32, i32) {
    %c0_i32 = arith.constant 0 : i32
    %c0_i32_0 = arith.constant 0 : i32
    %c0_i32_1 = arith.constant 0 : i32
    return %arg0, %c0_i32, %c0_i32_0 : i32, i32, i32
  }
}

</mosaic_0001>

<llo_original>
// kernel: neg.2
$region0: #{neg.2}
  #allocation0 [shape = 's32[1]{0}', space=sflag, size = 0x4, scoped, tag = 'scoped memory for neg.2']
  %s0 = inlined_call_operand.vmem [shape: f32[2,8,64], index: 0, kind: input, shape index: {}]
  %s1 = inlined_call_operand.vmem [shape: f32[2,8,64], index: 1, kind: output, shape index: {}]
  %v2 = vld [vmem:[%s0] sm:$0xff]
  %3 = xla_tuple %v2
  %4 = xla_tuple %3
  %v5 = vxor.u32 %v2, 2147483648
  %6 = xla_tuple %v5
  %7 = vst [vmem:[%s1] sm:$0xff] %v5
  %s8 = scalar_lea.vmem %s0, 8
  %v9 = vld [vmem:[%s8] sm:$0xff]
  %10 = xla_tuple %v9
  %11 = xla_tuple %10
  %v12 = vxor.u32 %v9, 2147483648
  %13 = xla_tuple %v12
  %s14 = scalar_lea.vmem %s1, 8
  %15 = vst [vmem:[%s14] sm:$0xff] %v12

// kernel: hand_model_forward.2
$region0: #{hand_model_forward.2}
  #allocation0 [shape = 'u32[]', space=smem, size = 0x4, offset = 0x4, fixed_abs, tag = 'smem constant byte address 0x4 - core index']
  #allocation1 [shape = 'u32[144,128]{1,0:T(1,128)}', space=vmem, size = 0x12000, scoped, tag = 'internal scratch']
  %s0 = inlined_call_operand.vmem [shape: bf16[19,256], index: 0, kind: input, shape index: {}]
  %s1 = inlined_call_operand.vmem [shape: f32[2,64,8], index: 1, kind: input, shape index: {}]
  %s2 = inlined_call_operand.vmem [shape: f32[8,64,8], index: 2, kind: input, shape index: {}]
  %s3 = inlined_call_operand.vmem [shape: bf16[64,64], index: 3, kind: input, shape index: {}]
  %s4 = inlined_call_operand.vmem [shape: bf16[192,19], index: 4, kind: input, shape index: {}]
  %s5 = inlined_call_operand.vmem [shape: bf16[192,64], index: 5, kind: input, shape index: {}]
  %s6 = inlined_call_operand.vmem [shape: bf16[5,64,64], index: 6, kind: input, shape index: {}]
  %s7 = inlined_call_operand.vmem [shape: bf16[2,128,64], index: 7, kind: input, shape index: {}]
  %s8 = inlined_call_operand.vmem [shape: f32[768,1], index: 8, kind: input, shape index: {}]
  %s9 = inlined_call_operand.vmem [shape: bf16[8,64], index: 9, kind: input, shape index: {}]
  %s10 = inlined_call_operand.vmem [shape: f32[8,1], index: 10, kind: input, shape index: {}]
  %s11 = inlined_call_operand.vmem [shape: bf16[8,128], index: 11, kind: input, shape index: {}]
  %s12 = inlined_call_operand.vmem [shape: f32[2,8,72], index: 12, kind: output, shape index: {}]
  %s13 = sld [smem:[#allocation0]]
  $region122: #{hand_model_forward.2} parent=0
    _
  %s15 = ssub.s32 1, %s13
  %s16 = scalar_select 0, %s15, %s13
  $region1: #{hand_model_forward.2} parent=0
    #allocation2 [shape = 'u8[12288]{0}', space=vmem, size = 0x3000, scoped, tag = 'input window, operand 0']
    loop: start=0, step=1, limit=4
    $region2: #{hand_model_forward.2} parent=1 // loop_pre_header
      _
    $region3: #{hand_model_forward.2} parent=1 // loop_header
      %s18 = sphi 0, %s22
      %p19 = scmp.ge.s32.totalorder %s18, 4
      %s28 = sphi 0, %s30
      %s31 = sphi 0, %s28
      %s32 = sphi 0, %s31
      %s48 = sphi 0, %s32
      %s52 = sphi 0, %s52
      %s54 = sphi 0, %s52
      %s55 = sphi 0, %s54
      %s69 = sphi 0, %s55
      %s73 = sphi 0, %s73
      %s75 = sphi 0, %s73
      %s76 = sphi 0, %s75
      %s90 = sphi 0, %s76
      %s94 = sphi 0, %s94
      %s96 = sphi 0, %s94
      %s97 = sphi 0, %s96
      %s111 = sphi 0, %s97
      %s115 = sphi 0, %s115
      %s117 = sphi 0, %s115
      %s118 = sphi 0, %s117
      %s132 = sphi 0, %s118
      %s136 = sphi 0, %s136
      %s138 = sphi 0, %s136
      %s139 = sphi 0, %s138
      %s153 = sphi 0, %s139
      %s157 = sphi 0, %s157
      %s159 = sphi 0, %s157
      %s160 = sphi 0, %s159
      %s174 = sphi 0, %s160
      %s178 = sphi 0, %s178
      %s180 = sphi 0, %s178
      %s181 = sphi 0, %s180
      %s195 = sphi 0, %s181
      %s199 = sphi 0, %s199
      %s201 = sphi 0, %s199
      %s202 = sphi 0, %s201
      %s216 = sphi 0, %s202
      %s220 = sphi 0, %s220
      %s222 = sphi 0, %s220
      %s223 = sphi 0, %s222
      %s237 = sphi 0, %s223
      %s241 = sphi 0, %s241
      %s243 = sphi 0, %s241
      %s244 = sphi 0, %s243
      %s258 = sphi 0, %s244
      %s262 = sphi 0, %s262
      %s264 = sphi 0, %s262
      %s265 = sphi 0, %s264
      %s279 = sphi 0, %s265
      %s285 = sphi 0, %s287
      %s288 = sphi 0, %s285
      %s289 = sphi 0, %s288
      %s305 = sphi 0, %s289
    $region4: #{hand_model_forward.2} parent=1 // loop_header_branch
      %21 = sbr.rel (%p19) target = $region8
    $region5: #{hand_model_forward.2} parent=1 // loop_body
      %s23 = ssub.s32 %s18, 1
      %s24 = ssub.s32 %s18, 2
      %s25 = sadd.s32 %s18, 1
      %s26 = ssub.s32 %s18, %s25
      %p27 = scmp.eq.s32.totalorder %s26, 0
      %s29 = sadd.s32 %s28, 1
      %s30 = scalar_select %p27, %s28, %s29
      %p33 = pneg %p27
      %p34 = scmp.eq.s32.totalorder %s18, 1
      %p35 = por %p33, %p34
      %p36 = scmp.ne.s32.totalorder %s28, %s31
      %p37 = scmp.eq.s32.totalorder %s18, 0
      %p38 = por %p36, %p37
      %p39 = scmp.ne.s32.totalorder %s28, %s31
      %p40 = scmp.eq.s32.totalorder %s23, 1
      %p41 = por %p39, %p40
      %p42 = scmp.ne.s32.totalorder %s31, %s32
      %p43 = scmp.eq.s32.totalorder %s23, 0
      %p44 = por %p42, %p43
      %p45 = scmp.ne.s32.totalorder %s31, %s32
      %p46 = scmp.eq.s32.totalorder %s24, 1
      %p47 = por %p45, %p46
      %p49 = scmp.ne.s32.totalorder %s32, %s48
      %p50 = scmp.eq.s32.totalorder %s24, 0
      %p51 = por %p49, %p50
      %s53 = sadd.s32 %s52, 1
      %p56 = scmp.eq.s32.totalorder %s18, 1
      %p57 = scmp.ne.s32.totalorder %s52, %s54
      %p58 = scmp.eq.s32.totalorder %s18, 0
      %p59 = por %p57, %p58
      %p60 = scmp.ne.s32.totalorder %s52, %s54
      %p61 = scmp.eq.s32.totalorder %s23, 1
      %p62 = por %p60, %p61
      %p63 = scmp.ne.s32.totalorder %s54, %s55
      %p64 = scmp.eq.s32.totalorder %s23, 0
      %p65 = por %p63, %p64
      %p66 = scmp.ne.s32.totalorder %s54, %s55
      %p67 = scmp.eq.s32.totalorder %s24, 1
      %p68 = por %p66, %p67
      %p70 = scmp.ne.s32.totalorder %s55, %s69
      %p71 = scmp.eq.s32.totalorder %s24, 0
      %p72 = por %p70, %p71
      %s74 = sadd.s32 %s73, 1
      %p77 = scmp.eq.s32.totalorder %s18, 1
      %p78 = scmp.ne.s32.totalorder %s73, %s75
      %p79 = scmp.eq.s32.totalorder %s18, 0
      %p80 = por %p78, %p79
      %p81 = scmp.ne.s32.totalorder %s73, %s75
      %p82 = scmp.eq.s32.totalorder %s23, 1
      %p83 = por %p81, %p82
      %p84 = scmp.ne.s32.totalorder %s75, %s76
      %p85 = scmp.eq.s32.totalorder %s23, 0
      %p86 = por %p84, %p85
      %p87 = scmp.ne.s32.totalorder %s75, %s76
      %p88 = scmp.eq.s32.totalorder %s24, 1
      %p89 = por %p87, %p88
      %p91 = scmp.ne.s32.totalorder %s76, %s90
      %p92 = scmp.eq.s32.totalorder %s24, 0
      %p93 = por %p91, %p92
      %s95 = sadd.s32 %s94, 1
      %p98 = scmp.eq.s32.totalorder %s18, 1
      %p99 = scmp.ne.s32.totalorder %s94, %s96
      %p100 = scmp.eq.s32.totalorder %s18, 0
      %p101 = por %p99, %p100
      %p102 = scmp.ne.s32.totalorder %s94, %s96
      %p103 = scmp.eq.s32.totalorder %s23, 1
      %p104 = por %p102, %p103
      %p105 = scmp.ne.s32.totalorder %s96, %s97
      %p106 = scmp.eq.s32.totalorder %s23, 0
      %p107 = por %p105, %p106
      %p108 = scmp.ne.s32.totalorder %s96, %s97
      %p109 = scmp.eq.s32.totalorder %s24, 1
      %p110 = por %p108, %p109
      %p112 = scmp.ne.s32.totalorder %s97, %s111
      %p113 = scmp.eq.s32.totalorder %s24, 0
      %p114 = por %p112, %p113
      %s116 = sadd.s32 %s115, 1
      %p119 = scmp.eq.s32.totalorder %s18, 1
      %p120 = scmp.ne.s32.totalorder %s115, %s117
      %p121 = scmp.eq.s32.totalorder %s18, 0
      %p122 = por %p120, %p121
      %p123 = scmp.ne.s32.totalorder %s115, %s117
      %p124 = scmp.eq.s32.totalorder %s23, 1
      %p125 = por %p123, %p124
      %p126 = scmp.ne.s32.totalorder %s117, %s118
      %p127 = scmp.eq.s32.totalorder %s23, 0
      %p128 = por %p126, %p127
      %p129 = scmp.ne.s32.totalorder %s117, %s118
      %p130 = scmp.eq.s32.totalorder %s24, 1
      %p131 = por %p129, %p130
      %p133 = scmp.ne.s32.totalorder %s118, %s132
      %p134 = scmp.eq.s32.totalorder %s24, 0
      %p135 = por %p133, %p134
      %s137 = sadd.s32 %s136, 1
      %p140 = scmp.eq.s32.totalorder %s18, 1
      %p141 = scmp.ne.s32.totalorder %s136, %s138
      %p142 = scmp.eq.s32.totalorder %s18, 0
      %p143 = por %p141, %p142
      %p144 = scmp.ne.s32.totalorder %s136, %s138
      %p145 = scmp.eq.s32.totalorder %s23, 1
      %p146 = por %p144, %p145
      %p147 = scmp.ne.s32.totalorder %s138, %s139
      %p148 = scmp.eq.s32.totalorder %s23, 0
      %p149 = por %p147, %p148
      %p150 = scmp.ne.s32.totalorder %s138, %s139
      %p151 = scmp.eq.s32.totalorder %s24, 1
      %p152 = por %p150, %p151
      %p154 = scmp.ne.s32.totalorder %s139, %s153
      %p155 = scmp.eq.s32.totalorder %s24, 0
      %p156 = por %p154, %p155
      %s158 = sadd.s32 %s157, 1
      %p161 = scmp.eq.s32.totalorder %s18, 1
      %p162 = scmp.ne.s32.totalorder %s157, %s159
      %p163 = scmp.eq.s32.totalorder %s18, 0
      %p164 = por %p162, %p163
      %p165 = scmp.ne.s32.totalorder %s157, %s159
      %p166 = scmp.eq.s32.totalorder %s23, 1
      %p167 = por %p165, %p166
      %p168 = scmp.ne.s32.totalorder %s159, %s160
      %p169 = scmp.eq.s32.totalorder %s23, 0
      %p170 = por %p168, %p169
      %p171 = scmp.ne.s32.totalorder %s159, %s160
      %p172 = scmp.eq.s32.totalorder %s24, 1
      %p173 = por %p171, %p172
      %p175 = scmp.ne.s32.totalorder %s160, %s174
      %p176 = scmp.eq.s32.totalorder %s24, 0
      %p177 = por %p175, %p176
      %s179 = sadd.s32 %s178, 1
      %p182 = scmp.eq.s32.totalorder %s18, 1
      %p183 = scmp.ne.s32.totalorder %s178, %s180
      %p184 = scmp.eq.s32.totalorder %s18, 0
      %p185 = por %p183, %p184
      %p186 = scmp.ne.s32.totalorder %s178, %s180
      %p187 = scmp.eq.s32.totalorder %s23, 1
      %p188 = por %p186, %p187
      %p189 = scmp.ne.s32.totalorder %s180, %s181
      %p190 = scmp.eq.s32.totalorder %s23, 0
      %p191 = por %p189, %p190
      %p192 = scmp.ne.s32.totalorder %s180, %s181
      %p193 = scmp.eq.s32.totalorder %s24, 1
      %p194 = por %p192, %p193
      %p196 = scmp.ne.s32.totalorder %s181, %s195
      %p197 = scmp.eq.s32.totalorder %s24, 0
      %p198 = por %p196, %p197
      %s200 = sadd.s32 %s199, 1
      %p203 = scmp.eq.s32.totalorder %s18, 1
      %p204 = scmp.ne.s32.totalorder %s199, %s201
      %p205 = scmp.eq.s32.totalorder %s18, 0
      %p206 = por %p204, %p205
      %p207 = scmp.ne.s32.totalorder %s199, %s201
      %p208 = scmp.eq.s32.totalorder %s23, 1
      %p209 = por %p207, %p208
      %p210 = scmp.ne.s32.totalorder %s201, %s202
      %p211 = scmp.eq.s32.totalorder %s23, 0
      %p212 = por %p210, %p211
      %p213 = scmp.ne.s32.totalorder %s201, %s202
      %p214 = scmp.eq.s32.totalorder %s24, 1
      %p215 = por %p213, %p214
      %p217 = scmp.ne.s32.totalorder %s202, %s216
      %p218 = scmp.eq.s32.totalorder %s24, 0
      %p219 = por %p217, %p218
      %s221 = sadd.s32 %s220, 1
      %p224 = scmp.eq.s32.totalorder %s18, 1
      %p225 = scmp.ne.s32.totalorder %s220, %s222
      %p226 = scmp.eq.s32.totalorder %s18, 0
      %p227 = por %p225, %p226
      %p228 = scmp.ne.s32.totalorder %s220, %s222
      %p229 = scmp.eq.s32.totalorder %s23, 1
      %p230 = por %p228, %p229
      %p231 = scmp.ne.s32.totalorder %s222, %s223
      %p232 = scmp.eq.s32.totalorder %s23, 0
      %p233 = por %p231, %p232
      %p234 = scmp.ne.s32.totalorder %s222, %s223
      %p235 = scmp.eq.s32.totalorder %s24, 1
      %p236 = por %p234, %p235
      %p238 = scmp.ne.s32.totalorder %s223, %s237
      %p239 = scmp.eq.s32.totalorder %s24, 0
      %p240 = por %p238, %p239
      %s242 = sadd.s32 %s241, 1
      %p245 = scmp.eq.s32.totalorder %s18, 1
      %p246 = scmp.ne.s32.totalorder %s241, %s243
      %p247 = scmp.eq.s32.totalorder %s18, 0
      %p248 = por %p246, %p247
      %p249 = scmp.ne.s32.totalorder %s241, %s243
      %p250 = scmp.eq.s32.totalorder %s23, 1
      %p251 = por %p249, %p250
      %p252 = scmp.ne.s32.totalorder %s243, %s244
      %p253 = scmp.eq.s32.totalorder %s23, 0
      %p254 = por %p252, %p253
      %p255 = scmp.ne.s32.totalorder %s243, %s244
      %p256 = scmp.eq.s32.totalorder %s24, 1
      %p257 = por %p255, %p256
      %p259 = scmp.ne.s32.totalorder %s244, %s258
      %p260 = scmp.eq.s32.totalorder %s24, 0
      %p261 = por %p259, %p260
      %s263 = sadd.s32 %s262, 1
      %p266 = scmp.eq.s32.totalorder %s18, 1
      %p267 = scmp.ne.s32.totalorder %s262, %s264
      %p268 = scmp.eq.s32.totalorder %s18, 0
      %p269 = por %p267, %p268
      %p270 = scmp.ne.s32.totalorder %s262, %s264
      %p271 = scmp.eq.s32.totalorder %s23, 1
      %p272 = por %p270, %p271
      %p273 = scmp.ne.s32.totalorder %s264, %s265
      %p274 = scmp.eq.s32.totalorder %s23, 0
      %p275 = por %p273, %p274
      %p276 = scmp.ne.s32.totalorder %s264, %s265
      %p277 = scmp.eq.s32.totalorder %s24, 1
      %p278 = por %p276, %p277
      %p280 = scmp.ne.s32.totalorder %s265, %s279
      %p281 = scmp.eq.s32.totalorder %s24, 0
      %p282 = por %p280, %p281
      %s283 = ssub.s32 %s18, %s25
      %p284 = scmp.eq.s32.totalorder %s283, 0
      %s286 = sadd.s32 %s285, 1
      %s287 = scalar_select %p284, %s285, %s286
      %p290 = pneg %p284
      %p291 = scmp.eq.s32.totalorder %s18, 1
      %p292 = por %p290, %p291
      %p293 = scmp.ne.s32.totalorder %s285, %s288
      %p294 = scmp.eq.s32.totalorder %s18, 0
      %p295 = por %p293, %p294
      %p296 = scmp.ne.s32.totalorder %s285, %s288
      %p297 = scmp.eq.s32.totalorder %s23, 1
      %p298 = por %p296, %p297
      %p299 = scmp.ne.s32.totalorder %s288, %s289
      %p300 = scmp.eq.s32.totalorder %s23, 0
      %p301 = por %p299, %p300
      %p302 = scmp.ne.s32.totalorder %s288, %s289
      %p303 = scmp.eq.s32.totalorder %s24, 1
      %p304 = por %p302, %p303
      %p306 = scmp.ne.s32.totalorder %s289, %s305
      %p307 = scmp.eq.s32.totalorder %s24, 0
      %p308 = por %p306, %p307
      %p309 = scmp.le.s32.totalorder 1, %s18
      %p310 = scmp.lt.s32.totalorder %s18, 3
      %p311 = pnand %p309, %p310
      %p312 = pneg %p311
      // Predicated region
      $region9: #{hand_model_forward.2} parent=5 // pred_check
        _
      $region10: #{hand_model_forward.2} parent=5 // pred_check_branch
        %314 = sbr.rel (%p311) target = $region12
      $region11: #{hand_model_forward.2} parent=5 // pred_region
        %s315 = ssub.s32 %s18, 1
        // Predicated region
        $region13: #{hand_model_forward.2} parent=11 // pred_check
          %p316 = pneg %p65
        $region14: #{hand_model_forward.2} parent=11 // pred_check_branch
          %318 = sbr.rel (%p316) target = $region16
        $region15: #{hand_model_forward.2} parent=11 // pred_region
          _
        $region16: #{hand_model_forward.2} parent=11 // pred_fallthru
          _
        // Predicated region
        $region17: #{hand_model_forward.2} parent=11 // pred_check
          %p319 = pneg %p86
        $region18: #{hand_model_forward.2} parent=11 // pred_check_branch
          %321 = sbr.rel (%p319) target = $region20
        $region19: #{hand_model_forward.2} parent=11 // pred_region
          _
        $region20: #{hand_model_forward.2} parent=11 // pred_fallthru
          _
        // Predicated region
        $region21: #{hand_model_forward.2} parent=11 // pred_check
          %p322 = pneg %p107
        $region22: #{hand_model_forward.2} parent=11 // pred_check_branch
          %324 = sbr.rel (%p322) target = $region24
        $region23: #{hand_model_forward.2} parent=11 // pred_region
          _
        $region24: #{hand_model_forward.2} parent=11 // pred_fallthru
          _
        // Predicated region
        $region25: #{hand_model_forward.2} parent=11 // pred_check
          %p325 = pneg %p128
        $region26: #{hand_model_forward.2} parent=11 // pred_check_branch
          %327 = sbr.rel (%p325) target = $region28
        $region27: #{hand_model_forward.2} parent=11 // pred_region
          _
        $region28: #{hand_model_forward.2} parent=11 // pred_fallthru
          _
        // Predicated region
        $region29: #{hand_model_forward.2} parent=11 // pred_check
          %p328 = pneg %p149
        $region30: #{hand_model_forward.2} parent=11 // pred_check_branch
          %330 = sbr.rel (%p328) target = $region32
        $region31: #{hand_model_forward.2} parent=11 // pred_region
          _
        $region32: #{hand_model_forward.2} parent=11 // pred_fallthru
          _
        // Predicated region
        $region33: #{hand_model_forward.2} parent=11 // pred_check
          %p331 = pneg %p170
        $region34: #{hand_model_forward.2} parent=11 // pred_check_branch
          %333 = sbr.rel (%p331) target = $region36
        $region35: #{hand_model_forward.2} parent=11 // pred_region
          _
        $region36: #{hand_model_forward.2} parent=11 // pred_fallthru
          _
        // Predicated region
        $region37: #{hand_model_forward.2} parent=11 // pred_check
          %p334 = pneg %p191
        $region38: #{hand_model_forward.2} parent=11 // pred_check_branch
          %336 = sbr.rel (%p334) target = $region40
        $region39: #{hand_model_forward.2} parent=11 // pred_region
          _
        $region40: #{hand_model_forward.2} parent=11 // pred_fallthru
          _
        // Predicated region
        $region41: #{hand_model_forward.2} parent=11 // pred_check
          %p337 = pneg %p212
        $region42: #{hand_model_forward.2} parent=11 // pred_check_branch
          %339 = sbr.rel (%p337) target = $region44
        $region43: #{hand_model_forward.2} parent=11 // pred_region
          _
        $region44: #{hand_model_forward.2} parent=11 // pred_fallthru
          _
        // Predicated region
        $region45: #{hand_model_forward.2} parent=11 // pred_check
          %p340 = pneg %p233
        $region46: #{hand_model_forward.2} parent=11 // pred_check_branch
          %342 = sbr.rel (%p340) target = $region48
        $region47: #{hand_model_forward.2} parent=11 // pred_region
          _
        $region48: #{hand_model_forward.2} parent=11 // pred_fallthru
          _
        // Predicated region
        $region49: #{hand_model_forward.2} parent=11 // pred_check
          %p343 = pneg %p254
        $region50: #{hand_model_forward.2} parent=11 // pred_check_branch
          %345 = sbr.rel (%p343) target = $region52
        $region51: #{hand_model_forward.2} parent=11 // pred_region
          _
        $region52: #{hand_model_forward.2} parent=11 // pred_fallthru
          _
        // Predicated region
        $region53: #{hand_model_forward.2} parent=11 // pred_check
          %p346 = pneg %p275
        $region54: #{hand_model_forward.2} parent=11 // pred_check_branch
          %348 = sbr.rel (%p346) target = $region56
        $region55: #{hand_model_forward.2} parent=11 // pred_region
          _
        $region56: #{hand_model_forward.2} parent=11 // pred_fallthru
          _
      $region12: #{hand_model_forward.2} parent=5 // pred_fallthru
        _
      %p349 = scmp.lt.s32.totalorder %s18, 2
      // Predicated region
      $region57: #{hand_model_forward.2} parent=5 // pred_check
        %p350 = pneg %p349
      $region58: #{hand_model_forward.2} parent=5 // pred_check_branch
        %352 = sbr.rel (%p350) target = $region60
      $region59: #{hand_model_forward.2} parent=5 // pred_region
        // Predicated region
        $region61: #{hand_model_forward.2} parent=59 // pred_check
          %p353 = pneg %p38
        $region62: #{hand_model_forward.2} parent=59 // pred_check_branch
          %355 = sbr.rel (%p353) target = $region64
        $region63: #{hand_model_forward.2} parent=59 // pred_region
          %s356 = sand.u32 %s28, 1
          %s357 = sand.u32 %s28, 1
          %s358 = smul.addr %s357, 12
          %s359 = scalar_lea.vmem [#allocation2], %s358
          %s360 = smul.addr %s18, 4
          %s361 = scalar_lea.vmem %s0, %s360
          // Predicated region
          $region65: #{hand_model_forward.2} parent=63 // pred_check
            _
          $region66: #{hand_model_forward.2} parent=63 // pred_check_branch
            %363 = sbr.rel (0) target = $region68
          $region67: #{hand_model_forward.2} parent=63 // pred_region
            // Predicated region
            $region69: #{hand_model_forward.2} parent=67 // pred_check
              _
            $region70: #{hand_model_forward.2} parent=67 // pred_check_branch
              %365 = sbr.rel target = $region72
            $region71: #{hand_model_forward.2} parent=67 // pred_region
              // Predicated region
              $region84: #{hand_model_forward.2} parent=71 // pred_check
                _
              $region85: #{hand_model_forward.2} parent=71 // pred_check_branch
                %385 = sbr.rel (0) target = $region87
              $region86: #{hand_model_forward.2} parent=71 // pred_region
                loop: start=0, step=1, limit=1
                $region88: #{hand_model_forward.2} parent=86 // loop_pre_header
                  _
                $region89: #{hand_model_forward.2} parent=86 // loop_header
                  %s387 = sphi 0, %s391
                  %p388 = scmp.ge.s32.totalorder %s387, 1
                  %s392 = sphi %s361, %s361
                  %s393 = sphi %s359, %s359
                $region90: #{hand_model_forward.2} parent=86 // loop_header_branch
                  %390 = sbr.rel (%p388) target = $region94
                $region91: #{hand_model_forward.2} parent=86 // loop_body
                  _
                $region92: #{hand_model_forward.2} parent=86 // loop_footer
                  %s391 = sadd.s32 1, %s387
                $region93: #{hand_model_forward.2} parent=86 // loop_footer_branch
                  %386 = sbr.rel target = $region89
                $region94: #{hand_model_forward.2} parent=86 // loop_exit
                  _
                %s395 = ssub.s32 16, 1
                loop: start=0, step=1, limit=1
                $region95: #{hand_model_forward.2} parent=86 // loop_pre_header
                  _
                $region96: #{hand_model_forward.2} parent=86 // loop_header
                  %s397 = sphi 0, %s401
                  %p398 = scmp.ge.s32.totalorder %s397, 1
                  %s402 = sphi %s361, %s361
                  %s403 = sphi %s359, %s359
                $region97: #{hand_model_forward.2} parent=86 // loop_header_branch
                  %400 = sbr.rel (%p398) target = $region101
                $region98: #{hand_model_forward.2} parent=86 // loop_body
                  %v404 = vld [vmem:[%s402] sm:%s395]
                  %405 = vst [vmem:[%s403] sm:%s395] %v404
                  %v406 = vld [vmem:[%s402 + $0x8] sm:%s395]
                  %407 = vst [vmem:[%s403 + $0x4] sm:%s395] %v406
                  %v408 = vld [vmem:[%s402 + $0x10] sm:%s395]
                  %409 = vst [vmem:[%s403 + $0x8] sm:%s395] %v408
                $region99: #{hand_model_forward.2} parent=86 // loop_footer
                  %s401 = sadd.s32 1, %s397
                $region100: #{hand_model_forward.2} parent=86 // loop_footer_branch
                  %396 = sbr.rel target = $region96
                $region101: #{hand_model_forward.2} parent=86 // loop_exit
                  _
              $region87: #{hand_model_forward.2} parent=71 // pred_fallthru
                _
            $region72: #{hand_model_forward.2} parent=67 // pred_fallthru
              _
            // Predicated region
            $region73: #{hand_model_forward.2} parent=67 // pred_check
              _
            $region74: #{hand_model_forward.2} parent=67 // pred_check_branch
              %367 = sbr.rel (0) target = $region76
            $region75: #{hand_model_forward.2} parent=67 // pred_region
              %s369 = ssub.s32 16, 1
              loop: start=0, step=1, limit=1
              $region77: #{hand_model_forward.2} parent=75 // loop_pre_header
                _
              $region78: #{hand_model_forward.2} parent=75 // loop_header
                %s371 = sphi 0, %s375
                %p372 = scmp.ge.s32.totalorder %s371, 1
                %s376 = sphi %s361, %s361
                %s377 = sphi %s359, %s359
              $region79: #{hand_model_forward.2} parent=75 // loop_header_branch
                %374 = sbr.rel (%p372) target = $region83
              $region80: #{hand_model_forward.2} parent=75 // loop_body
                %v378 = vld [vmem:[%s376] sm:%s369]
                %379 = vst [vmem:[%s377] sm:%s369] %v378
                %v380 = vld [vmem:[%s376 + $0x8] sm:%s369]
                %381 = vst [vmem:[%s377 + $0x4] sm:%s369] %v380
                %v382 = vld [vmem:[%s376 + $0x10] sm:%s369]
                %383 = vst [vmem:[%s377 + $0x8] sm:%s369] %v382
              $region81: #{hand_model_forward.2} parent=75 // loop_footer
                %s375 = sadd.s32 1, %s371
              $region82: #{hand_model_forward.2} parent=75 // loop_footer_branch
                %370 = sbr.rel target = $region78
              $region83: #{hand_model_forward.2} parent=75 // loop_exit
                _
            $region76: #{hand_model_forward.2} parent=67 // pred_fallthru
              _
          $region68: #{hand_model_forward.2} parent=63 // pred_fallthru
            _
          %410 = vnop
        $region64: #{hand_model_forward.2} parent=59 // pred_fallthru
          _
      $region60: #{hand_model_forward.2} parent=5 // pred_fallthru
        _
      %p411 = scmp.le.s32.totalorder 1, %s18
      %p412 = scmp.lt.s32.totalorder %s18, 3
      %p413 = pnand %p411, %p412
      %p414 = pneg %p413
      // Predicated region
      $region102: #{hand_model_forward.2} parent=5 // pred_check
        _
      $region103: #{hand_model_forward.2} parent=5 // pred_check_branch
        %416 = sbr.rel (%p413) target = $region105
      $region104: #{hand_model_forward.2} parent=5 // pred_region
        %s417 = ssub.s32 %s18, 1
        %s418 = sand.u32 %s31, 1
        %s419 = sand.u32 %s31, 1
        %s420 = smul.addr %s419, 12
        %s421 = scalar_lea.vmem [#allocation2], %s420
        // Predicated region
        $region106: #{hand_model_forward.2} parent=104 // pred_check
          %p422 = pneg %p44
        $region107: #{hand_model_forward.2} parent=104 // pred_check_branch
          %424 = sbr.rel (%p422) target = $region109
        $region108: #{hand_model_forward.2} parent=104 // pred_region
          _
        $region109: #{hand_model_forward.2} parent=104 // pred_fallthru
          _
        %s425 = sand.u32 %s31, 1
        %s426 = sand.u32 %s31, 1
        %s427 = smul.addr %s426, 12
        %s428 = scalar_lea.vmem [#allocation2], %s427
        %p429 = pneg %p44
        %p430 = pneg %p41
        %p431 = pneg %p65
        %p432 = pneg %p62
        %p433 = pneg %p86
        %p434 = pneg %p83
        %p435 = pneg %p107
        %p436 = pneg %p104
        %p437 = pneg %p128
        %p438 = pneg %p125
        %p439 = pneg %p149
        %p440 = pneg %p146
        %p441 = pneg %p170
        %p442 = pneg %p167
        %p443 = pneg %p191
        %p444 = pneg %p188
        %p445 = pneg %p212
        %p446 = pneg %p209
        %p447 = pneg %p233
        %p448 = pneg %p230
        %p449 = pneg %p254
        %p450 = pneg %p251
        %p451 = pneg %p275
        %p452 = pneg %p272
        %p453 = pneg %p301
        %p454 = pneg %p298
        %p455 = scmp.lt.s32.totalorder %s23, 1
        %s456 = scalar_select %p455, %s23, 1
        %s457 = smul.addr %s456, 8
        %s458 = scalar_lea.vmem %s12, %s457
        %p459 = scmp.lt.s32.totalorder %s23, 1
        %s460 = scalar_select %p459, %s23, 1
        %s461 = smul.addr %s460, 8
        %s462 = scalar_lea.vmem %s12, %s461
        %v464 = vld [vmem:[%s11] sm:$0xf]
        %v465 = vld [vmem:[%s421] sm:$0xf]
        %v466 = vld [vmem:[%s421 + $0x4] sm:$0xf]
        %v467 = vld [vmem:[%s421 + $0x8] sm:$0x3]
        %s468 = smul.u32 %s23, 64
        %s469 = scalar_lea.vmem %s1, %s468
        %v470 = vld [vmem:[%s469] sm:$0xff]
        %v471 = vld [vmem:[%s469 + $0x8] sm:$0xff]
        %v472 = vld [vmem:[%s469 + $0x10] sm:$0xff]
        %v473 = vld [vmem:[%s469 + $0x18] sm:$0xff]
        %v474 = vld [vmem:[%s469 + $0x20] sm:$0xff]
        %v475 = vld [vmem:[%s469 + $0x28] sm:$0xff]
        %v476 = vld [vmem:[%s469 + $0x30] sm:$0xff]
        %v477 = vld [vmem:[%s469 + $0x38] sm:$0xff]
        %v478 = vld [vmem:[%s2] sm:$0xff]
        %v479 = vld [vmem:[%s2 + $0x8] sm:$0xff]
        %v480 = vld [vmem:[%s2 + $0x10] sm:$0xff]
        %v481 = vld [vmem:[%s2 + $0x18] sm:$0xff]
        %v482 = vld [vmem:[%s2 + $0x20] sm:$0xff]
        %v483 = vld [vmem:[%s2 + $0x28] sm:$0xff]
        %v484 = vld [vmem:[%s2 + $0x30] sm:$0xff]
        %v485 = vld [vmem:[%s2 + $0x38] sm:$0xff]
        %487 = vset.pattern.permute.xlu0 0
        %488 = vperm.xlu0 %487, %v470
        %v489 = vpop.permute.xlu0 %488
        %492 = vset.pattern.permute.xlu0 0
        %493 = vperm.xlu0 %492, %v471
        %v494 = vpop.permute.xlu0 %493
        %497 = vset.pattern.permute.xlu0 0
        %498 = vperm.xlu0 %497, %v472
        %v499 = vpop.permute.xlu0 %498
        %502 = vset.pattern.permute.xlu0 0
        %503 = vperm.xlu0 %502, %v473
        %v504 = vpop.permute.xlu0 %503
        %507 = vset.pattern.permute.xlu0 0
        %508 = vperm.xlu0 %507, %v474
        %v509 = vpop.permute.xlu0 %508
        %512 = vset.pattern.permute.xlu0 0
        %513 = vperm.xlu0 %512, %v475
        %v514 = vpop.permute.xlu0 %513
        %517 = vset.pattern.permute.xlu0 0
        %518 = vperm.xlu0 %517, %v476
        %v519 = vpop.permute.xlu0 %518
        %522 = vset.pattern.permute.xlu0 0
        %523 = vperm.xlu0 %522, %v477
        %v524 = vpop.permute.xlu0 %523
        %v526 = vmul.f32 %v489, %v478
        %v527 = vmul.f32 %v494, %v479
        %v528 = vmul.f32 %v499, %v480
        %v529 = vmul.f32 %v504, %v481
        %v530 = vmul.f32 %v509, %v482
        %v531 = vmul.f32 %v514, %v483
        %v532 = vmul.f32 %v519, %v484
        %v533 = vmul.f32 %v524, %v485
        %s534 = scalar_lea.vmem %s2, 64
        %v535 = vld [vmem:[%s534] sm:$0xff]
        %v536 = vld [vmem:[%s534 + $0x8] sm:$0xff]
        %v537 = vld [vmem:[%s534 + $0x10] sm:$0xff]
        %v538 = vld [vmem:[%s534 + $0x18] sm:$0xff]
        %v539 = vld [vmem:[%s534 + $0x20] sm:$0xff]
        %v540 = vld [vmem:[%s534 + $0x28] sm:$0xff]
        %v541 = vld [vmem:[%s534 + $0x30] sm:$0xff]
        %v542 = vld [vmem:[%s534 + $0x38] sm:$0xff]
        %543 = vset.pattern.permute.xlu0 1
        %544 = vperm.xlu0 %543, %v470
        %v545 = vpop.permute.xlu0 %544
        %547 = vset.pattern.permute.xlu0 1
        %548 = vperm.xlu0 %547, %v471
        %v549 = vpop.permute.xlu0 %548
        %551 = vset.pattern.permute.xlu0 1
        %552 = vperm.xlu0 %551, %v472
        %v553 = vpop.permute.xlu0 %552
        %555 = vset.pattern.permute.xlu0 1
        %556 = vperm.xlu0 %555, %v473
        %v557 = vpop.permute.xlu0 %556
        %559 = vset.pattern.permute.xlu0 1
        %560 = vperm.xlu0 %559, %v474
        %v561 = vpop.permute.xlu0 %560
        %563 = vset.pattern.permute.xlu0 1
        %564 = vperm.xlu0 %563, %v475
        %v565 = vpop.permute.xlu0 %564
        %567 = vset.pattern.permute.xlu0 1
        %568 = vperm.xlu0 %567, %v476
        %v569 = vpop.permute.xlu0 %568
        %571 = vset.pattern.permute.xlu0 1
        %572 = vperm.xlu0 %571, %v477
        %v573 = vpop.permute.xlu0 %572
        %v575 = vmul.f32 %v545, %v535
        %v576 = vmul.f32 %v549, %v536
        %v577 = vmul.f32 %v553, %v537
        %v578 = vmul.f32 %v557, %v538
        %v579 = vmul.f32 %v561, %v539
        %v580 = vmul.f32 %v565, %v540
        %v581 = vmul.f32 %v569, %v541
        %v582 = vmul.f32 %v573, %v542
        %v583 = vadd.f32 %v526, %v575
        %v584 = vadd.f32 %v527, %v576
        %v585 = vadd.f32 %v528, %v577
        %v586 = vadd.f32 %v529, %v578
        %v587 = vadd.f32 %v530, %v579
        %v588 = vadd.f32 %v531, %v580
        %v589 = vadd.f32 %v532, %v581
        %v590 = vadd.f32 %v533, %v582
        %s591 = scalar_lea.vmem %s2, 128
        %v592 = vld [vmem:[%s591] sm:$0xff]
        %v593 = vld [vmem:[%s591 + $0x8] sm:$0xff]
        %v594 = vld [vmem:[%s591 + $0x10] sm:$0xff]
        %v595 = vld [vmem:[%s591 + $0x18] sm:$0xff]
        %v596 = vld [vmem:[%s591 + $0x20] sm:$0xff]
        %v597 = vld [vmem:[%s591 + $0x28] sm:$0xff]
        %v598 = vld [vmem:[%s591 + $0x30] sm:$0xff]
        %v599 = vld [vmem:[%s591 + $0x38] sm:$0xff]
        %600 = vset.pattern.permute.xlu0 2
        %601 = vperm.xlu0 %600, %v470
        %v602 = vpop.permute.xlu0 %601
        %604 = vset.pattern.permute.xlu0 2
        %605 = vperm.xlu0 %604, %v471
        %v606 = vpop.permute.xlu0 %605
        %608 = vset.pattern.permute.xlu0 2
        %609 = vperm.xlu0 %608, %v472
        %v610 = vpop.permute.xlu0 %609
        %612 = vset.pattern.permute.xlu0 2
        %613 = vperm.xlu0 %612, %v473
        %v614 = vpop.permute.xlu0 %613
        %616 = vset.pattern.permute.xlu0 2
        %617 = vperm.xlu0 %616, %v474
        %v618 = vpop.permute.xlu0 %617
        %620 = vset.pattern.permute.xlu0 2
        %621 = vperm.xlu0 %620, %v475
        %v622 = vpop.permute.xlu0 %621
        %624 = vset.pattern.permute.xlu0 2
        %625 = vperm.xlu0 %624, %v476
        %v626 = vpop.permute.xlu0 %625
        %628 = vset.pattern.permute.xlu0 2
        %629 = vperm.xlu0 %628, %v477
        %v630 = vpop.permute.xlu0 %629
        %v632 = vmul.f32 %v602, %v592
        %v633 = vmul.f32 %v606, %v593
        %v634 = vmul.f32 %v610, %v594
        %v635 = vmul.f32 %v614, %v595
        %v636 = vmul.f32 %v618, %v596
        %v637 = vmul.f32 %v622, %v597
        %v638 = vmul.f32 %v626, %v598
        %v639 = vmul.f32 %v630, %v599
        %v640 = vadd.f32 %v583, %v632
        %v641 = vadd.f32 %v584, %v633
        %v642 = vadd.f32 %v585, %v634
        %v643 = vadd.f32 %v586, %v635
        %v644 = vadd.f32 %v587, %v636
        %v645 = vadd.f32 %v588, %v637
        %v646 = vadd.f32 %v589, %v638
        %v647 = vadd.f32 %v590, %v639
        %s648 = scalar_lea.vmem %s2, 192
        %v649 = vld [vmem:[%s648] sm:$0xff]
        %v650 = vld [vmem:[%s648 + $0x8] sm:$0xff]
        %v651 = vld [vmem:[%s648 + $0x10] sm:$0xff]
        %v652 = vld [vmem:[%s648 + $0x18] sm:$0xff]
        %v653 = vld [vmem:[%s648 + $0x20] sm:$0xff]
        %v654 = vld [vmem:[%s648 + $0x28] sm:$0xff]
        %v655 = vld [vmem:[%s648 + $0x30] sm:$0xff]
        %v656 = vld [vmem:[%s648 + $0x38] sm:$0xff]
        %657 = vset.pattern.permute.xlu0 3
        %658 = vperm.xlu0 %657, %v470
        %v659 = vpop.permute.xlu0 %658
        %661 = vset.pattern.permute.xlu0 3
        %662 = vperm.xlu0 %661, %v471
        %v663 = vpop.permute.xlu0 %662
        %665 = vset.pattern.permute.xlu0 3
        %666 = vperm.xlu0 %665, %v472
        %v667 = vpop.permute.xlu0 %666
        %669 = vset.pattern.permute.xlu0 3
        %670 = vperm.xlu0 %669, %v473
        %v671 = vpop.permute.xlu0 %670
        %673 = vset.pattern.permute.xlu0 3
        %674 = vperm.xlu0 %673, %v474
        %v675 = vpop.permute.xlu0 %674
        %677 = vset.pattern.permute.xlu0 3
        %678 = vperm.xlu0 %677, %v475
        %v679 = vpop.permute.xlu0 %678
        %681 = vset.pattern.permute.xlu0 3
        %682 = vperm.xlu0 %681, %v476
        %v683 = vpop.permute.xlu0 %682
        %685 = vset.pattern.permute.xlu0 3
        %686 = vperm.xlu0 %685, %v477
        %v687 = vpop.permute.xlu0 %686
        %v689 = vmul.f32 %v659, %v649
        %v690 = vmul.f32 %v663, %v650
        %v691 = vmul.f32 %v667, %v651
        %v692 = vmul.f32 %v671, %v652
        %v693 = vmul.f32 %v675, %v653
        %v694 = vmul.f32 %v679, %v654
        %v695 = vmul.f32 %v683, %v655
        %v696 = vmul.f32 %v687, %v656
        %v697 = vadd.f32 %v640, %v689
        %v698 = vadd.f32 %v641, %v690
        %v699 = vadd.f32 %v642, %v691
        %v700 = vadd.f32 %v643, %v692
        %v701 = vadd.f32 %v644, %v693
        %v702 = vadd.f32 %v645, %v694
        %v703 = vadd.f32 %v646, %v695
        %v704 = vadd.f32 %v647, %v696
        %s705 = scalar_lea.vmem %s2, 256
        %v706 = vld [vmem:[%s705] sm:$0xff]
        %v707 = vld [vmem:[%s705 + $0x8] sm:$0xff]
        %v708 = vld [vmem:[%s705 + $0x10] sm:$0xff]
        %v709 = vld [vmem:[%s705 + $0x18] sm:$0xff]
        %v710 = vld [vmem:[%s705 + $0x20] sm:$0xff]
        %v711 = vld [vmem:[%s705 + $0x28] sm:$0xff]
        %v712 = vld [vmem:[%s705 + $0x30] sm:$0xff]
        %v713 = vld [vmem:[%s705 + $0x38] sm:$0xff]
        %714 = vset.pattern.permute.xlu0 4
        %715 = vperm.xlu0 %714, %v470
        %v716 = vpop.permute.xlu0 %715
        %718 = vset.pattern.permute.xlu0 4
        %719 = vperm.xlu0 %718, %v471
        %v720 = vpop.permute.xlu0 %719
        %722 = vset.pattern.permute.xlu0 4
        %723 = vperm.xlu0 %722, %v472
        %v724 = vpop.permute.xlu0 %723
        %726 = vset.pattern.permute.xlu0 4
        %727 = vperm.xlu0 %726, %v473
        %v728 = vpop.permute.xlu0 %727
        %730 = vset.pattern.permute.xlu0 4
        %731 = vperm.xlu0 %730, %v474
        %v732 = vpop.permute.xlu0 %731
        %734 = vset.pattern.permute.xlu0 4
        %735 = vperm.xlu0 %734, %v475
        %v736 = vpop.permute.xlu0 %735
        %738 = vset.pattern.permute.xlu0 4
        %739 = vperm.xlu0 %738, %v476
        %v740 = vpop.permute.xlu0 %739
        %742 = vset.pattern.permute.xlu0 4
        %743 = vperm.xlu0 %742, %v477
        %v744 = vpop.permute.xlu0 %743
        %v746 = vmul.f32 %v716, %v706
        %v747 = vmul.f32 %v720, %v707
        %v748 = vmul.f32 %v724, %v708
        %v749 = vmul.f32 %v728, %v709
        %v750 = vmul.f32 %v732, %v710
        %v751 = vmul.f32 %v736, %v711
        %v752 = vmul.f32 %v740, %v712
        %v753 = vmul.f32 %v744, %v713
        %v754 = vadd.f32 %v697, %v746
        %v755 = vadd.f32 %v698, %v747
        %v756 = vadd.f32 %v699, %v748
        %v757 = vadd.f32 %v700, %v749
        %v758 = vadd.f32 %v701, %v750
        %v759 = vadd.f32 %v702, %v751
        %v760 = vadd.f32 %v703, %v752
        %v761 = vadd.f32 %v704, %v753
        %s762 = scalar_lea.vmem %s2, 320
        %v763 = vld [vmem:[%s762] sm:$0xff]
        %v764 = vld [vmem:[%s762 + $0x8] sm:$0xff]
        %v765 = vld [vmem:[%s762 + $0x10] sm:$0xff]
        %v766 = vld [vmem:[%s762 + $0x18] sm:$0xff]
        %v767 = vld [vmem:[%s762 + $0x20] sm:$0xff]
        %v768 = vld [vmem:[%s762 + $0x28] sm:$0xff]
        %v769 = vld [vmem:[%s762 + $0x30] sm:$0xff]
        %v770 = vld [vmem:[%s762 + $0x38] sm:$0xff]
        %771 = vset.pattern.permute.xlu0 5
        %772 = vperm.xlu0 %771, %v470
        %v773 = vpop.permute.xlu0 %772
        %775 = vset.pattern.permute.xlu0 5
        %776 = vperm.xlu0 %775, %v471
        %v777 = vpop.permute.xlu0 %776
        %779 = vset.pattern.permute.xlu0 5
        %780 = vperm.xlu0 %779, %v472
        %v781 = vpop.permute.xlu0 %780
        %783 = vset.pattern.permute.xlu0 5
        %784 = vperm.xlu0 %783, %v473
        %v785 = vpop.permute.xlu0 %784
        %787 = vset.pattern.permute.xlu0 5
        %788 = vperm.xlu0 %787, %v474
        %v789 = vpop.permute.xlu0 %788
        %791 = vset.pattern.permute.xlu0 5
        %792 = vperm.xlu0 %791, %v475
        %v793 = vpop.permute.xlu0 %792
        %795 = vset.pattern.permute.xlu0 5
        %796 = vperm.xlu0 %795, %v476
        %v797 = vpop.permute.xlu0 %796
        %799 = vset.pattern.permute.xlu0 5
        %800 = vperm.xlu0 %799, %v477
        %v801 = vpop.permute.xlu0 %800
        %v803 = vmul.f32 %v773, %v763
        %v804 = vmul.f32 %v777, %v764
        %v805 = vmul.f32 %v781, %v765
        %v806 = vmul.f32 %v785, %v766
        %v807 = vmul.f32 %v789, %v767
        %v808 = vmul.f32 %v793, %v768
        %v809 = vmul.f32 %v797, %v769
        %v810 = vmul.f32 %v801, %v770
        %v811 = vadd.f32 %v754, %v803
        %v812 = vadd.f32 %v755, %v804
        %v813 = vadd.f32 %v756, %v805
        %v814 = vadd.f32 %v757, %v806
        %v815 = vadd.f32 %v758, %v807
        %v816 = vadd.f32 %v759, %v808
        %v817 = vadd.f32 %v760, %v809
        %v818 = vadd.f32 %v761, %v810
        %s819 = scalar_lea.vmem %s2, 384
        %v820 = vld [vmem:[%s819] sm:$0xff]
        %v821 = vld [vmem:[%s819 + $0x8] sm:$0xff]
        %v822 = vld [vmem:[%s819 + $0x10] sm:$0xff]
        %v823 = vld [vmem:[%s819 + $0x18] sm:$0xff]
        %v824 = vld [vmem:[%s819 + $0x20] sm:$0xff]
        %v825 = vld [vmem:[%s819 + $0x28] sm:$0xff]
        %v826 = vld [vmem:[%s819 + $0x30] sm:$0xff]
        %v827 = vld [vmem:[%s819 + $0x38] sm:$0xff]
        %828 = vset.pattern.permute.xlu0 6
        %829 = vperm.xlu0 %828, %v470
        %v830 = vpop.permute.xlu0 %829
        %832 = vset.pattern.permute.xlu0 6
        %833 = vperm.xlu0 %832, %v471
        %v834 = vpop.permute.xlu0 %833
        %836 = vset.pattern.permute.xlu0 6
        %837 = vperm.xlu0 %836, %v472
        %v838 = vpop.permute.xlu0 %837
        %840 = vset.pattern.permute.xlu0 6
        %841 = vperm.xlu0 %840, %v473
        %v842 = vpop.permute.xlu0 %841
        %844 = vset.pattern.permute.xlu0 6
        %845 = vperm.xlu0 %844, %v474
        %v846 = vpop.permute.xlu0 %845
        %848 = vset.pattern.permute.xlu0 6
        %849 = vperm.xlu0 %848, %v475
        %v850 = vpop.permute.xlu0 %849
        %852 = vset.pattern.permute.xlu0 6
        %853 = vperm.xlu0 %852, %v476
        %v854 = vpop.permute.xlu0 %853
        %856 = vset.pattern.permute.xlu0 6
        %857 = vperm.xlu0 %856, %v477
        %v858 = vpop.permute.xlu0 %857
        %v860 = vmul.f32 %v830, %v820
        %v861 = vmul.f32 %v834, %v821
        %v862 = vmul.f32 %v838, %v822
        %v863 = vmul.f32 %v842, %v823
        %v864 = vmul.f32 %v846, %v824
        %v865 = vmul.f32 %v850, %v825
        %v866 = vmul.f32 %v854, %v826
        %v867 = vmul.f32 %v858, %v827
        %v868 = vadd.f32 %v811, %v860
        %v869 = vadd.f32 %v812, %v861
        %v870 = vadd.f32 %v813, %v862
        %v871 = vadd.f32 %v814, %v863
        %v872 = vadd.f32 %v815, %v864
        %v873 = vadd.f32 %v816, %v865
        %v874 = vadd.f32 %v817, %v866
        %v875 = vadd.f32 %v818, %v867
        %s876 = scalar_lea.vmem %s2, 448
        %v877 = vld [vmem:[%s876] sm:$0xff]
        %v878 = vld [vmem:[%s876 + $0x8] sm:$0xff]
        %v879 = vld [vmem:[%s876 + $0x10] sm:$0xff]
        %v880 = vld [vmem:[%s876 + $0x18] sm:$0xff]
        %v881 = vld [vmem:[%s876 + $0x20] sm:$0xff]
        %v882 = vld [vmem:[%s876 + $0x28] sm:$0xff]
        %v883 = vld [vmem:[%s876 + $0x30] sm:$0xff]
        %v884 = vld [vmem:[%s876 + $0x38] sm:$0xff]
        %885 = vset.pattern.permute.xlu0 7
        %886 = vperm.xlu0 %885, %v470
        %v887 = vpop.permute.xlu0 %886
        %889 = vset.pattern.permute.xlu0 7
        %890 = vperm.xlu0 %889, %v471
        %v891 = vpop.permute.xlu0 %890
        %893 = vset.pattern.permute.xlu0 7
        %894 = vperm.xlu0 %893, %v472
        %v895 = vpop.permute.xlu0 %894
        %897 = vset.pattern.permute.xlu0 7
        %898 = vperm.xlu0 %897, %v473
        %v899 = vpop.permute.xlu0 %898
        %901 = vset.pattern.permute.xlu0 7
        %902 = vperm.xlu0 %901, %v474
        %v903 = vpop.permute.xlu0 %902
        %905 = vset.pattern.permute.xlu0 7
        %906 = vperm.xlu0 %905, %v475
        %v907 = vpop.permute.xlu0 %906
        %909 = vset.pattern.permute.xlu0 7
        %910 = vperm.xlu0 %909, %v476
        %v911 = vpop.permute.xlu0 %910
        %913 = vset.pattern.permute.xlu0 7
        %914 = vperm.xlu0 %913, %v477
        %v915 = vpop.permute.xlu0 %914
        %v917 = vmul.f32 %v887, %v877
        %v918 = vmul.f32 %v891, %v878
        %v919 = vmul.f32 %v895, %v879
        %v920 = vmul.f32 %v899, %v880
        %v921 = vmul.f32 %v903, %v881
        %v922 = vmul.f32 %v907, %v882
        %v923 = vmul.f32 %v911, %v883
        %v924 = vmul.f32 %v915, %v884
        %v925 = vadd.f32 %v868, %v917
        %v926 = vadd.f32 %v869, %v918
        %v927 = vadd.f32 %v870, %v919
        %v928 = vadd.f32 %v871, %v920
        %v929 = vadd.f32 %v872, %v921
        %v930 = vadd.f32 %v873, %v922
        %v931 = vadd.f32 %v874, %v923
        %v932 = vadd.f32 %v875, %v924
        %v933 = vld [vmem:[%s3] sm:$0xf]
        %v934 = vld [vmem:[%s3 + $0x4] sm:$0xf]
        %v935 = vld [vmem:[%s3 + $0x8] sm:$0xf]
        %v936 = vld [vmem:[%s3 + $0xc] sm:$0xf]
        %v937 = vld [vmem:[%s3 + $0x10] sm:$0xf]
        %v938 = vld [vmem:[%s3 + $0x14] sm:$0xf]
        %v939 = vld [vmem:[%s3 + $0x18] sm:$0xf]
        %v940 = vld [vmem:[%s3 + $0x1c] sm:$0xf]
        %v941 = vpack.c.bf16 %v926, %v925
        %v942 = vpack.c.bf16 %v928, %v927
        %v943 = vpack.c.bf16 %v930, %v929
        %v944 = vpack.c.bf16 %v932, %v931
        %v945 = vld [vmem:[%s8] sm:$0xff]
        %v946 = vld [vmem:[%s8 + $0x8] sm:$0xff]
        %v947 = vld [vmem:[%s8 + $0x10] sm:$0xff]
        %v948 = vld [vmem:[%s8 + $0x18] sm:$0xff]
        %v949 = vld [vmem:[%s8 + $0x20] sm:$0xff]
        %v950 = vld [vmem:[%s8 + $0x28] sm:$0xff]
        %v951 = vld [vmem:[%s8 + $0x30] sm:$0xff]
        %v952 = vld [vmem:[%s8 + $0x38] sm:$0xff]
        %954 = vset.pattern.permute.xlu0 0
        %955 = vperm.xlu0 %954, %v945
        %v956 = vpop.permute.xlu0 %955
        %959 = vset.pattern.permute.xlu0 0
        %960 = vperm.xlu0 %959, %v946
        %v961 = vpop.permute.xlu0 %960
        %964 = vset.pattern.permute.xlu0 0
        %965 = vperm.xlu0 %964, %v947
        %v966 = vpop.permute.xlu0 %965
        %969 = vset.pattern.permute.xlu0 0
        %970 = vperm.xlu0 %969, %v948
        %v971 = vpop.permute.xlu0 %970
        %974 = vset.pattern.permute.xlu0 0
        %975 = vperm.xlu0 %974, %v949
        %v976 = vpop.permute.xlu0 %975
        %979 = vset.pattern.permute.xlu0 0
        %980 = vperm.xlu0 %979, %v950
        %v981 = vpop.permute.xlu0 %980
        %984 = vset.pattern.permute.xlu0 0
        %985 = vperm.xlu0 %984, %v951
        %v986 = vpop.permute.xlu0 %985
        %989 = vset.pattern.permute.xlu0 0
        %990 = vperm.xlu0 %989, %v952
        %v991 = vpop.permute.xlu0 %990
        %v1001 = vunpack.c.l.b16 %v933
        %v1002 = vunpack.c.l.b16 %v934
        %v1003 = vunpack.c.l.b16 %v935
        %v1004 = vunpack.c.l.b16 %v936
        %v1005 = vunpack.c.l.b16 %v937
        %v1006 = vunpack.c.l.b16 %v938
        %v1007 = vunpack.c.l.b16 %v939
        %v1008 = vunpack.c.l.b16 %v940
        %v1009 = vpack.c.b16 %v1002, %v1001
        %v1010 = vpack.c.b16 %v1004, %v1003
        %v1011 = vpack.c.b16 %v1006, %v1005
        %v1012 = vpack.c.b16 %v1008, %v1007
        %vm1013 = vcmask 523264
        %v1015 = vsel %vm1013, %v1009, 0
        %v1018 = vsel %vm1013, %v1010, 0
        %v1021 = vsel %vm1013, %v1011, 0
        %v1024 = vsel %vm1013, %v1012, 0
        %1026 = vmatprep.subr.bf16.mxu0 0
        %1027 = vmatpush1.bf16.msra.mxu0 0
        %1028 = vmatprep.subr.bf16.mxu0 0
        %1029 = vmatpush1.bf16.msra.mxu0 0
        %1030 = vmatprep.subr.bf16.mxu0 0
        %1031 = vmatpush1.bf16.msra.mxu0 0
        %1032 = vmatprep.subr.bf16.mxu0 0
        %1033 = vmatpush1.bf16.msra.mxu0 0
        %1034 = vmatprep.subr.bf16.mxu0 0
        %1035 = vmatpush1.bf16.msra.mxu0 %v944
        %1036 = vmatprep.subr.bf16.mxu0 0
        %1037 = vmatpush1.bf16.msra.mxu0 %v943
        %1038 = vmatprep.subr.bf16.mxu0 0
        %1039 = vmatpush1.bf16.msra.mxu0 %v942
        %1040 = vmatprep.subr.bf16.mxu0 0
        %1041 = vmatpush1.bf16.msra.mxu0 %v941
        %1042 = vmatprep.subr.bf16.mxu0 0
        %1043 = vmatpush2.bf16.msra.mxu0 0
        %1044 = vmatprep.subr.bf16.mxu0 0
        %1045 = vmatpush2.bf16.msra.mxu0 0
        %1046 = vmatprep.subr.bf16.mxu0 0
        %1047 = vmatpush2.bf16.msra.mxu0 0
        %1048 = vmatprep.subr.bf16.mxu0 0
        %1049 = vmatpush2.bf16.msra.mxu0 0
        %1050 = vmatprep.subr.bf16.mxu0 0
        %1051 = vmatpush2.bf16.msra.mxu0 0
        %1052 = vmatprep.subr.bf16.mxu0 0
        %1053 = vmatpush2.bf16.msra.mxu0 0
        %1054 = vmatprep.subr.bf16.mxu0 0
        %1055 = vmatpush2.bf16.msra.mxu0 0
        %1056 = vmatprep.subr.bf16.mxu0 0
        %1057 = vmatpush2.bf16.msra.mxu0 0
        %1058 = vmatprep.mubr.bf16.mxu0 0
        %1059 = vmatmul.mubr.bf16.gmra.mxu0 %v1015
        %v1060 = vpop.f32.mrf.mxu0
        %v1061 = vadd.f32 %v956, %v1060
        %v1062 = vpop.f32.mrf.mxu0
        %v1063 = vpop.f32.mrf.mxu0
        %v1064 = vadd.f32 %v961, %v1063
        %v1065 = vpop.f32.mrf.mxu0
        %1066 = vmatprep.mubr.bf16.mxu0 0
        %1067 = vmatmul.mubr.bf16.gmra.mxu0 %v1018
        %v1068 = vpop.f32.mrf.mxu0
        %v1069 = vadd.f32 %v966, %v1068
        %v1070 = vpop.f32.mrf.mxu0
        %v1071 = vpop.f32.mrf.mxu0
        %v1072 = vadd.f32 %v971, %v1071
        %v1073 = vpop.f32.mrf.mxu0
        %1074 = vmatprep.mubr.bf16.mxu0 0
        %1075 = vmatmul.mubr.bf16.gmra.mxu0 %v1021
        %v1076 = vpop.f32.mrf.mxu0
        %v1077 = vadd.f32 %v976, %v1076
        %v1078 = vpop.f32.mrf.mxu0
        %v1079 = vpop.f32.mrf.mxu0
        %v1080 = vadd.f32 %v981, %v1079
        %v1081 = vpop.f32.mrf.mxu0
        %1082 = vmatprep.mubr.bf16.mxu0 0
        %1083 = vmatmul.mubr.bf16.gmra.mxu0 %v1024
        %v1084 = vpop.f32.mrf.mxu0
        %v1085 = vadd.f32 %v986, %v1084
        %v1086 = vpop.f32.mrf.mxu0
        %v1087 = vpop.f32.mrf.mxu0
        %v1088 = vadd.f32 %v991, %v1087
        %v1089 = vpop.f32.mrf.mxu0
        %1090 = vdwg.mxu0
        %v1091 = vmul.f32 %v1061, 0.1
        %v1092 = vmul.f32 %v1064, 0.1
        %v1093 = vmul.f32 %v1069, 0.1
        %v1094 = vmul.f32 %v1072, 0.1
        %v1095 = vmul.f32 %v1077, 0.1
        %v1096 = vmul.f32 %v1080, 0.1
        %v1097 = vmul.f32 %v1085, 0.1
        %v1098 = vmul.f32 %v1088, 0.1
        %v1099 = vmax.f32 %v1061, %v1091
        %v1100 = vmax.f32 %v1064, %v1092
        %v1101 = vmax.f32 %v1069, %v1093
        %v1102 = vmax.f32 %v1072, %v1094
        %v1103 = vmax.f32 %v1077, %v1095
        %v1104 = vmax.f32 %v1080, %v1096
        %v1105 = vmax.f32 %v1085, %v1097
        %v1106 = vmax.f32 %v1088, %v1098
        %v1107 = vld [vmem:[%s5] sm:$0xf]
        %v1108 = vld [vmem:[%s5 + $0x4] sm:$0xf]
        %v1109 = vld [vmem:[%s5 + $0x8] sm:$0xf]
        %v1110 = vld [vmem:[%s5 + $0xc] sm:$0xf]
        %v1111 = vld [vmem:[%s5 + $0x10] sm:$0xf]
        %v1112 = vld [vmem:[%s5 + $0x14] sm:$0xf]
        %v1113 = vld [vmem:[%s5 + $0x18] sm:$0xf]
        %v1114 = vld [vmem:[%s5 + $0x1c] sm:$0xf]
        %v1115 = vld [vmem:[%s5 + $0x20] sm:$0xf]
        %v1116 = vld [vmem:[%s5 + $0x24] sm:$0xf]
        %v1117 = vld [vmem:[%s5 + $0x28] sm:$0xf]
        %v1118 = vld [vmem:[%s5 + $0x2c] sm:$0xf]
        %v1119 = vld [vmem:[%s5 + $0x30] sm:$0xf]
        %v1120 = vld [vmem:[%s5 + $0x34] sm:$0xf]
        %v1121 = vld [vmem:[%s5 + $0x38] sm:$0xf]
        %v1122 = vld [vmem:[%s5 + $0x3c] sm:$0xf]
        %v1123 = vpack.c.bf16 %v1100, %v1099
        %v1124 = vpack.c.bf16 %v1102, %v1101
        %v1125 = vpack.c.bf16 %v1104, %v1103
        %v1126 = vpack.c.bf16 %v1106, %v1105
        %v1143 = vunpack.c.l.b16 %v1107
        %v1144 = vunpack.c.l.b16 %v1108
        %v1145 = vunpack.c.l.b16 %v1109
        %v1146 = vunpack.c.l.b16 %v1110
        %v1147 = vunpack.c.l.b16 %v1111
        %v1148 = vunpack.c.l.b16 %v1112
        %v1149 = vunpack.c.l.b16 %v1113
        %v1150 = vunpack.c.l.b16 %v1114
        %v1151 = vunpack.c.l.b16 %v1115
        %v1152 = vunpack.c.l.b16 %v1116
        %v1153 = vunpack.c.l.b16 %v1117
        %v1154 = vunpack.c.l.b16 %v1118
        %v1155 = vunpack.c.l.b16 %v1119
        %v1156 = vunpack.c.l.b16 %v1120
        %v1157 = vunpack.c.l.b16 %v1121
        %v1158 = vunpack.c.l.b16 %v1122
        %v1159 = vpack.c.b16 %v1144, %v1143
        %v1160 = vpack.c.b16 %v1146, %v1145
        %v1161 = vpack.c.b16 %v1148, %v1147
        %v1162 = vpack.c.b16 %v1150, %v1149
        %v1163 = vpack.c.b16 %v1152, %v1151
        %v1164 = vpack.c.b16 %v1154, %v1153
        %v1165 = vpack.c.b16 %v1156, %v1155
        %v1166 = vpack.c.b16 %v1158, %v1157
        %v1168 = vsel %vm1013, %v1159, 0
        %v1171 = vsel %vm1013, %v1160, 0
        %v1174 = vsel %vm1013, %v1161, 0
        %v1177 = vsel %vm1013, %v1162, 0
        %v1180 = vsel %vm1013, %v1163, 0
        %v1183 = vsel %vm1013, %v1164, 0
        %v1186 = vsel %vm1013, %v1165, 0
        %v1189 = vsel %vm1013, %v1166, 0
        %1191 = vmatprep.subr.bf16.mxu0 0
        %1192 = vmatpush1.bf16.msra.mxu0 0
        %1193 = vmatprep.subr.bf16.mxu0 0
        %1194 = vmatpush1.bf16.msra.mxu0 0
        %1195 = vmatprep.subr.bf16.mxu0 0
        %1196 = vmatpush1.bf16.msra.mxu0 0
        %1197 = vmatprep.subr.bf16.mxu0 0
        %1198 = vmatpush1.bf16.msra.mxu0 0
        %1199 = vmatprep.subr.bf16.mxu0 0
        %1200 = vmatpush1.bf16.msra.mxu0 %v1126
        %1201 = vmatprep.subr.bf16.mxu0 0
        %1202 = vmatpush1.bf16.msra.mxu0 %v1125
        %1203 = vmatprep.subr.bf16.mxu0 0
        %1204 = vmatpush1.bf16.msra.mxu0 %v1124
        %1205 = vmatprep.subr.bf16.mxu0 0
        %1206 = vmatpush1.bf16.msra.mxu0 %v1123
        %1207 = vmatprep.subr.bf16.mxu0 0
        %1208 = vmatpush2.bf16.msra.mxu0 0
        %1209 = vmatprep.subr.bf16.mxu0 0
        %1210 = vmatpush2.bf16.msra.mxu0 0
        %1211 = vmatprep.subr.bf16.mxu0 0
        %1212 = vmatpush2.bf16.msra.mxu0 0
        %1213 = vmatprep.subr.bf16.mxu0 0
        %1214 = vmatpush2.bf16.msra.mxu0 0
        %1215 = vmatprep.subr.bf16.mxu0 0
        %1216 = vmatpush2.bf16.msra.mxu0 0
        %1217 = vmatprep.subr.bf16.mxu0 0
        %1218 = vmatpush2.bf16.msra.mxu0 0
        %1219 = vmatprep.subr.bf16.mxu0 0
        %1220 = vmatpush2.bf16.msra.mxu0 0
        %1221 = vmatprep.subr.bf16.mxu0 0
        %1222 = vmatpush2.bf16.msra.mxu0 0
        %1223 = vmatprep.mubr.bf16.mxu0 0
        %1224 = vmatmul.mubr.bf16.gmra.mxu0 %v1168
        %v1225 = vpop.f32.mrf.mxu0
        %v1226 = vadd.f32 0.0, %v1225
        %v1227 = vpop.f32.mrf.mxu0
        %v1228 = vpop.f32.mrf.mxu0
        %v1229 = vadd.f32 0.0, %v1228
        %v1230 = vpop.f32.mrf.mxu0
        %1231 = vmatprep.mubr.bf16.mxu0 0
        %1232 = vmatmul.mubr.bf16.gmra.mxu0 %v1171
        %v1233 = vpop.f32.mrf.mxu0
        %v1234 = vadd.f32 0.0, %v1233
        %v1235 = vpop.f32.mrf.mxu0
        %v1236 = vpop.f32.mrf.mxu0
        %v1237 = vadd.f32 0.0, %v1236
        %v1238 = vpop.f32.mrf.mxu0
        %1239 = vmatprep.mubr.bf16.mxu0 0
        %1240 = vmatmul.mubr.bf16.gmra.mxu0 %v1174
        %v1241 = vpop.f32.mrf.mxu0
        %v1242 = vadd.f32 0.0, %v1241
        %v1243 = vpop.f32.mrf.mxu0
        %v1244 = vpop.f32.mrf.mxu0
        %v1245 = vadd.f32 0.0, %v1244
        %v1246 = vpop.f32.mrf.mxu0
        %1247 = vmatprep.mubr.bf16.mxu0 0
        %1248 = vmatmul.mubr.bf16.gmra.mxu0 %v1177
        %v1249 = vpop.f32.mrf.mxu0
        %v1250 = vadd.f32 0.0, %v1249
        %v1251 = vpop.f32.mrf.mxu0
        %v1252 = vpop.f32.mrf.mxu0
        %v1253 = vadd.f32 0.0, %v1252
        %v1254 = vpop.f32.mrf.mxu0
        %1255 = vmatprep.mubr.bf16.mxu0 0
        %1256 = vmatmul.mubr.bf16.gmra.mxu0 %v1180
        %v1257 = vpop.f32.mrf.mxu0
        %v1258 = vadd.f32 0.0, %v1257
        %v1259 = vpop.f32.mrf.mxu0
        %v1260 = vpop.f32.mrf.mxu0
        %v1261 = vadd.f32 0.0, %v1260
        %v1262 = vpop.f32.mrf.mxu0
        %1263 = vmatprep.mubr.bf16.mxu0 0
        %1264 = vmatmul.mubr.bf16.gmra.mxu0 %v1183
        %v1265 = vpop.f32.mrf.mxu0
        %v1266 = vadd.f32 0.0, %v1265
        %v1267 = vpop.f32.mrf.mxu0
        %v1268 = vpop.f32.mrf.mxu0
        %v1269 = vadd.f32 0.0, %v1268
        %v1270 = vpop.f32.mrf.mxu0
        %1271 = vmatprep.mubr.bf16.mxu0 0
        %1272 = vmatmul.mubr.bf16.gmra.mxu0 %v1186
        %v1273 = vpop.f32.mrf.mxu0
        %v1274 = vadd.f32 0.0, %v1273
        %v1275 = vpop.f32.mrf.mxu0
        %v1276 = vpop.f32.mrf.mxu0
        %v1277 = vadd.f32 0.0, %v1276
        %v1278 = vpop.f32.mrf.mxu0
        %1279 = vmatprep.mubr.bf16.mxu0 0
        %1280 = vmatmul.mubr.bf16.gmra.mxu0 %v1189
        %v1281 = vpop.f32.mrf.mxu0
        %v1282 = vadd.f32 0.0, %v1281
        %v1283 = vpop.f32.mrf.mxu0
        %v1284 = vpop.f32.mrf.mxu0
        %v1285 = vadd.f32 0.0, %v1284
        %v1286 = vpop.f32.mrf.mxu0
        %1287 = vdwg.mxu0
        %v1288 = vld [vmem:[%s4] sm:$0xf]
        %v1289 = vld [vmem:[%s4 + $0x4] sm:$0xf]
        %v1290 = vld [vmem:[%s4 + $0x8] sm:$0xf]
        %v1291 = vld [vmem:[%s4 + $0xc] sm:$0xf]
        %v1292 = vld [vmem:[%s4 + $0x10] sm:$0xf]
        %v1293 = vld [vmem:[%s4 + $0x14] sm:$0xf]
        %v1294 = vld [vmem:[%s4 + $0x18] sm:$0xf]
        %v1295 = vld [vmem:[%s4 + $0x1c] sm:$0xf]
        %v1296 = vld [vmem:[%s8 + $0x40] sm:$0xff]
        %v1297 = vld [vmem:[%s8 + $0x48] sm:$0xff]
        %v1298 = vld [vmem:[%s8 + $0x50] sm:$0xff]
        %v1299 = vld [vmem:[%s8 + $0x58] sm:$0xff]
        %v1300 = vld [vmem:[%s8 + $0x60] sm:$0xff]
        %v1301 = vld [vmem:[%s8 + $0x68] sm:$0xff]
        %v1302 = vld [vmem:[%s8 + $0x70] sm:$0xff]
        %v1303 = vld [vmem:[%s8 + $0x78] sm:$0xff]
        %1305 = vset.pattern.permute.xlu0 0
        %1306 = vperm.xlu0 %1305, %v1296
        %v1307 = vpop.permute.xlu0 %1306
        %1310 = vset.pattern.permute.xlu0 0
        %1311 = vperm.xlu0 %1310, %v1297
        %v1312 = vpop.permute.xlu0 %1311
        %1315 = vset.pattern.permute.xlu0 0
        %1316 = vperm.xlu0 %1315, %v1298
        %v1317 = vpop.permute.xlu0 %1316
        %1320 = vset.pattern.permute.xlu0 0
        %1321 = vperm.xlu0 %1320, %v1299
        %v1322 = vpop.permute.xlu0 %1321
        %1325 = vset.pattern.permute.xlu0 0
        %1326 = vperm.xlu0 %1325, %v1300
        %v1327 = vpop.permute.xlu0 %1326
        %1330 = vset.pattern.permute.xlu0 0
        %1331 = vperm.xlu0 %1330, %v1301
        %v1332 = vpop.permute.xlu0 %1331
        %1335 = vset.pattern.permute.xlu0 0
        %1336 = vperm.xlu0 %1335, %v1302
        %v1337 = vpop.permute.xlu0 %1336
        %1340 = vset.pattern.permute.xlu0 0
        %1341 = vperm.xlu0 %1340, %v1303
        %v1342 = vpop.permute.xlu0 %1341
        %v1352 = vunpack.c.l.b16 %v1288
        %v1353 = vunpack.c.l.b16 %v1289
        %v1354 = vunpack.c.l.b16 %v1290
        %v1355 = vunpack.c.l.b16 %v1291
        %v1356 = vunpack.c.l.b16 %v1292
        %v1357 = vunpack.c.l.b16 %v1293
        %v1358 = vunpack.c.l.b16 %v1294
        %v1359 = vunpack.c.l.b16 %v1295
        %v1360 = vpack.c.b16 %v1353, %v1352
        %v1361 = vpack.c.b16 %v1355, %v1354
        %v1362 = vpack.c.b16 %v1357, %v1356
        %v1363 = vpack.c.b16 %v1359, %v1358
        %v1367 = vunpack.c.l.b16 %v465
        %v1368 = vunpack.c.l.b16 %v466
        %v1369 = vunpack.c.l.b16 %v467
        %v1370 = vpack.c.b16 %v1368, %v1367
        %v1371 = vpack.c.b16 %v1369, %v1369
        %vm1373 = vcmask 154624
        %v1375 = vsel %vm1373, %v1360, 0
        %v1378 = vsel %vm1373, %v1361, 0
        %v1381 = vsel %vm1373, %v1362, 0
        %v1384 = vsel %vm1373, %v1363, 0
        %vm1386 = vcmask 1040384
        %vm1387 = vcmask 1041408
        %v1388 = vsel %vm1386, 4294967295, 65535
        %v1389 = vsel %vm1387, %v1388, 0
        %v1391 = vand.u32 %v1371, %v1389
        %1393 = vmatprep.subr.bf16.mxu0 0
        %1394 = vmatpush1.bf16.msra.mxu0 0
        %1395 = vmatprep.subr.bf16.mxu0 0
        %1396 = vmatpush1.bf16.msra.mxu0 0
        %1397 = vmatprep.subr.bf16.mxu0 0
        %1398 = vmatpush1.bf16.msra.mxu0 0
        %1399 = vmatprep.subr.bf16.mxu0 0
        %1400 = vmatpush1.bf16.msra.mxu0 0
        %1401 = vmatprep.subr.bf16.mxu0 0
        %1402 = vmatpush1.bf16.msra.mxu0 0
        %1403 = vmatprep.subr.bf16.mxu0 0
        %1404 = vmatpush1.bf16.msra.mxu0 0
        %1405 = vmatprep.subr.bf16.mxu0 0
        %1406 = vmatpush1.bf16.msra.mxu0 %v1391
        %1407 = vmatprep.subr.bf16.mxu0 0
        %1408 = vmatpush1.bf16.msra.mxu0 %v1370
        %1409 = vmatprep.subr.bf16.mxu0 0
        %1410 = vmatpush2.bf16.msra.mxu0 0
        %1411 = vmatprep.subr.bf16.mxu0 0
        %1412 = vmatpush2.bf16.msra.mxu0 0
        %1413 = vmatprep.subr.bf16.mxu0 0
        %1414 = vmatpush2.bf16.msra.mxu0 0
        %1415 = vmatprep.subr.bf16.mxu0 0
        %1416 = vmatpush2.bf16.msra.mxu0 0
        %1417 = vmatprep.subr.bf16.mxu0 0
        %1418 = vmatpush2.bf16.msra.mxu0 0
        %1419 = vmatprep.subr.bf16.mxu0 0
        %1420 = vmatpush2.bf16.msra.mxu0 0
        %1421 = vmatprep.subr.bf16.mxu0 0
        %1422 = vmatpush2.bf16.msra.mxu0 0
        %1423 = vmatprep.subr.bf16.mxu0 0
        %1424 = vmatpush2.bf16.msra.mxu0 0
        %1425 = vmatprep.mubr.bf16.mxu0 0
        %1426 = vmatmul.mubr.bf16.gmra.mxu0 %v1375
        %v1427 = vpop.f32.mrf.mxu0
        %v1428 = vadd.f32 %v1307, %v1427
        %v1429 = vpop.f32.mrf.mxu0
        %v1430 = vpop.f32.mrf.mxu0
        %v1431 = vadd.f32 %v1312, %v1430
        %v1432 = vpop.f32.mrf.mxu0
        %1433 = vmatprep.mubr.bf16.mxu0 0
        %1434 = vmatmul.mubr.bf16.gmra.mxu0 %v1378
        %v1435 = vpop.f32.mrf.mxu0
        %v1436 = vadd.f32 %v1317, %v1435
        %v1437 = vpop.f32.mrf.mxu0
        %v1438 = vpop.f32.mrf.mxu0
        %v1439 = vadd.f32 %v1322, %v1438
        %v1440 = vpop.f32.mrf.mxu0
        %1441 = vmatprep.mubr.bf16.mxu0 0
        %1442 = vmatmul.mubr.bf16.gmra.mxu0 %v1381
        %v1443 = vpop.f32.mrf.mxu0
        %v1444 = vadd.f32 %v1327, %v1443
        %v1445 = vpop.f32.mrf.mxu0
        %v1446 = vpop.f32.mrf.mxu0
        %v1447 = vadd.f32 %v1332, %v1446
        %v1448 = vpop.f32.mrf.mxu0
        %1449 = vmatprep.mubr.bf16.mxu0 0
        %1450 = vmatmul.mubr.bf16.gmra.mxu0 %v1384
        %v1451 = vpop.f32.mrf.mxu0
        %v1452 = vadd.f32 %v1337, %v1451
        %v1453 = vpop.f32.mrf.mxu0
        %v1454 = vpop.f32.mrf.mxu0
        %v1455 = vadd.f32 %v1342, %v1454
        %v1456 = vpop.f32.mrf.mxu0
        %1457 = vdwg.mxu0
        %v1458 = vpack.c.bf16 %v1229, %v1226
        %v1459 = vpack.c.bf16 %v1237, %v1234
        %v1460 = vpack.c.bf16 %v1245, %v1242
        %v1461 = vpack.c.bf16 %v1253, %v1250
        %vm1462 = vcmask 64512
        %v1464 = vsel %vm1462, %v1458, 0
        %v1467 = vsel %vm1462, %v1459, 0
        %v1470 = vsel %vm1462, %v1460, 0
        %v1473 = vsel %vm1462, %v1461, 0
        %vm1475 = vcmask 1043456
        %v1477 = vsel %vm1475, %v464, 0
        %1479 = vmatprep.subr.bf16.mxu0 0
        %1480 = vmatpush1.bf16.msra.mxu0 0
        %1481 = vmatprep.subr.bf16.mxu0 0
        %1482 = vmatpush1.bf16.msra.mxu0 0
        %1483 = vmatprep.subr.bf16.mxu0 0
        %1484 = vmatpush1.bf16.msra.mxu0 0
        %1485 = vmatprep.subr.bf16.mxu0 0
        %1486 = vmatpush1.bf16.msra.mxu0 0
        %1487 = vmatprep.subr.bf16.mxu0 0
        %1488 = vmatpush1.bf16.msra.mxu0 0
        %1489 = vmatprep.subr.bf16.mxu0 0
        %1490 = vmatpush1.bf16.msra.mxu0 0
        %1491 = vmatprep.subr.bf16.mxu0 0
        %1492 = vmatpush1.bf16.msra.mxu0 0
        %1493 = vmatprep.subr.bf16.mxu0 0
        %1494 = vmatpush1.bf16.msra.mxu0 %v1477
        %1495 = vmatprep.subr.bf16.mxu0 0
        %1496 = vmatpush2.bf16.msra.mxu0 0
        %1497 = vmatprep.subr.bf16.mxu0 0
        %1498 = vmatpush2.bf16.msra.mxu0 0
        %1499 = vmatprep.subr.bf16.mxu0 0
        %1500 = vmatpush2.bf16.msra.mxu0 0
        %1501 = vmatprep.subr.bf16.mxu0 0
        %1502 = vmatpush2.bf16.msra.mxu0 0
        %1503 = vmatprep.subr.bf16.mxu0 0
        %1504 = vmatpush2.bf16.msra.mxu0 0
        %1505 = vmatprep.subr.bf16.mxu0 0
        %1506 = vmatpush2.bf16.msra.mxu0 0
        %1507 = vmatprep.subr.bf16.mxu0 0
        %1508 = vmatpush2.bf16.msra.mxu0 0
        %1509 = vmatprep.subr.bf16.mxu0 0
        %1510 = vmatpush2.bf16.msra.mxu0 0
        %1511 = vmatprep.mubr.bf16.mxu0 0
        %1512 = vmatmul.mubr.bf16.gmra.mxu0 %v1464
        %v1513 = vpop.f32.mrf.mxu0
        %v1514 = vadd.f32 0.0, %v1513
        %v1515 = vpop.f32.mrf.mxu0
        %v1516 = vpop.f32.mrf.mxu0
        %v1517 = vadd.f32 0.0, %v1516
        %v1518 = vpop.f32.mrf.mxu0
        %1519 = vmatprep.mubr.bf16.mxu0 0
        %1520 = vmatmul.mubr.bf16.gmra.mxu0 %v1467
        %v1521 = vpop.f32.mrf.mxu0
        %v1522 = vadd.f32 0.0, %v1521
        %v1523 = vpop.f32.mrf.mxu0
        %v1524 = vpop.f32.mrf.mxu0
        %v1525 = vadd.f32 0.0, %v1524
        %v1526 = vpop.f32.mrf.mxu0
        %1527 = vmatprep.mubr.bf16.mxu0 0
        %1528 = vmatmul.mubr.bf16.gmra.mxu0 %v1470
        %v1529 = vpop.f32.mrf.mxu0
        %v1530 = vadd.f32 0.0, %v1529
        %v1531 = vpop.f32.mrf.mxu0
        %v1532 = vpop.f32.mrf.mxu0
        %v1533 = vadd.f32 0.0, %v1532
        %v1534 = vpop.f32.mrf.mxu0
        %1535 = vmatprep.mubr.bf16.mxu0 0
        %1536 = vmatmul.mubr.bf16.gmra.mxu0 %v1473
        %v1537 = vpop.f32.mrf.mxu0
        %v1538 = vadd.f32 0.0, %v1537
        %v1539 = vpop.f32.mrf.mxu0
        %v1540 = vpop.f32.mrf.mxu0
        %v1541 = vadd.f32 0.0, %v1540
        %v1542 = vpop.f32.mrf.mxu0
        %1543 = vdwg.mxu0
        %v1544 = vadd.f32 %v1428, %v1514
        %v1545 = vadd.f32 %v1431, %v1517
        %v1546 = vadd.f32 %v1436, %v1522
        %v1547 = vadd.f32 %v1439, %v1525
        %v1548 = vadd.f32 %v1444, %v1530
        %v1549 = vadd.f32 %v1447, %v1533
        %v1550 = vadd.f32 %v1452, %v1538
        %v1551 = vadd.f32 %v1455, %v1541
        %v1552 = vmul.f32 %v1544, 0.1
        %v1553 = vmul.f32 %v1545, 0.1
        %v1554 = vmul.f32 %v1546, 0.1
        %v1555 = vmul.f32 %v1547, 0.1
        %v1556 = vmul.f32 %v1548, 0.1
        %v1557 = vmul.f32 %v1549, 0.1
        %v1558 = vmul.f32 %v1550, 0.1
        %v1559 = vmul.f32 %v1551, 0.1
        %v1560 = vmax.f32 %v1544, %v1552
        %v1561 = vmax.f32 %v1545, %v1553
        %v1562 = vmax.f32 %v1546, %v1554
        %v1563 = vmax.f32 %v1547, %v1555
        %v1564 = vmax.f32 %v1548, %v1556
        %v1565 = vmax.f32 %v1549, %v1557
        %v1566 = vmax.f32 %v1550, %v1558
        %v1567 = vmax.f32 %v1551, %v1559
        %v1568 = vld [vmem:[%s6] sm:$0xf]
        %v1569 = vld [vmem:[%s6 + $0x4] sm:$0xf]
        %v1570 = vld [vmem:[%s6 + $0x8] sm:$0xf]
        %v1571 = vld [vmem:[%s6 + $0xc] sm:$0xf]
        %v1572 = vld [vmem:[%s6 + $0x10] sm:$0xf]
        %v1573 = vld [vmem:[%s6 + $0x14] sm:$0xf]
        %v1574 = vld [vmem:[%s6 + $0x18] sm:$0xf]
        %v1575 = vld [vmem:[%s6 + $0x1c] sm:$0xf]
        %v1576 = vpack.c.bf16 %v1561, %v1560
        %v1577 = vpack.c.bf16 %v1563, %v1562
        %v1578 = vpack.c.bf16 %v1565, %v1564
        %v1579 = vpack.c.bf16 %v1567, %v1566
        %v1580 = vld [vmem:[%s8 + $0x80] sm:$0xff]
        %v1581 = vld [vmem:[%s8 + $0x88] sm:$0xff]
        %v1582 = vld [vmem:[%s8 + $0x90] sm:$0xff]
        %v1583 = vld [vmem:[%s8 + $0x98] sm:$0xff]
        %v1584 = vld [vmem:[%s8 + $0xa0] sm:$0xff]
        %v1585 = vld [vmem:[%s8 + $0xa8] sm:$0xff]
        %v1586 = vld [vmem:[%s8 + $0xb0] sm:$0xff]
        %v1587 = vld [vmem:[%s8 + $0xb8] sm:$0xff]
        %1589 = vset.pattern.permute.xlu0 0
        %1590 = vperm.xlu0 %1589, %v1580
        %v1591 = vpop.permute.xlu0 %1590
        %1594 = vset.pattern.permute.xlu0 0
        %1595 = vperm.xlu0 %1594, %v1581
        %v1596 = vpop.permute.xlu0 %1595
        %1599 = vset.pattern.permute.xlu0 0
        %1600 = vperm.xlu0 %1599, %v1582
        %v1601 = vpop.permute.xlu0 %1600
        %1604 = vset.pattern.permute.xlu0 0
        %1605 = vperm.xlu0 %1604, %v1583
        %v1606 = vpop.permute.xlu0 %1605
        %1609 = vset.pattern.permute.xlu0 0
        %1610 = vperm.xlu0 %1609, %v1584
        %v1611 = vpop.permute.xlu0 %1610
        %1614 = vset.pattern.permute.xlu0 0
        %1615 = vperm.xlu0 %1614, %v1585
        %v1616 = vpop.permute.xlu0 %1615
        %1619 = vset.pattern.permute.xlu0 0
        %1620 = vperm.xlu0 %1619, %v1586
        %v1621 = vpop.permute.xlu0 %1620
        %1624 = vset.pattern.permute.xlu0 0
        %1625 = vperm.xlu0 %1624, %v1587
        %v1626 = vpop.permute.xlu0 %1625
        %v1636 = vunpack.c.l.b16 %v1568
        %v1637 = vunpack.c.l.b16 %v1569
        %v1638 = vunpack.c.l.b16 %v1570
        %v1639 = vunpack.c.l.b16 %v1571
        %v1640 = vunpack.c.l.b16 %v1572
        %v1641 = vunpack.c.l.b16 %v1573
        %v1642 = vunpack.c.l.b16 %v1574
        %v1643 = vunpack.c.l.b16 %v1575
        %v1644 = vpack.c.b16 %v1637, %v1636
        %v1645 = vpack.c.b16 %v1639, %v1638
        %v1646 = vpack.c.b16 %v1641, %v1640
        %v1647 = vpack.c.b16 %v1643, %v1642
        %v1649 = vsel %vm1013, %v1644, 0
        %v1652 = vsel %vm1013, %v1645, 0
        %v1655 = vsel %vm1013, %v1646, 0
        %v1658 = vsel %vm1013, %v1647, 0
        %1660 = vmatprep.subr.bf16.mxu0 0
        %1661 = vmatpush1.bf16.msra.mxu0 0
        %1662 = vmatprep.subr.bf16.mxu0 0
        %1663 = vmatpush1.bf16.msra.mxu0 0
        %1664 = vmatprep.subr.bf16.mxu0 0
        %1665 = vmatpush1.bf16.msra.mxu0 0
        %1666 = vmatprep.subr.bf16.mxu0 0
        %1667 = vmatpush1.bf16.msra.mxu0 0
        %1668 = vmatprep.subr.bf16.mxu0 0
        %1669 = vmatpush1.bf16.msra.mxu0 %v1579
        %1670 = vmatprep.subr.bf16.mxu0 0
        %1671 = vmatpush1.bf16.msra.mxu0 %v1578
        %1672 = vmatprep.subr.bf16.mxu0 0
        %1673 = vmatpush1.bf16.msra.mxu0 %v1577
        %1674 = vmatprep.subr.bf16.mxu0 0
        %1675 = vmatpush1.bf16.msra.mxu0 %v1576
        %1676 = vmatprep.subr.bf16.mxu0 0
        %1677 = vmatpush2.bf16.msra.mxu0 0
        %1678 = vmatprep.subr.bf16.mxu0 0
        %1679 = vmatpush2.bf16.msra.mxu0 0
        %1680 = vmatprep.subr.bf16.mxu0 0
        %1681 = vmatpush2.bf16.msra.mxu0 0
        %1682 = vmatprep.subr.bf16.mxu0 0
        %1683 = vmatpush2.bf16.msra.mxu0 0
        %1684 = vmatprep.subr.bf16.mxu0 0
        %1685 = vmatpush2.bf16.msra.mxu0 0
        %1686 = vmatprep.subr.bf16.mxu0 0
        %1687 = vmatpush2.bf16.msra.mxu0 0
        %1688 = vmatprep.subr.bf16.mxu0 0
        %1689 = vmatpush2.bf16.msra.mxu0 0
        %1690 = vmatprep.subr.bf16.mxu0 0
        %1691 = vmatpush2.bf16.msra.mxu0 0
        %1692 = vmatprep.mubr.bf16.mxu0 0
        %1693 = vmatmul.mubr.bf16.gmra.mxu0 %v1649
        %v1694 = vpop.f32.mrf.mxu0
        %v1695 = vadd.f32 %v1591, %v1694
        %v1696 = vpop.f32.mrf.mxu0
        %v1697 = vpop.f32.mrf.mxu0
        %v1698 = vadd.f32 %v1596, %v1697
        %v1699 = vpop.f32.mrf.mxu0
        %1700 = vmatprep.mubr.bf16.mxu0 0
        %1701 = vmatmul.mubr.bf16.gmra.mxu0 %v1652
        %v1702 = vpop.f32.mrf.mxu0
        %v1703 = vadd.f32 %v1601, %v1702
        %v1704 = vpop.f32.mrf.mxu0
        %v1705 = vpop.f32.mrf.mxu0
        %v1706 = vadd.f32 %v1606, %v1705
        %v1707 = vpop.f32.mrf.mxu0
        %1708 = vmatprep.mubr.bf16.mxu0 0
        %1709 = vmatmul.mubr.bf16.gmra.mxu0 %v1655
        %v1710 = vpop.f32.mrf.mxu0
        %v1711 = vadd.f32 %v1611, %v1710
        %v1712 = vpop.f32.mrf.mxu0
        %v1713 = vpop.f32.mrf.mxu0
        %v1714 = vadd.f32 %v1616, %v1713
        %v1715 = vpop.f32.mrf.mxu0
        %1716 = vmatprep.mubr.bf16.mxu0 0
        %1717 = vmatmul.mubr.bf16.gmra.mxu0 %v1658
        %v1718 = vpop.f32.mrf.mxu0
        %v1719 = vadd.f32 %v1621, %v1718
        %v1720 = vpop.f32.mrf.mxu0
        %v1721 = vpop.f32.mrf.mxu0
        %v1722 = vadd.f32 %v1626, %v1721
        %v1723 = vpop.f32.mrf.mxu0
        %1724 = vdwg.mxu0
        %v1725 = vmul.f32 %v1695, 0.1
        %v1726 = vmul.f32 %v1698, 0.1
        %v1727 = vmul.f32 %v1703, 0.1
        %v1728 = vmul.f32 %v1706, 0.1
        %v1729 = vmul.f32 %v1711, 0.1
        %v1730 = vmul.f32 %v1714, 0.1
        %v1731 = vmul.f32 %v1719, 0.1
        %v1732 = vmul.f32 %v1722, 0.1
        %v1733 = vmax.f32 %v1695, %v1725
        %v1734 = vmax.f32 %v1698, %v1726
        %v1735 = vmax.f32 %v1703, %v1727
        %v1736 = vmax.f32 %v1706, %v1728
        %v1737 = vmax.f32 %v1711, %v1729
        %v1738 = vmax.f32 %v1714, %v1730
        %v1739 = vmax.f32 %v1719, %v1731
        %v1740 = vmax.f32 %v1722, %v1732
        %v1741 = vld [vmem:[%s7] sm:$0xf]
        %v1742 = vld [vmem:[%s7 + $0x4] sm:$0xf]
        %v1743 = vld [vmem:[%s7 + $0x8] sm:$0xf]
        %v1744 = vld [vmem:[%s7 + $0xc] sm:$0xf]
        %v1745 = vld [vmem:[%s7 + $0x10] sm:$0xf]
        %v1746 = vld [vmem:[%s7 + $0x14] sm:$0xf]
        %v1747 = vld [vmem:[%s7 + $0x18] sm:$0xf]
        %v1748 = vld [vmem:[%s7 + $0x1c] sm:$0xf]
        %v1749 = vld [vmem:[%s7 + $0x20] sm:$0xf]
        %v1750 = vld [vmem:[%s7 + $0x24] sm:$0xf]
        %v1751 = vld [vmem:[%s7 + $0x28] sm:$0xf]
        %v1752 = vld [vmem:[%s7 + $0x2c] sm:$0xf]
        %v1753 = vld [vmem:[%s7 + $0x30] sm:$0xf]
        %v1754 = vld [vmem:[%s7 + $0x34] sm:$0xf]
        %v1755 = vld [vmem:[%s7 + $0x38] sm:$0xf]
        %v1756 = vld [vmem:[%s7 + $0x3c] sm:$0xf]
        %v1757 = vpack.c.bf16 %v1734, %v1733
        %v1758 = vpack.c.bf16 %v1736, %v1735
        %v1759 = vpack.c.bf16 %v1738, %v1737
        %v1760 = vpack.c.bf16 %v1740, %v1739
        %v1761 = vld [vmem:[%s8 + $0xc0] sm:$0xff]
        %v1762 = vld [vmem:[%s8 + $0xc8] sm:$0xff]
        %v1763 = vld [vmem:[%s8 + $0xd0] sm:$0xff]
        %v1764 = vld [vmem:[%s8 + $0xd8] sm:$0xff]
        %v1765 = vld [vmem:[%s8 + $0xe0] sm:$0xff]
        %v1766 = vld [vmem:[%s8 + $0xe8] sm:$0xff]
        %v1767 = vld [vmem:[%s8 + $0xf0] sm:$0xff]
        %v1768 = vld [vmem:[%s8 + $0xf8] sm:$0xff]
        %v1769 = vld [vmem:[%s8 + $0x100] sm:$0xff]
        %v1770 = vld [vmem:[%s8 + $0x108] sm:$0xff]
        %v1771 = vld [vmem:[%s8 + $0x110] sm:$0xff]
        %v1772 = vld [vmem:[%s8 + $0x118] sm:$0xff]
        %v1773 = vld [vmem:[%s8 + $0x120] sm:$0xff]
        %v1774 = vld [vmem:[%s8 + $0x128] sm:$0xff]
        %v1775 = vld [vmem:[%s8 + $0x130] sm:$0xff]
        %v1776 = vld [vmem:[%s8 + $0x138] sm:$0xff]
        %1778 = vset.pattern.permute.xlu0 0
        %1779 = vperm.xlu0 %1778, %v1761
        %v1780 = vpop.permute.xlu0 %1779
        %1783 = vset.pattern.permute.xlu0 0
        %1784 = vperm.xlu0 %1783, %v1762
        %v1785 = vpop.permute.xlu0 %1784
        %1788 = vset.pattern.permute.xlu0 0
        %1789 = vperm.xlu0 %1788, %v1763
        %v1790 = vpop.permute.xlu0 %1789
        %1793 = vset.pattern.permute.xlu0 0
        %1794 = vperm.xlu0 %1793, %v1764
        %v1795 = vpop.permute.xlu0 %1794
        %1798 = vset.pattern.permute.xlu0 0
        %1799 = vperm.xlu0 %1798, %v1765
        %v1800 = vpop.permute.xlu0 %1799
        %1803 = vset.pattern.permute.xlu0 0
        %1804 = vperm.xlu0 %1803, %v1766
        %v1805 = vpop.permute.xlu0 %1804
        %1808 = vset.pattern.permute.xlu0 0
        %1809 = vperm.xlu0 %1808, %v1767
        %v1810 = vpop.permute.xlu0 %1809
        %1813 = vset.pattern.permute.xlu0 0
        %1814 = vperm.xlu0 %1813, %v1768
        %v1815 = vpop.permute.xlu0 %1814
        %1818 = vset.pattern.permute.xlu0 0
        %1819 = vperm.xlu0 %1818, %v1769
        %v1820 = vpop.permute.xlu0 %1819
        %1823 = vset.pattern.permute.xlu0 0
        %1824 = vperm.xlu0 %1823, %v1770
        %v1825 = vpop.permute.xlu0 %1824
        %1828 = vset.pattern.permute.xlu0 0
        %1829 = vperm.xlu0 %1828, %v1771
        %v1830 = vpop.permute.xlu0 %1829
        %1833 = vset.pattern.permute.xlu0 0
        %1834 = vperm.xlu0 %1833, %v1772
        %v1835 = vpop.permute.xlu0 %1834
        %1838 = vset.pattern.permute.xlu0 0
        %1839 = vperm.xlu0 %1838, %v1773
        %v1840 = vpop.permute.xlu0 %1839
        %1843 = vset.pattern.permute.xlu0 0
        %1844 = vperm.xlu0 %1843, %v1774
        %v1845 = vpop.permute.xlu0 %1844
        %1848 = vset.pattern.permute.xlu0 0
        %1849 = vperm.xlu0 %1848, %v1775
        %v1850 = vpop.permute.xlu0 %1849
        %1853 = vset.pattern.permute.xlu0 0
        %1854 = vperm.xlu0 %1853, %v1776
        %v1855 = vpop.permute.xlu0 %1854
        %v1873 = vunpack.c.l.b16 %v1741
        %v1874 = vunpack.c.l.b16 %v1742
        %v1875 = vunpack.c.l.b16 %v1743
        %v1876 = vunpack.c.l.b16 %v1744
        %v1877 = vunpack.c.l.b16 %v1745
        %v1878 = vunpack.c.l.b16 %v1746
        %v1879 = vunpack.c.l.b16 %v1747
        %v1880 = vunpack.c.l.b16 %v1748
        %v1881 = vunpack.c.l.b16 %v1749
        %v1882 = vunpack.c.l.b16 %v1750
        %v1883 = vunpack.c.l.b16 %v1751
        %v1884 = vunpack.c.l.b16 %v1752
        %v1885 = vunpack.c.l.b16 %v1753
        %v1886 = vunpack.c.l.b16 %v1754
        %v1887 = vunpack.c.l.b16 %v1755
        %v1888 = vunpack.c.l.b16 %v1756
        %v1889 = vpack.c.b16 %v1874, %v1873
        %v1890 = vpack.c.b16 %v1876, %v1875
        %v1891 = vpack.c.b16 %v1878, %v1877
        %v1892 = vpack.c.b16 %v1880, %v1879
        %v1893 = vpack.c.b16 %v1882, %v1881
        %v1894 = vpack.c.b16 %v1884, %v1883
        %v1895 = vpack.c.b16 %v1886, %v1885
        %v1896 = vpack.c.b16 %v1888, %v1887
        %v1898 = vsel %vm1013, %v1889, 0
        %v1901 = vsel %vm1013, %v1890, 0
        %v1904 = vsel %vm1013, %v1891, 0
        %v1907 = vsel %vm1013, %v1892, 0
        %v1910 = vsel %vm1013, %v1893, 0
        %v1913 = vsel %vm1013, %v1894, 0
        %v1916 = vsel %vm1013, %v1895, 0
        %v1919 = vsel %vm1013, %v1896, 0
        %1921 = vmatprep.subr.bf16.mxu0 0
        %1922 = vmatpush1.bf16.msra.mxu0 0
        %1923 = vmatprep.subr.bf16.mxu0 0
        %1924 = vmatpush1.bf16.msra.mxu0 0
        %1925 = vmatprep.subr.bf16.mxu0 0
        %1926 = vmatpush1.bf16.msra.mxu0 0
        %1927 = vmatprep.subr.bf16.mxu0 0
        %1928 = vmatpush1.bf16.msra.mxu0 0
        %1929 = vmatprep.subr.bf16.mxu0 0
        %1930 = vmatpush1.bf16.msra.mxu0 %v1760
        %1931 = vmatprep.subr.bf16.mxu0 0
        %1932 = vmatpush1.bf16.msra.mxu0 %v1759
        %1933 = vmatprep.subr.bf16.mxu0 0
        %1934 = vmatpush1.bf16.msra.mxu0 %v1758
        %1935 = vmatprep.subr.bf16.mxu0 0
        %1936 = vmatpush1.bf16.msra.mxu0 %v1757
        %1937 = vmatprep.subr.bf16.mxu0 0
        %1938 = vmatpush2.bf16.msra.mxu0 0
        %1939 = vmatprep.subr.bf16.mxu0 0
        %1940 = vmatpush2.bf16.msra.mxu0 0
        %1941 = vmatprep.subr.bf16.mxu0 0
        %1942 = vmatpush2.bf16.msra.mxu0 0
        %1943 = vmatprep.subr.bf16.mxu0 0
        %1944 = vmatpush2.bf16.msra.mxu0 0
        %1945 = vmatprep.subr.bf16.mxu0 0
        %1946 = vmatpush2.bf16.msra.mxu0 0
        %1947 = vmatprep.subr.bf16.mxu0 0
        %1948 = vmatpush2.bf16.msra.mxu0 0
        %1949 = vmatprep.subr.bf16.mxu0 0
        %1950 = vmatpush2.bf16.msra.mxu0 0
        %1951 = vmatprep.subr.bf16.mxu0 0
        %1952 = vmatpush2.bf16.msra.mxu0 0
        %1953 = vmatprep.mubr.bf16.mxu0 0
        %1954 = vmatmul.mubr.bf16.gmra.mxu0 %v1898
        %v1955 = vpop.f32.mrf.mxu0
        %v1956 = vadd.f32 %v1780, %v1955
        %v1957 = vpop.f32.mrf.mxu0
        %v1958 = vpop.f32.mrf.mxu0
        %v1959 = vadd.f32 %v1785, %v1958
        %v1960 = vpop.f32.mrf.mxu0
        %1961 = vmatprep.mubr.bf16.mxu0 0
        %1962 = vmatmul.mubr.bf16.gmra.mxu0 %v1901
        %v1963 = vpop.f32.mrf.mxu0
        %v1964 = vadd.f32 %v1790, %v1963
        %v1965 = vpop.f32.mrf.mxu0
        %v1966 = vpop.f32.mrf.mxu0
        %v1967 = vadd.f32 %v1795, %v1966
        %v1968 = vpop.f32.mrf.mxu0
        %1969 = vmatprep.mubr.bf16.mxu0 0
        %1970 = vmatmul.mubr.bf16.gmra.mxu0 %v1904
        %v1971 = vpop.f32.mrf.mxu0
        %v1972 = vadd.f32 %v1800, %v1971
        %v1973 = vpop.f32.mrf.mxu0
        %v1974 = vpop.f32.mrf.mxu0
        %v1975 = vadd.f32 %v1805, %v1974
        %v1976 = vpop.f32.mrf.mxu0
        %1977 = vmatprep.mubr.bf16.mxu0 0
        %1978 = vmatmul.mubr.bf16.gmra.mxu0 %v1907
        %v1979 = vpop.f32.mrf.mxu0
        %v1980 = vadd.f32 %v1810, %v1979
        %v1981 = vpop.f32.mrf.mxu0
        %v1982 = vpop.f32.mrf.mxu0
        %v1983 = vadd.f32 %v1815, %v1982
        %v1984 = vpop.f32.mrf.mxu0
        %1985 = vmatprep.mubr.bf16.mxu0 0
        %1986 = vmatmul.mubr.bf16.gmra.mxu0 %v1910
        %v1987 = vpop.f32.mrf.mxu0
        %v1988 = vadd.f32 %v1820, %v1987
        %v1989 = vpop.f32.mrf.mxu0
        %v1990 = vpop.f32.mrf.mxu0
        %v1991 = vadd.f32 %v1825, %v1990
        %v1992 = vpop.f32.mrf.mxu0
        %1993 = vmatprep.mubr.bf16.mxu0 0
        %1994 = vmatmul.mubr.bf16.gmra.mxu0 %v1913
        %v1995 = vpop.f32.mrf.mxu0
        %v1996 = vadd.f32 %v1830, %v1995
        %v1997 = vpop.f32.mrf.mxu0
        %v1998 = vpop.f32.mrf.mxu0
        %v1999 = vadd.f32 %v1835, %v1998
        %v2000 = vpop.f32.mrf.mxu0
        %2001 = vmatprep.mubr.bf16.mxu0 0
        %2002 = vmatmul.mubr.bf16.gmra.mxu0 %v1916
        %v2003 = vpop.f32.mrf.mxu0
        %v2004 = vadd.f32 %v1840, %v2003
        %v2005 = vpop.f32.mrf.mxu0
        %v2006 = vpop.f32.mrf.mxu0
        %v2007 = vadd.f32 %v1845, %v2006
        %v2008 = vpop.f32.mrf.mxu0
        %2009 = vmatprep.mubr.bf16.mxu0 0
        %2010 = vmatmul.mubr.bf16.gmra.mxu0 %v1919
        %v2011 = vpop.f32.mrf.mxu0
        %v2012 = vadd.f32 %v1850, %v2011
        %v2013 = vpop.f32.mrf.mxu0
        %v2014 = vpop.f32.mrf.mxu0
        %v2015 = vadd.f32 %v1855, %v2014
        %v2016 = vpop.f32.mrf.mxu0
        %2017 = vdwg.mxu0
        %v2018 = vld [vmem:[%s4 + $0x20] sm:$0xf]
        %v2019 = vld [vmem:[%s4 + $0x24] sm:$0xf]
        %v2020 = vld [vmem:[%s4 + $0x28] sm:$0xf]
        %v2021 = vld [vmem:[%s4 + $0x2c] sm:$0xf]
        %v2022 = vld [vmem:[%s4 + $0x30] sm:$0xf]
        %v2023 = vld [vmem:[%s4 + $0x34] sm:$0xf]
        %v2024 = vld [vmem:[%s4 + $0x38] sm:$0xf]
        %v2025 = vld [vmem:[%s4 + $0x3c] sm:$0xf]
        %v2026 = vld [vmem:[%s8 + $0x140] sm:$0xff]
        %v2027 = vld [vmem:[%s8 + $0x148] sm:$0xff]
        %v2028 = vld [vmem:[%s8 + $0x150] sm:$0xff]
        %v2029 = vld [vmem:[%s8 + $0x158] sm:$0xff]
        %v2030 = vld [vmem:[%s8 + $0x160] sm:$0xff]
        %v2031 = vld [vmem:[%s8 + $0x168] sm:$0xff]
        %v2032 = vld [vmem:[%s8 + $0x170] sm:$0xff]
        %v2033 = vld [vmem:[%s8 + $0x178] sm:$0xff]
        %2035 = vset.pattern.permute.xlu0 0
        %2036 = vperm.xlu0 %2035, %v2026
        %v2037 = vpop.permute.xlu0 %2036
        %2040 = vset.pattern.permute.xlu0 0
        %2041 = vperm.xlu0 %2040, %v2027
        %v2042 = vpop.permute.xlu0 %2041
        %2045 = vset.pattern.permute.xlu0 0
        %2046 = vperm.xlu0 %2045, %v2028
        %v2047 = vpop.permute.xlu0 %2046
        %2050 = vset.pattern.permute.xlu0 0
        %2051 = vperm.xlu0 %2050, %v2029
        %v2052 = vpop.permute.xlu0 %2051
        %2055 = vset.pattern.permute.xlu0 0
        %2056 = vperm.xlu0 %2055, %v2030
        %v2057 = vpop.permute.xlu0 %2056
        %2060 = vset.pattern.permute.xlu0 0
        %2061 = vperm.xlu0 %2060, %v2031
        %v2062 = vpop.permute.xlu0 %2061
        %2065 = vset.pattern.permute.xlu0 0
        %2066 = vperm.xlu0 %2065, %v2032
        %v2067 = vpop.permute.xlu0 %2066
        %2070 = vset.pattern.permute.xlu0 0
        %2071 = vperm.xlu0 %2070, %v2033
        %v2072 = vpop.permute.xlu0 %2071
        %v2082 = vunpack.c.l.b16 %v2018
        %v2083 = vunpack.c.l.b16 %v2019
        %v2084 = vunpack.c.l.b16 %v2020
        %v2085 = vunpack.c.l.b16 %v2021
        %v2086 = vunpack.c.l.b16 %v2022
        %v2087 = vunpack.c.l.b16 %v2023
        %v2088 = vunpack.c.l.b16 %v2024
        %v2089 = vunpack.c.l.b16 %v2025
        %v2090 = vpack.c.b16 %v2083, %v2082
        %v2091 = vpack.c.b16 %v2085, %v2084
        %v2092 = vpack.c.b16 %v2087, %v2086
        %v2093 = vpack.c.b16 %v2089, %v2088
        %v2095 = vsel %vm1373, %v2090, 0
        %v2098 = vsel %vm1373, %v2091, 0
        %v2101 = vsel %vm1373, %v2092, 0
        %v2104 = vsel %vm1373, %v2093, 0
        %2106 = vmatprep.subr.bf16.mxu0 0
        %2107 = vmatpush1.bf16.msra.mxu0 0
        %2108 = vmatprep.subr.bf16.mxu0 0
        %2109 = vmatpush1.bf16.msra.mxu0 0
        %2110 = vmatprep.subr.bf16.mxu0 0
        %2111 = vmatpush1.bf16.msra.mxu0 0
        %2112 = vmatprep.subr.bf16.mxu0 0
        %2113 = vmatpush1.bf16.msra.mxu0 0
        %2114 = vmatprep.subr.bf16.mxu0 0
        %2115 = vmatpush1.bf16.msra.mxu0 0
        %2116 = vmatprep.subr.bf16.mxu0 0
        %2117 = vmatpush1.bf16.msra.mxu0 0
        %2118 = vmatprep.subr.bf16.mxu0 0
        %2119 = vmatpush1.bf16.msra.mxu0 %v1391
        %2120 = vmatprep.subr.bf16.mxu0 0
        %2121 = vmatpush1.bf16.msra.mxu0 %v1370
        %2122 = vmatprep.subr.bf16.mxu0 0
        %2123 = vmatpush2.bf16.msra.mxu0 0
        %2124 = vmatprep.subr.bf16.mxu0 0
        %2125 = vmatpush2.bf16.msra.mxu0 0
        %2126 = vmatprep.subr.bf16.mxu0 0
        %2127 = vmatpush2.bf16.msra.mxu0 0
        %2128 = vmatprep.subr.bf16.mxu0 0
        %2129 = vmatpush2.bf16.msra.mxu0 0
        %2130 = vmatprep.subr.bf16.mxu0 0
        %2131 = vmatpush2.bf16.msra.mxu0 0
        %2132 = vmatprep.subr.bf16.mxu0 0
        %2133 = vmatpush2.bf16.msra.mxu0 0
        %2134 = vmatprep.subr.bf16.mxu0 0
        %2135 = vmatpush2.bf16.msra.mxu0 0
        %2136 = vmatprep.subr.bf16.mxu0 0
        %2137 = vmatpush2.bf16.msra.mxu0 0
        %2138 = vmatprep.mubr.bf16.mxu0 0
        %2139 = vmatmul.mubr.bf16.gmra.mxu0 %v2095
        %v2140 = vpop.f32.mrf.mxu0
        %v2141 = vadd.f32 %v2037, %v2140
        %v2142 = vpop.f32.mrf.mxu0
        %v2143 = vpop.f32.mrf.mxu0
        %v2144 = vadd.f32 %v2042, %v2143
        %v2145 = vpop.f32.mrf.mxu0
        %2146 = vmatprep.mubr.bf16.mxu0 0
        %2147 = vmatmul.mubr.bf16.gmra.mxu0 %v2098
        %v2148 = vpop.f32.mrf.mxu0
        %v2149 = vadd.f32 %v2047, %v2148
        %v2150 = vpop.f32.mrf.mxu0
        %v2151 = vpop.f32.mrf.mxu0
        %v2152 = vadd.f32 %v2052, %v2151
        %v2153 = vpop.f32.mrf.mxu0
        %2154 = vmatprep.mubr.bf16.mxu0 0
        %2155 = vmatmul.mubr.bf16.gmra.mxu0 %v2101
        %v2156 = vpop.f32.mrf.mxu0
        %v2157 = vadd.f32 %v2057, %v2156
        %v2158 = vpop.f32.mrf.mxu0
        %v2159 = vpop.f32.mrf.mxu0
        %v2160 = vadd.f32 %v2062, %v2159
        %v2161 = vpop.f32.mrf.mxu0
        %2162 = vmatprep.mubr.bf16.mxu0 0
        %2163 = vmatmul.mubr.bf16.gmra.mxu0 %v2104
        %v2164 = vpop.f32.mrf.mxu0
        %v2165 = vadd.f32 %v2067, %v2164
        %v2166 = vpop.f32.mrf.mxu0
        %v2167 = vpop.f32.mrf.mxu0
        %v2168 = vadd.f32 %v2072, %v2167
        %v2169 = vpop.f32.mrf.mxu0
        %2170 = vdwg.mxu0
        %v2171 = vpack.c.bf16 %v1261, %v1258
        %v2172 = vpack.c.bf16 %v1269, %v1266
        %v2173 = vpack.c.bf16 %v1277, %v1274
        %v2174 = vpack.c.bf16 %v1285, %v1282
        %v2176 = vsel %vm1462, %v2171, 0
        %v2179 = vsel %vm1462, %v2172, 0
        %v2182 = vsel %vm1462, %v2173, 0
        %v2185 = vsel %vm1462, %v2174, 0
        %2187 = vmatprep.subr.bf16.mxu0 0
        %2188 = vmatpush1.bf16.msra.mxu0 0
        %2189 = vmatprep.subr.bf16.mxu0 0
        %2190 = vmatpush1.bf16.msra.mxu0 0
        %2191 = vmatprep.subr.bf16.mxu0 0
        %2192 = vmatpush1.bf16.msra.mxu0 0
        %2193 = vmatprep.subr.bf16.mxu0 0
        %2194 = vmatpush1.bf16.msra.mxu0 0
        %2195 = vmatprep.subr.bf16.mxu0 0
        %2196 = vmatpush1.bf16.msra.mxu0 0
        %2197 = vmatprep.subr.bf16.mxu0 0
        %2198 = vmatpush1.bf16.msra.mxu0 0
        %2199 = vmatprep.subr.bf16.mxu0 0
        %2200 = vmatpush1.bf16.msra.mxu0 0
        %2201 = vmatprep.subr.bf16.mxu0 0
        %2202 = vmatpush1.bf16.msra.mxu0 %v1477
        %2203 = vmatprep.subr.bf16.mxu0 0
        %2204 = vmatpush2.bf16.msra.mxu0 0
        %2205 = vmatprep.subr.bf16.mxu0 0
        %2206 = vmatpush2.bf16.msra.mxu0 0
        %2207 = vmatprep.subr.bf16.mxu0 0
        %2208 = vmatpush2.bf16.msra.mxu0 0
        %2209 = vmatprep.subr.bf16.mxu0 0
        %2210 = vmatpush2.bf16.msra.mxu0 0
        %2211 = vmatprep.subr.bf16.mxu0 0
        %2212 = vmatpush2.bf16.msra.mxu0 0
        %2213 = vmatprep.subr.bf16.mxu0 0
        %2214 = vmatpush2.bf16.msra.mxu0 0
        %2215 = vmatprep.subr.bf16.mxu0 0
        %2216 = vmatpush2.bf16.msra.mxu0 0
        %2217 = vmatprep.subr.bf16.mxu0 0
        %2218 = vmatpush2.bf16.msra.mxu0 0
        %2219 = vmatprep.mubr.bf16.mxu0 0
        %2220 = vmatmul.mubr.bf16.gmra.mxu0 %v2176
        %v2221 = vpop.f32.mrf.mxu0
        %v2222 = vadd.f32 0.0, %v2221
        %v2223 = vpop.f32.mrf.mxu0
        %v2224 = vpop.f32.mrf.mxu0
        %v2225 = vadd.f32 0.0, %v2224
        %v2226 = vpop.f32.mrf.mxu0
        %2227 = vmatprep.mubr.bf16.mxu0 0
        %2228 = vmatmul.mubr.bf16.gmra.mxu0 %v2179
        %v2229 = vpop.f32.mrf.mxu0
        %v2230 = vadd.f32 0.0, %v2229
        %v2231 = vpop.f32.mrf.mxu0
        %v2232 = vpop.f32.mrf.mxu0
        %v2233 = vadd.f32 0.0, %v2232
        %v2234 = vpop.f32.mrf.mxu0
        %2235 = vmatprep.mubr.bf16.mxu0 0
        %2236 = vmatmul.mubr.bf16.gmra.mxu0 %v2182
        %v2237 = vpop.f32.mrf.mxu0
        %v2238 = vadd.f32 0.0, %v2237
        %v2239 = vpop.f32.mrf.mxu0
        %v2240 = vpop.f32.mrf.mxu0
        %v2241 = vadd.f32 0.0, %v2240
        %v2242 = vpop.f32.mrf.mxu0
        %2243 = vmatprep.mubr.bf16.mxu0 0
        %2244 = vmatmul.mubr.bf16.gmra.mxu0 %v2185
        %v2245 = vpop.f32.mrf.mxu0
        %v2246 = vadd.f32 0.0, %v2245
        %v2247 = vpop.f32.mrf.mxu0
        %v2248 = vpop.f32.mrf.mxu0
        %v2249 = vadd.f32 0.0, %v2248
        %v2250 = vpop.f32.mrf.mxu0
        %2251 = vdwg.mxu0
        %v2252 = vadd.f32 %v2141, %v2222
        %v2253 = vadd.f32 %v2144, %v2225
        %v2254 = vadd.f32 %v2149, %v2230
        %v2255 = vadd.f32 %v2152, %v2233
        %v2256 = vadd.f32 %v2157, %v2238
        %v2257 = vadd.f32 %v2160, %v2241
        %v2258 = vadd.f32 %v2165, %v2246
        %v2259 = vadd.f32 %v2168, %v2249
        %v2260 = vmul.f32 %v2252, 0.1
        %v2261 = vmul.f32 %v2253, 0.1
        %v2262 = vmul.f32 %v2254, 0.1
        %v2263 = vmul.f32 %v2255, 0.1
        %v2264 = vmul.f32 %v2256, 0.1
        %v2265 = vmul.f32 %v2257, 0.1
        %v2266 = vmul.f32 %v2258, 0.1
        %v2267 = vmul.f32 %v2259, 0.1
        %v2268 = vmax.f32 %v2252, %v2260
        %v2269 = vmax.f32 %v2253, %v2261
        %v2270 = vmax.f32 %v2254, %v2262
        %v2271 = vmax.f32 %v2255, %v2263
        %v2272 = vmax.f32 %v2256, %v2264
        %v2273 = vmax.f32 %v2257, %v2265
        %v2274 = vmax.f32 %v2258, %v2266
        %v2275 = vmax.f32 %v2259, %v2267
        %s2276 = scalar_lea.vmem %s6, 32
        %v2277 = vld [vmem:[%s2276] sm:$0xf]
        %v2278 = vld [vmem:[%s2276 + $0x4] sm:$0xf]
        %v2279 = vld [vmem:[%s2276 + $0x8] sm:$0xf]
        %v2280 = vld [vmem:[%s2276 + $0xc] sm:$0xf]
        %v2281 = vld [vmem:[%s2276 + $0x10] sm:$0xf]
        %v2282 = vld [vmem:[%s2276 + $0x14] sm:$0xf]
        %v2283 = vld [vmem:[%s2276 + $0x18] sm:$0xf]
        %v2284 = vld [vmem:[%s2276 + $0x1c] sm:$0xf]
        %v2285 = vpack.c.bf16 %v2269, %v2268
        %v2286 = vpack.c.bf16 %v2271, %v2270
        %v2287 = vpack.c.bf16 %v2273, %v2272
        %v2288 = vpack.c.bf16 %v2275, %v2274
        %v2289 = vld [vmem:[%s8 + $0x180] sm:$0xff]
        %v2290 = vld [vmem:[%s8 + $0x188] sm:$0xff]
        %v2291 = vld [vmem:[%s8 + $0x190] sm:$0xff]
        %v2292 = vld [vmem:[%s8 + $0x198] sm:$0xff]
        %v2293 = vld [vmem:[%s8 + $0x1a0] sm:$0xff]
        %v2294 = vld [vmem:[%s8 + $0x1a8] sm:$0xff]
        %v2295 = vld [vmem:[%s8 + $0x1b0] sm:$0xff]
        %v2296 = vld [vmem:[%s8 + $0x1b8] sm:$0xff]
        %2298 = vset.pattern.permute.xlu0 0
        %2299 = vperm.xlu0 %2298, %v2289
        %v2300 = vpop.permute.xlu0 %2299
        %2303 = vset.pattern.permute.xlu0 0
        %2304 = vperm.xlu0 %2303, %v2290
        %v2305 = vpop.permute.xlu0 %2304
        %2308 = vset.pattern.permute.xlu0 0
        %2309 = vperm.xlu0 %2308, %v2291
        %v2310 = vpop.permute.xlu0 %2309
        %2313 = vset.pattern.permute.xlu0 0
        %2314 = vperm.xlu0 %2313, %v2292
        %v2315 = vpop.permute.xlu0 %2314
        %2318 = vset.pattern.permute.xlu0 0
        %2319 = vperm.xlu0 %2318, %v2293
        %v2320 = vpop.permute.xlu0 %2319
        %2323 = vset.pattern.permute.xlu0 0
        %2324 = vperm.xlu0 %2323, %v2294
        %v2325 = vpop.permute.xlu0 %2324
        %2328 = vset.pattern.permute.xlu0 0
        %2329 = vperm.xlu0 %2328, %v2295
        %v2330 = vpop.permute.xlu0 %2329
        %2333 = vset.pattern.permute.xlu0 0
        %2334 = vperm.xlu0 %2333, %v2296
        %v2335 = vpop.permute.xlu0 %2334
        %v2345 = vunpack.c.l.b16 %v2277
        %v2346 = vunpack.c.l.b16 %v2278
        %v2347 = vunpack.c.l.b16 %v2279
        %v2348 = vunpack.c.l.b16 %v2280
        %v2349 = vunpack.c.l.b16 %v2281
        %v2350 = vunpack.c.l.b16 %v2282
        %v2351 = vunpack.c.l.b16 %v2283
        %v2352 = vunpack.c.l.b16 %v2284
        %v2353 = vpack.c.b16 %v2346, %v2345
        %v2354 = vpack.c.b16 %v2348, %v2347
        %v2355 = vpack.c.b16 %v2350, %v2349
        %v2356 = vpack.c.b16 %v2352, %v2351
        %v2358 = vsel %vm1013, %v2353, 0
        %v2361 = vsel %vm1013, %v2354, 0
        %v2364 = vsel %vm1013, %v2355, 0
        %v2367 = vsel %vm1013, %v2356, 0
        %2369 = vmatprep.subr.bf16.mxu0 0
        %2370 = vmatpush1.bf16.msra.mxu0 0
        %2371 = vmatprep.subr.bf16.mxu0 0
        %2372 = vmatpush1.bf16.msra.mxu0 0
        %2373 = vmatprep.subr.bf16.mxu0 0
        %2374 = vmatpush1.bf16.msra.mxu0 0
        %2375 = vmatprep.subr.bf16.mxu0 0
        %2376 = vmatpush1.bf16.msra.mxu0 0
        %2377 = vmatprep.subr.bf16.mxu0 0
        %2378 = vmatpush1.bf16.msra.mxu0 %v2288
        %2379 = vmatprep.subr.bf16.mxu0 0
        %2380 = vmatpush1.bf16.msra.mxu0 %v2287
        %2381 = vmatprep.subr.bf16.mxu0 0
        %2382 = vmatpush1.bf16.msra.mxu0 %v2286
        %2383 = vmatprep.subr.bf16.mxu0 0
        %2384 = vmatpush1.bf16.msra.mxu0 %v2285
        %2385 = vmatprep.subr.bf16.mxu0 0
        %2386 = vmatpush2.bf16.msra.mxu0 0
        %2387 = vmatprep.subr.bf16.mxu0 0
        %2388 = vmatpush2.bf16.msra.mxu0 0
        %2389 = vmatprep.subr.bf16.mxu0 0
        %2390 = vmatpush2.bf16.msra.mxu0 0
        %2391 = vmatprep.subr.bf16.mxu0 0
        %2392 = vmatpush2.bf16.msra.mxu0 0
        %2393 = vmatprep.subr.bf16.mxu0 0
        %2394 = vmatpush2.bf16.msra.mxu0 0
        %2395 = vmatprep.subr.bf16.mxu0 0
        %2396 = vmatpush2.bf16.msra.mxu0 0
        %2397 = vmatprep.subr.bf16.mxu0 0
        %2398 = vmatpush2.bf16.msra.mxu0 0
        %2399 = vmatprep.subr.bf16.mxu0 0
        %2400 = vmatpush2.bf16.msra.mxu0 0
        %2401 = vmatprep.mubr.bf16.mxu0 0
        %2402 = vmatmul.mubr.bf16.gmra.mxu0 %v2358
        %v2403 = vpop.f32.mrf.mxu0
        %v2404 = vadd.f32 %v2300, %v2403
        %v2405 = vpop.f32.mrf.mxu0
        %v2406 = vpop.f32.mrf.mxu0
        %v2407 = vadd.f32 %v2305, %v2406
        %v2408 = vpop.f32.mrf.mxu0
        %2409 = vmatprep.mubr.bf16.mxu0 0
        %2410 = vmatmul.mubr.bf16.gmra.mxu0 %v2361
        %v2411 = vpop.f32.mrf.mxu0
        %v2412 = vadd.f32 %v2310, %v2411
        %v2413 = vpop.f32.mrf.mxu0
        %v2414 = vpop.f32.mrf.mxu0
        %v2415 = vadd.f32 %v2315, %v2414
        %v2416 = vpop.f32.mrf.mxu0
        %2417 = vmatprep.mubr.bf16.mxu0 0
        %2418 = vmatmul.mubr.bf16.gmra.mxu0 %v2364
        %v2419 = vpop.f32.mrf.mxu0
        %v2420 = vadd.f32 %v2320, %v2419
        %v2421 = vpop.f32.mrf.mxu0
        %v2422 = vpop.f32.mrf.mxu0
        %v2423 = vadd.f32 %v2325, %v2422
        %v2424 = vpop.f32.mrf.mxu0
        %2425 = vmatprep.mubr.bf16.mxu0 0
        %2426 = vmatmul.mubr.bf16.gmra.mxu0 %v2367
        %v2427 = vpop.f32.mrf.mxu0
        %v2428 = vadd.f32 %v2330, %v2427
        %v2429 = vpop.f32.mrf.mxu0
        %v2430 = vpop.f32.mrf.mxu0
        %v2431 = vadd.f32 %v2335, %v2430
        %v2432 = vpop.f32.mrf.mxu0
        %2433 = vdwg.mxu0
        %v2434 = vmul.f32 %v2404, 0.1
        %v2435 = vmul.f32 %v2407, 0.1
        %v2436 = vmul.f32 %v2412, 0.1
        %v2437 = vmul.f32 %v2415, 0.1
        %v2438 = vmul.f32 %v2420, 0.1
        %v2439 = vmul.f32 %v2423, 0.1
        %v2440 = vmul.f32 %v2428, 0.1
        %v2441 = vmul.f32 %v2431, 0.1
        %v2442 = vmax.f32 %v2404, %v2434
        %v2443 = vmax.f32 %v2407, %v2435
        %v2444 = vmax.f32 %v2412, %v2436
        %v2445 = vmax.f32 %v2415, %v2437
        %v2446 = vmax.f32 %v2420, %v2438
        %v2447 = vmax.f32 %v2423, %v2439
        %v2448 = vmax.f32 %v2428, %v2440
        %v2449 = vmax.f32 %v2431, %v2441
        %2450 = vrot.lane.b32.xlu0 %v2442, 120
        %v2451 = vpop.permute.xlu0 %2450
        %2452 = vrot.lane.b32.xlu0 %v2443, 120
        %v2453 = vpop.permute.xlu0 %2452
        %2454 = vrot.lane.b32.xlu0 %v2444, 120
        %v2455 = vpop.permute.xlu0 %2454
        %2456 = vrot.lane.b32.xlu0 %v2445, 120
        %v2457 = vpop.permute.xlu0 %2456
        %2458 = vrot.lane.b32.xlu0 %v2446, 120
        %v2459 = vpop.permute.xlu0 %2458
        %2460 = vrot.lane.b32.xlu0 %v2447, 120
        %v2461 = vpop.permute.xlu0 %2460
        %2462 = vrot.lane.b32.xlu0 %v2448, 120
        %v2463 = vpop.permute.xlu0 %2462
        %2464 = vrot.lane.b32.xlu0 %v2449, 120
        %v2465 = vpop.permute.xlu0 %2464
        %v2466 = vmax.f32 %v2442, %v2451
        %v2467 = vmax.f32 %v2443, %v2453
        %v2468 = vmax.f32 %v2444, %v2455
        %v2469 = vmax.f32 %v2445, %v2457
        %v2470 = vmax.f32 %v2446, %v2459
        %v2471 = vmax.f32 %v2447, %v2461
        %v2472 = vmax.f32 %v2448, %v2463
        %v2473 = vmax.f32 %v2449, %v2465
        %2474 = vrot.lane.b32.xlu0 %v2466, 124
        %v2475 = vpop.permute.xlu0 %2474
        %2476 = vrot.lane.b32.xlu0 %v2467, 124
        %v2477 = vpop.permute.xlu0 %2476
        %2478 = vrot.lane.b32.xlu0 %v2468, 124
        %v2479 = vpop.permute.xlu0 %2478
        %2480 = vrot.lane.b32.xlu0 %v2469, 124
        %v2481 = vpop.permute.xlu0 %2480
        %2482 = vrot.lane.b32.xlu0 %v2470, 124
        %v2483 = vpop.permute.xlu0 %2482
        %2484 = vrot.lane.b32.xlu0 %v2471, 124
        %v2485 = vpop.permute.xlu0 %2484
        %2486 = vrot.lane.b32.xlu0 %v2472, 124
        %v2487 = vpop.permute.xlu0 %2486
        %2488 = vrot.lane.b32.xlu0 %v2473, 124
        %v2489 = vpop.permute.xlu0 %2488
        %v2490 = vmax.f32 %v2466, %v2475
        %v2491 = vmax.f32 %v2467, %v2477
        %v2492 = vmax.f32 %v2468, %v2479
        %v2493 = vmax.f32 %v2469, %v2481
        %v2494 = vmax.f32 %v2470, %v2483
        %v2495 = vmax.f32 %v2471, %v2485
        %v2496 = vmax.f32 %v2472, %v2487
        %v2497 = vmax.f32 %v2473, %v2489
        %2498 = vrot.lane.b32.xlu0 %v2490, 126
        %v2499 = vpop.permute.xlu0 %2498
        %2500 = vrot.lane.b32.xlu0 %v2491, 126
        %v2501 = vpop.permute.xlu0 %2500
        %2502 = vrot.lane.b32.xlu0 %v2492, 126
        %v2503 = vpop.permute.xlu0 %2502
        %2504 = vrot.lane.b32.xlu0 %v2493, 126
        %v2505 = vpop.permute.xlu0 %2504
        %2506 = vrot.lane.b32.xlu0 %v2494, 126
        %v2507 = vpop.permute.xlu0 %2506
        %2508 = vrot.lane.b32.xlu0 %v2495, 126
        %v2509 = vpop.permute.xlu0 %2508
        %2510 = vrot.lane.b32.xlu0 %v2496, 126
        %v2511 = vpop.permute.xlu0 %2510
        %2512 = vrot.lane.b32.xlu0 %v2497, 126
        %v2513 = vpop.permute.xlu0 %2512
        %v2514 = vmax.f32 %v2490, %v2499
        %v2515 = vmax.f32 %v2491, %v2501
        %v2516 = vmax.f32 %v2492, %v2503
        %v2517 = vmax.f32 %v2493, %v2505
        %v2518 = vmax.f32 %v2494, %v2507
        %v2519 = vmax.f32 %v2495, %v2509
        %v2520 = vmax.f32 %v2496, %v2511
        %v2521 = vmax.f32 %v2497, %v2513
        %2522 = vrot.lane.b32.xlu0 %v2514, 127
        %v2523 = vpop.permute.xlu0 %2522
        %2524 = vrot.lane.b32.xlu0 %v2515, 127
        %v2525 = vpop.permute.xlu0 %2524
        %2526 = vrot.lane.b32.xlu0 %v2516, 127
        %v2527 = vpop.permute.xlu0 %2526
        %2528 = vrot.lane.b32.xlu0 %v2517, 127
        %v2529 = vpop.permute.xlu0 %2528
        %2530 = vrot.lane.b32.xlu0 %v2518, 127
        %v2531 = vpop.permute.xlu0 %2530
        %2532 = vrot.lane.b32.xlu0 %v2519, 127
        %v2533 = vpop.permute.xlu0 %2532
        %2534 = vrot.lane.b32.xlu0 %v2520, 127
        %v2535 = vpop.permute.xlu0 %2534
        %2536 = vrot.lane.b32.xlu0 %v2521, 127
        %v2537 = vpop.permute.xlu0 %2536
        %v2538 = vmax.f32 %v2514, %v2523
        %v2539 = vmax.f32 %v2515, %v2525
        %v2540 = vmax.f32 %v2516, %v2527
        %v2541 = vmax.f32 %v2517, %v2529
        %v2542 = vmax.f32 %v2518, %v2531
        %v2543 = vmax.f32 %v2519, %v2533
        %v2544 = vmax.f32 %v2520, %v2535
        %v2545 = vmax.f32 %v2521, %v2537
        %v2546 = vlaneseq
        %v2547 = vand.u32 %v2546, 127
        %vm2548 = vcmp.lt.s32.totalorder %v2547, 0
        %v2549 = vsub.s32 0, %v2547
        %v2550 = vsel %vm2548, %v2549, %v2547
        %v2551 = vshrl.u32 %v2550, 4
        %v2552 = vand.u32 %v2550, 15
        %v2553 = vsub.s32 0, %v2552
        %v2554 = vsel %vm2548, %v2553, %v2552
        %vm2555 = vcmp.ne.s32.totalorder %v2554, 0
        %vm2556 = vcmp.lt.s32.totalorder %v2554, 0
        %vm2557 = vmand %vm2556, %vm2555
        %v2558 = vadd.s32 %v2554, 16
        %v2559 = vsel %vm2557, %v2558, %v2554
        %vm2560 = vcmp.eq.s32.totalorder %v2559, 0
        %v2561 = vsel %vm2560, %v2538, 0.0
        %v2562 = vsel %vm2560, %v2539, 0.0
        %v2563 = vsel %vm2560, %v2540, 0.0
        %v2564 = vsel %vm2560, %v2541, 0.0
        %v2565 = vsel %vm2560, %v2542, 0.0
        %v2566 = vsel %vm2560, %v2543, 0.0
        %v2567 = vsel %vm2560, %v2544, 0.0
        %v2568 = vsel %vm2560, %v2545, 0.0
        %v2569 = vpack.c.bf16 %v2562, %v2561
        %v2570 = vpack.c.bf16 %v2564, %v2563
        %v2571 = vpack.c.bf16 %v2566, %v2565
        %v2572 = vpack.c.bf16 %v2568, %v2567
        %2573 = vmatprep.subr.bf16.mxu0 0
        %2574 = vmatpush1.bf16.xpose.msra.mxu0 0
        %2575 = vmatprep.subr.bf16.mxu0 0
        %2576 = vmatpush1.bf16.xpose.msra.mxu0 0
        %2577 = vmatprep.subr.bf16.mxu0 0
        %2578 = vmatpush1.bf16.xpose.msra.mxu0 0
        %2579 = vmatprep.subr.bf16.mxu0 0
        %2580 = vmatpush1.bf16.xpose.msra.mxu0 0
        %2581 = vmatprep.subr.bf16.mxu0 0
        %2582 = vmatpush1.bf16.xpose.msra.mxu0 0
        %2583 = vmatprep.subr.bf16.mxu0 0
        %2584 = vmatpush1.bf16.xpose.msra.mxu0 0
        %2585 = vmatprep.subr.bf16.mxu0 0
        %2586 = vmatpush1.bf16.xpose.msra.mxu0 0
        %2587 = vmatprep.subr.bf16.mxu0 0
        %2588 = vmatpush1.bf16.xpose.msra.mxu0 %v464
        %2589 = vmatprep.subr.bf16.mxu0 0
        %2590 = vmatpush2.bf16.xpose.msra.mxu0 0
        %2591 = vmatprep.subr.bf16.mxu0 0
        %2592 = vmatpush2.bf16.xpose.msra.mxu0 0
        %2593 = vmatprep.subr.bf16.mxu0 0
        %2594 = vmatpush2.bf16.xpose.msra.mxu0 0
        %2595 = vmatprep.subr.bf16.mxu0 0
        %2596 = vmatpush2.bf16.xpose.msra.mxu0 0
        %2597 = vmatprep.subr.bf16.mxu0 0
        %2598 = vmatpush2.bf16.xpose.msra.mxu0 0
        %2599 = vmatprep.subr.bf16.mxu0 0
        %2600 = vmatpush2.bf16.xpose.msra.mxu0 0
        %2601 = vmatprep.subr.bf16.mxu0 0
        %2602 = vmatpush2.bf16.xpose.msra.mxu0 0
        %2603 = vmatprep.subr.bf16.mxu0 0
        %2604 = vmatpush2.bf16.xpose.msra.mxu0 0
        %2605 = vmatprep.mubr.bf16.mxu0 0
        %2606 = vmatmul.mubr.bf16.gmra.mxu0 %v2569
        %v2607 = vpop.f32.mrf.mxu0
        %v2608 = vadd.f32 0.0, %v2607
        %v2609 = vpop.f32.mrf.mxu0
        %v2610 = vpop.f32.mrf.mxu0
        %v2611 = vadd.f32 0.0, %v2610
        %v2612 = vpop.f32.mrf.mxu0
        %2613 = vmatprep.mubr.bf16.mxu0 0
        %2614 = vmatmul.mubr.bf16.gmra.mxu0 %v2570
        %v2615 = vpop.f32.mrf.mxu0
        %v2616 = vadd.f32 0.0, %v2615
        %v2617 = vpop.f32.mrf.mxu0
        %v2618 = vpop.f32.mrf.mxu0
        %v2619 = vadd.f32 0.0, %v2618
        %v2620 = vpop.f32.mrf.mxu0
        %2621 = vmatprep.mubr.bf16.mxu0 0
        %2622 = vmatmul.mubr.bf16.gmra.mxu0 %v2571
        %v2623 = vpop.f32.mrf.mxu0
        %v2624 = vadd.f32 0.0, %v2623
        %v2625 = vpop.f32.mrf.mxu0
        %v2626 = vpop.f32.mrf.mxu0
        %v2627 = vadd.f32 0.0, %v2626
        %v2628 = vpop.f32.mrf.mxu0
        %2629 = vmatprep.mubr.bf16.mxu0 0
        %2630 = vmatmul.mubr.bf16.gmra.mxu0 %v2572
        %v2631 = vpop.f32.mrf.mxu0
        %v2632 = vadd.f32 0.0, %v2631
        %v2633 = vpop.f32.mrf.mxu0
        %v2634 = vpop.f32.mrf.mxu0
        %v2635 = vadd.f32 0.0, %v2634
        %v2636 = vpop.f32.mrf.mxu0
        %2637 = vdwg.mxu0
        %s2638 = scalar_lea.vmem %s7, 64
        %v2639 = vld [vmem:[%s2638] sm:$0xf]
        %v2640 = vld [vmem:[%s2638 + $0x4] sm:$0xf]
        %v2641 = vld [vmem:[%s2638 + $0x8] sm:$0xf]
        %v2642 = vld [vmem:[%s2638 + $0xc] sm:$0xf]
        %v2643 = vld [vmem:[%s2638 + $0x10] sm:$0xf]
        %v2644 = vld [vmem:[%s2638 + $0x14] sm:$0xf]
        %v2645 = vld [vmem:[%s2638 + $0x18] sm:$0xf]
        %v2646 = vld [vmem:[%s2638 + $0x1c] sm:$0xf]
        %v2647 = vld [vmem:[%s2638 + $0x20] sm:$0xf]
        %v2648 = vld [vmem:[%s2638 + $0x24] sm:$0xf]
        %v2649 = vld [vmem:[%s2638 + $0x28] sm:$0xf]
        %v2650 = vld [vmem:[%s2638 + $0x2c] sm:$0xf]
        %v2651 = vld [vmem:[%s2638 + $0x30] sm:$0xf]
        %v2652 = vld [vmem:[%s2638 + $0x34] sm:$0xf]
        %v2653 = vld [vmem:[%s2638 + $0x38] sm:$0xf]
        %v2654 = vld [vmem:[%s2638 + $0x3c] sm:$0xf]
        %v2655 = vpack.c.bf16 %v2611, %v2608
        %v2656 = vpack.c.bf16 %v2619, %v2616
        %v2657 = vpack.c.bf16 %v2627, %v2624
        %v2658 = vpack.c.bf16 %v2635, %v2632
        %v2659 = vld [vmem:[%s8 + $0x1c0] sm:$0xff]
        %v2660 = vld [vmem:[%s8 + $0x1c8] sm:$0xff]
        %v2661 = vld [vmem:[%s8 + $0x1d0] sm:$0xff]
        %v2662 = vld [vmem:[%s8 + $0x1d8] sm:$0xff]
        %v2663 = vld [vmem:[%s8 + $0x1e0] sm:$0xff]
        %v2664 = vld [vmem:[%s8 + $0x1e8] sm:$0xff]
        %v2665 = vld [vmem:[%s8 + $0x1f0] sm:$0xff]
        %v2666 = vld [vmem:[%s8 + $0x1f8] sm:$0xff]
        %v2667 = vld [vmem:[%s8 + $0x200] sm:$0xff]
        %v2668 = vld [vmem:[%s8 + $0x208] sm:$0xff]
        %v2669 = vld [vmem:[%s8 + $0x210] sm:$0xff]
        %v2670 = vld [vmem:[%s8 + $0x218] sm:$0xff]
        %v2671 = vld [vmem:[%s8 + $0x220] sm:$0xff]
        %v2672 = vld [vmem:[%s8 + $0x228] sm:$0xff]
        %v2673 = vld [vmem:[%s8 + $0x230] sm:$0xff]
        %v2674 = vld [vmem:[%s8 + $0x238] sm:$0xff]
        %2676 = vset.pattern.permute.xlu0 0
        %2677 = vperm.xlu0 %2676, %v2659
        %v2678 = vpop.permute.xlu0 %2677
        %2681 = vset.pattern.permute.xlu0 0
        %2682 = vperm.xlu0 %2681, %v2660
        %v2683 = vpop.permute.xlu0 %2682
        %2686 = vset.pattern.permute.xlu0 0
        %2687 = vperm.xlu0 %2686, %v2661
        %v2688 = vpop.permute.xlu0 %2687
        %2691 = vset.pattern.permute.xlu0 0
        %2692 = vperm.xlu0 %2691, %v2662
        %v2693 = vpop.permute.xlu0 %2692
        %2696 = vset.pattern.permute.xlu0 0
        %2697 = vperm.xlu0 %2696, %v2663
        %v2698 = vpop.permute.xlu0 %2697
        %2701 = vset.pattern.permute.xlu0 0
        %2702 = vperm.xlu0 %2701, %v2664
        %v2703 = vpop.permute.xlu0 %2702
        %2706 = vset.pattern.permute.xlu0 0
        %2707 = vperm.xlu0 %2706, %v2665
        %v2708 = vpop.permute.xlu0 %2707
        %2711 = vset.pattern.permute.xlu0 0
        %2712 = vperm.xlu0 %2711, %v2666
        %v2713 = vpop.permute.xlu0 %2712
        %2716 = vset.pattern.permute.xlu0 0
        %2717 = vperm.xlu0 %2716, %v2667
        %v2718 = vpop.permute.xlu0 %2717
        %2721 = vset.pattern.permute.xlu0 0
        %2722 = vperm.xlu0 %2721, %v2668
        %v2723 = vpop.permute.xlu0 %2722
        %2726 = vset.pattern.permute.xlu0 0
        %2727 = vperm.xlu0 %2726, %v2669
        %v2728 = vpop.permute.xlu0 %2727
        %2731 = vset.pattern.permute.xlu0 0
        %2732 = vperm.xlu0 %2731, %v2670
        %v2733 = vpop.permute.xlu0 %2732
        %2736 = vset.pattern.permute.xlu0 0
        %2737 = vperm.xlu0 %2736, %v2671
        %v2738 = vpop.permute.xlu0 %2737
        %2741 = vset.pattern.permute.xlu0 0
        %2742 = vperm.xlu0 %2741, %v2672
        %v2743 = vpop.permute.xlu0 %2742
        %2746 = vset.pattern.permute.xlu0 0
        %2747 = vperm.xlu0 %2746, %v2673
        %v2748 = vpop.permute.xlu0 %2747
        %2751 = vset.pattern.permute.xlu0 0
        %2752 = vperm.xlu0 %2751, %v2674
        %v2753 = vpop.permute.xlu0 %2752
        %v2771 = vunpack.c.l.b16 %v2639
        %v2772 = vunpack.c.l.b16 %v2640
        %v2773 = vunpack.c.l.b16 %v2641
        %v2774 = vunpack.c.l.b16 %v2642
        %v2775 = vunpack.c.l.b16 %v2643
        %v2776 = vunpack.c.l.b16 %v2644
        %v2777 = vunpack.c.l.b16 %v2645
        %v2778 = vunpack.c.l.b16 %v2646
        %v2779 = vunpack.c.l.b16 %v2647
        %v2780 = vunpack.c.l.b16 %v2648
        %v2781 = vunpack.c.l.b16 %v2649
        %v2782 = vunpack.c.l.b16 %v2650
        %v2783 = vunpack.c.l.b16 %v2651
        %v2784 = vunpack.c.l.b16 %v2652
        %v2785 = vunpack.c.l.b16 %v2653
        %v2786 = vunpack.c.l.b16 %v2654
        %v2787 = vpack.c.b16 %v2772, %v2771
        %v2788 = vpack.c.b16 %v2774, %v2773
        %v2789 = vpack.c.b16 %v2776, %v2775
        %v2790 = vpack.c.b16 %v2778, %v2777
        %v2791 = vpack.c.b16 %v2780, %v2779
        %v2792 = vpack.c.b16 %v2782, %v2781
        %v2793 = vpack.c.b16 %v2784, %v2783
        %v2794 = vpack.c.b16 %v2786, %v2785
        %v2796 = vsel %vm1013, %v2787, 0
        %v2799 = vsel %vm1013, %v2788, 0
        %v2802 = vsel %vm1013, %v2789, 0
        %v2805 = vsel %vm1013, %v2790, 0
        %v2808 = vsel %vm1013, %v2791, 0
        %v2811 = vsel %vm1013, %v2792, 0
        %v2814 = vsel %vm1013, %v2793, 0
        %v2817 = vsel %vm1013, %v2794, 0
        %2819 = vmatprep.subr.bf16.mxu0 0
        %2820 = vmatpush1.bf16.msra.mxu0 0
        %2821 = vmatprep.subr.bf16.mxu0 0
        %2822 = vmatpush1.bf16.msra.mxu0 0
        %2823 = vmatprep.subr.bf16.mxu0 0
        %2824 = vmatpush1.bf16.msra.mxu0 0
        %2825 = vmatprep.subr.bf16.mxu0 0
        %2826 = vmatpush1.bf16.msra.mxu0 0
        %2827 = vmatprep.subr.bf16.mxu0 0
        %2828 = vmatpush1.bf16.msra.mxu0 %v2658
        %2829 = vmatprep.subr.bf16.mxu0 0
        %2830 = vmatpush1.bf16.msra.mxu0 %v2657
        %2831 = vmatprep.subr.bf16.mxu0 0
        %2832 = vmatpush1.bf16.msra.mxu0 %v2656
        %2833 = vmatprep.subr.bf16.mxu0 0
        %2834 = vmatpush1.bf16.msra.mxu0 %v2655
        %2835 = vmatprep.subr.bf16.mxu0 0
        %2836 = vmatpush2.bf16.msra.mxu0 0
        %2837 = vmatprep.subr.bf16.mxu0 0
        %2838 = vmatpush2.bf16.msra.mxu0 0
        %2839 = vmatprep.subr.bf16.mxu0 0
        %2840 = vmatpush2.bf16.msra.mxu0 0
        %2841 = vmatprep.subr.bf16.mxu0 0
        %2842 = vmatpush2.bf16.msra.mxu0 0
        %2843 = vmatprep.subr.bf16.mxu0 0
        %2844 = vmatpush2.bf16.msra.mxu0 0
        %2845 = vmatprep.subr.bf16.mxu0 0
        %2846 = vmatpush2.bf16.msra.mxu0 0
        %2847 = vmatprep.subr.bf16.mxu0 0
        %2848 = vmatpush2.bf16.msra.mxu0 0
        %2849 = vmatprep.subr.bf16.mxu0 0
        %2850 = vmatpush2.bf16.msra.mxu0 0
        %2851 = vmatprep.mubr.bf16.mxu0 0
        %2852 = vmatmul.mubr.bf16.gmra.mxu0 %v2796
        %v2853 = vpop.f32.mrf.mxu0
        %v2854 = vadd.f32 %v2678, %v2853
        %v2855 = vpop.f32.mrf.mxu0
        %v2856 = vpop.f32.mrf.mxu0
        %v2857 = vadd.f32 %v2683, %v2856
        %v2858 = vpop.f32.mrf.mxu0
        %2859 = vmatprep.mubr.bf16.mxu0 0
        %2860 = vmatmul.mubr.bf16.gmra.mxu0 %v2799
        %v2861 = vpop.f32.mrf.mxu0
        %v2862 = vadd.f32 %v2688, %v2861
        %v2863 = vpop.f32.mrf.mxu0
        %v2864 = vpop.f32.mrf.mxu0
        %v2865 = vadd.f32 %v2693, %v2864
        %v2866 = vpop.f32.mrf.mxu0
        %2867 = vmatprep.mubr.bf16.mxu0 0
        %2868 = vmatmul.mubr.bf16.gmra.mxu0 %v2802
        %v2869 = vpop.f32.mrf.mxu0
        %v2870 = vadd.f32 %v2698, %v2869
        %v2871 = vpop.f32.mrf.mxu0
        %v2872 = vpop.f32.mrf.mxu0
        %v2873 = vadd.f32 %v2703, %v2872
        %v2874 = vpop.f32.mrf.mxu0
        %2875 = vmatprep.mubr.bf16.mxu0 0
        %2876 = vmatmul.mubr.bf16.gmra.mxu0 %v2805
        %v2877 = vpop.f32.mrf.mxu0
        %v2878 = vadd.f32 %v2708, %v2877
        %v2879 = vpop.f32.mrf.mxu0
        %v2880 = vpop.f32.mrf.mxu0
        %v2881 = vadd.f32 %v2713, %v2880
        %v2882 = vpop.f32.mrf.mxu0
        %2883 = vmatprep.mubr.bf16.mxu0 0
        %2884 = vmatmul.mubr.bf16.gmra.mxu0 %v2808
        %v2885 = vpop.f32.mrf.mxu0
        %v2886 = vadd.f32 %v2718, %v2885
        %v2887 = vpop.f32.mrf.mxu0
        %v2888 = vpop.f32.mrf.mxu0
        %v2889 = vadd.f32 %v2723, %v2888
        %v2890 = vpop.f32.mrf.mxu0
        %2891 = vmatprep.mubr.bf16.mxu0 0
        %2892 = vmatmul.mubr.bf16.gmra.mxu0 %v2811
        %v2893 = vpop.f32.mrf.mxu0
        %v2894 = vadd.f32 %v2728, %v2893
        %v2895 = vpop.f32.mrf.mxu0
        %v2896 = vpop.f32.mrf.mxu0
        %v2897 = vadd.f32 %v2733, %v2896
        %v2898 = vpop.f32.mrf.mxu0
        %2899 = vmatprep.mubr.bf16.mxu0 0
        %2900 = vmatmul.mubr.bf16.gmra.mxu0 %v2814
        %v2901 = vpop.f32.mrf.mxu0
        %v2902 = vadd.f32 %v2738, %v2901
        %v2903 = vpop.f32.mrf.mxu0
        %v2904 = vpop.f32.mrf.mxu0
        %v2905 = vadd.f32 %v2743, %v2904
        %v2906 = vpop.f32.mrf.mxu0
        %2907 = vmatprep.mubr.bf16.mxu0 0
        %2908 = vmatmul.mubr.bf16.gmra.mxu0 %v2817
        %v2909 = vpop.f32.mrf.mxu0
        %v2910 = vadd.f32 %v2748, %v2909
        %v2911 = vpop.f32.mrf.mxu0
        %v2912 = vpop.f32.mrf.mxu0
        %v2913 = vadd.f32 %v2753, %v2912
        %v2914 = vpop.f32.mrf.mxu0
        %2915 = vdwg.mxu0
        %v2916 = vpack.c.bf16 %v2857, %v2854
        %v2917 = vpack.c.bf16 %v2865, %v2862
        %v2918 = vpack.c.bf16 %v2873, %v2870
        %v2919 = vpack.c.bf16 %v2881, %v2878
        %v2920 = vpack.c.bf16 %v2889, %v2886
        %v2921 = vpack.c.bf16 %v2897, %v2894
        %v2922 = vpack.c.bf16 %v2905, %v2902
        %v2923 = vpack.c.bf16 %v2913, %v2910
        %v2925 = vsel %vm1462, %v2916, 0
        %v2928 = vsel %vm1462, %v2917, 0
        %v2931 = vsel %vm1462, %v2918, 0
        %v2934 = vsel %vm1462, %v2919, 0
        %v2937 = vsel %vm1462, %v2920, 0
        %v2940 = vsel %vm1462, %v2921, 0
        %v2943 = vsel %vm1462, %v2922, 0
        %v2946 = vsel %vm1462, %v2923, 0
        %2948 = vmatprep.subr.bf16.mxu0 0
        %2949 = vmatpush1.bf16.msra.mxu0 0
        %2950 = vmatprep.subr.bf16.mxu0 0
        %2951 = vmatpush1.bf16.msra.mxu0 0
        %2952 = vmatprep.subr.bf16.mxu0 0
        %2953 = vmatpush1.bf16.msra.mxu0 0
        %2954 = vmatprep.subr.bf16.mxu0 0
        %2955 = vmatpush1.bf16.msra.mxu0 0
        %2956 = vmatprep.subr.bf16.mxu0 0
        %2957 = vmatpush1.bf16.msra.mxu0 0
        %2958 = vmatprep.subr.bf16.mxu0 0
        %2959 = vmatpush1.bf16.msra.mxu0 0
        %2960 = vmatprep.subr.bf16.mxu0 0
        %2961 = vmatpush1.bf16.msra.mxu0 0
        %2962 = vmatprep.subr.bf16.mxu0 0
        %2963 = vmatpush1.bf16.msra.mxu0 %v1477
        %2964 = vmatprep.subr.bf16.mxu0 0
        %2965 = vmatpush2.bf16.msra.mxu0 0
        %2966 = vmatprep.subr.bf16.mxu0 0
        %2967 = vmatpush2.bf16.msra.mxu0 0
        %2968 = vmatprep.subr.bf16.mxu0 0
        %2969 = vmatpush2.bf16.msra.mxu0 0
        %2970 = vmatprep.subr.bf16.mxu0 0
        %2971 = vmatpush2.bf16.msra.mxu0 0
        %2972 = vmatprep.subr.bf16.mxu0 0
        %2973 = vmatpush2.bf16.msra.mxu0 0
        %2974 = vmatprep.subr.bf16.mxu0 0
        %2975 = vmatpush2.bf16.msra.mxu0 0
        %2976 = vmatprep.subr.bf16.mxu0 0
        %2977 = vmatpush2.bf16.msra.mxu0 0
        %2978 = vmatprep.subr.bf16.mxu0 0
        %2979 = vmatpush2.bf16.msra.mxu0 0
        %2980 = vmatprep.mubr.bf16.mxu0 0
        %2981 = vmatmul.mubr.bf16.gmra.mxu0 %v2925
        %v2982 = vpop.f32.mrf.mxu0
        %v2983 = vadd.f32 0.0, %v2982
        %v2984 = vpop.f32.mrf.mxu0
        %v2985 = vpop.f32.mrf.mxu0
        %v2986 = vadd.f32 0.0, %v2985
        %v2987 = vpop.f32.mrf.mxu0
        %2988 = vmatprep.mubr.bf16.mxu0 0
        %2989 = vmatmul.mubr.bf16.gmra.mxu0 %v2928
        %v2990 = vpop.f32.mrf.mxu0
        %v2991 = vadd.f32 0.0, %v2990
        %v2992 = vpop.f32.mrf.mxu0
        %v2993 = vpop.f32.mrf.mxu0
        %v2994 = vadd.f32 0.0, %v2993
        %v2995 = vpop.f32.mrf.mxu0
        %2996 = vmatprep.mubr.bf16.mxu0 0
        %2997 = vmatmul.mubr.bf16.gmra.mxu0 %v2931
        %v2998 = vpop.f32.mrf.mxu0
        %v2999 = vadd.f32 0.0, %v2998
        %v3000 = vpop.f32.mrf.mxu0
        %v3001 = vpop.f32.mrf.mxu0
        %v3002 = vadd.f32 0.0, %v3001
        %v3003 = vpop.f32.mrf.mxu0
        %3004 = vmatprep.mubr.bf16.mxu0 0
        %3005 = vmatmul.mubr.bf16.gmra.mxu0 %v2934
        %v3006 = vpop.f32.mrf.mxu0
        %v3007 = vadd.f32 0.0, %v3006
        %v3008 = vpop.f32.mrf.mxu0
        %v3009 = vpop.f32.mrf.mxu0
        %v3010 = vadd.f32 0.0, %v3009
        %v3011 = vpop.f32.mrf.mxu0
        %3012 = vmatprep.mubr.bf16.mxu0 0
        %3013 = vmatmul.mubr.bf16.gmra.mxu0 %v2937
        %v3014 = vpop.f32.mrf.mxu0
        %v3015 = vadd.f32 0.0, %v3014
        %v3016 = vpop.f32.mrf.mxu0
        %v3017 = vpop.f32.mrf.mxu0
        %v3018 = vadd.f32 0.0, %v3017
        %v3019 = vpop.f32.mrf.mxu0
        %3020 = vmatprep.mubr.bf16.mxu0 0
        %3021 = vmatmul.mubr.bf16.gmra.mxu0 %v2940
        %v3022 = vpop.f32.mrf.mxu0
        %v3023 = vadd.f32 0.0, %v3022
        %v3024 = vpop.f32.mrf.mxu0
        %v3025 = vpop.f32.mrf.mxu0
        %v3026 = vadd.f32 0.0, %v3025
        %v3027 = vpop.f32.mrf.mxu0
        %3028 = vmatprep.mubr.bf16.mxu0 0
        %3029 = vmatmul.mubr.bf16.gmra.mxu0 %v2943
        %v3030 = vpop.f32.mrf.mxu0
        %v3031 = vadd.f32 0.0, %v3030
        %v3032 = vpop.f32.mrf.mxu0
        %v3033 = vpop.f32.mrf.mxu0
        %v3034 = vadd.f32 0.0, %v3033
        %v3035 = vpop.f32.mrf.mxu0
        %3036 = vmatprep.mubr.bf16.mxu0 0
        %3037 = vmatmul.mubr.bf16.gmra.mxu0 %v2946
        %v3038 = vpop.f32.mrf.mxu0
        %v3039 = vadd.f32 0.0, %v3038
        %v3040 = vpop.f32.mrf.mxu0
        %v3041 = vpop.f32.mrf.mxu0
        %v3042 = vadd.f32 0.0, %v3041
        %v3043 = vpop.f32.mrf.mxu0
        %3044 = vdwg.mxu0
        %v3045 = vmul.f32 %v2983, %v1956
        %v3046 = vmul.f32 %v2986, %v1959
        %v3047 = vmul.f32 %v2991, %v1964
        %v3048 = vmul.f32 %v2994, %v1967
        %v3049 = vmul.f32 %v2999, %v1972
        %v3050 = vmul.f32 %v3002, %v1975
        %v3051 = vmul.f32 %v3007, %v1980
        %v3052 = vmul.f32 %v3010, %v1983
        %v3053 = vmul.f32 %v3015, %v1988
        %v3054 = vmul.f32 %v3018, %v1991
        %v3055 = vmul.f32 %v3023, %v1996
        %v3056 = vmul.f32 %v3026, %v1999
        %v3057 = vmul.f32 %v3031, %v2004
        %v3058 = vmul.f32 %v3034, %v2007
        %v3059 = vmul.f32 %v3039, %v2012
        %v3060 = vmul.f32 %v3042, %v2015
        %v3061 = vxor.u32 %v3045, 2147483648
        %v3062 = vxor.u32 %v3046, 2147483648
        %v3063 = vxor.u32 %v3047, 2147483648
        %v3064 = vxor.u32 %v3048, 2147483648
        %v3065 = vxor.u32 %v3049, 2147483648
        %v3066 = vxor.u32 %v3050, 2147483648
        %v3067 = vxor.u32 %v3051, 2147483648
        %v3068 = vxor.u32 %v3052, 2147483648
        %v3069 = vxor.u32 %v3053, 2147483648
        %v3070 = vxor.u32 %v3054, 2147483648
        %v3071 = vxor.u32 %v3055, 2147483648
        %v3072 = vxor.u32 %v3056, 2147483648
        %v3073 = vxor.u32 %v3057, 2147483648
        %v3074 = vxor.u32 %v3058, 2147483648
        %v3075 = vxor.u32 %v3059, 2147483648
        %v3076 = vxor.u32 %v3060, 2147483648
        %v3077 = vmul.f32 %v3061, 1.442695
        %v3078 = vpow.pop %v3077
        %v3079 = vmul.f32 %v3062, 1.442695
        %v3080 = vpow.pop %v3079
        %v3081 = vmul.f32 %v3063, 1.442695
        %v3082 = vpow.pop %v3081
        %v3083 = vmul.f32 %v3064, 1.442695
        %v3084 = vpow.pop %v3083
        %v3085 = vmul.f32 %v3065, 1.442695
        %v3086 = vpow.pop %v3085
        %v3087 = vmul.f32 %v3066, 1.442695
        %v3088 = vpow.pop %v3087
        %v3089 = vmul.f32 %v3067, 1.442695
        %v3090 = vpow.pop %v3089
        %v3091 = vmul.f32 %v3068, 1.442695
        %v3092 = vpow.pop %v3091
        %v3093 = vmul.f32 %v3069, 1.442695
        %v3094 = vpow.pop %v3093
        %v3095 = vmul.f32 %v3070, 1.442695
        %v3096 = vpow.pop %v3095
        %v3097 = vmul.f32 %v3071, 1.442695
        %v3098 = vpow.pop %v3097
        %v3099 = vmul.f32 %v3072, 1.442695
        %v3100 = vpow.pop %v3099
        %v3101 = vmul.f32 %v3073, 1.442695
        %v3102 = vpow.pop %v3101
        %v3103 = vmul.f32 %v3074, 1.442695
        %v3104 = vpow.pop %v3103
        %v3105 = vmul.f32 %v3075, 1.442695
        %v3106 = vpow.pop %v3105
        %v3107 = vmul.f32 %v3076, 1.442695
        %v3108 = vpow.pop %v3107
        %v3109 = vadd.f32 %v3078, 1.0
        %v3110 = vadd.f32 %v3080, 1.0
        %v3111 = vadd.f32 %v3082, 1.0
        %v3112 = vadd.f32 %v3084, 1.0
        %v3113 = vadd.f32 %v3086, 1.0
        %v3114 = vadd.f32 %v3088, 1.0
        %v3115 = vadd.f32 %v3090, 1.0
        %v3116 = vadd.f32 %v3092, 1.0
        %v3117 = vadd.f32 %v3094, 1.0
        %v3118 = vadd.f32 %v3096, 1.0
        %v3119 = vadd.f32 %v3098, 1.0
        %v3120 = vadd.f32 %v3100, 1.0
        %v3121 = vadd.f32 %v3102, 1.0
        %v3122 = vadd.f32 %v3104, 1.0
        %v3123 = vadd.f32 %v3106, 1.0
        %v3124 = vadd.f32 %v3108, 1.0
        %v3125 = vrcp.pop %v3109
        %v3126 = vmul.f32 1.0, %v3125
        %v3127 = vrcp.pop %v3110
        %v3128 = vmul.f32 1.0, %v3127
        %v3129 = vrcp.pop %v3111
        %v3130 = vmul.f32 1.0, %v3129
        %v3131 = vrcp.pop %v3112
        %v3132 = vmul.f32 1.0, %v3131
        %v3133 = vrcp.pop %v3113
        %v3134 = vmul.f32 1.0, %v3133
        %v3135 = vrcp.pop %v3114
        %v3136 = vmul.f32 1.0, %v3135
        %v3137 = vrcp.pop %v3115
        %v3138 = vmul.f32 1.0, %v3137
        %v3139 = vrcp.pop %v3116
        %v3140 = vmul.f32 1.0, %v3139
        %v3141 = vrcp.pop %v3117
        %v3142 = vmul.f32 1.0, %v3141
        %v3143 = vrcp.pop %v3118
        %v3144 = vmul.f32 1.0, %v3143
        %v3145 = vrcp.pop %v3119
        %v3146 = vmul.f32 1.0, %v3145
        %v3147 = vrcp.pop %v3120
        %v3148 = vmul.f32 1.0, %v3147
        %v3149 = vrcp.pop %v3121
        %v3150 = vmul.f32 1.0, %v3149
        %v3151 = vrcp.pop %v3122
        %v3152 = vmul.f32 1.0, %v3151
        %v3153 = vrcp.pop %v3123
        %v3154 = vmul.f32 1.0, %v3153
        %v3155 = vrcp.pop %v3124
        %v3156 = vmul.f32 1.0, %v3155
        %v3157 = vld [vmem:[%s5 + $0x40] sm:$0xf]
        %v3158 = vld [vmem:[%s5 + $0x44] sm:$0xf]
        %v3159 = vld [vmem:[%s5 + $0x48] sm:$0xf]
        %v3160 = vld [vmem:[%s5 + $0x4c] sm:$0xf]
        %v3161 = vld [vmem:[%s5 + $0x50] sm:$0xf]
        %v3162 = vld [vmem:[%s5 + $0x54] sm:$0xf]
        %v3163 = vld [vmem:[%s5 + $0x58] sm:$0xf]
        %v3164 = vld [vmem:[%s5 + $0x5c] sm:$0xf]
        %v3166 = vsel %vm1462, %v1123, 0
        %v3169 = vsel %vm1462, %v1124, 0
        %v3172 = vsel %vm1462, %v1125, 0
        %v3175 = vsel %vm1462, %v1126, 0
        %3177 = vmatprep.subr.bf16.mxu0 0
        %3178 = vmatpush1.bf16.msra.mxu0 0
        %3179 = vmatprep.subr.bf16.mxu0 0
        %3180 = vmatpush1.bf16.msra.mxu0 0
        %3181 = vmatprep.subr.bf16.mxu0 0
        %3182 = vmatpush1.bf16.msra.mxu0 0
        %3183 = vmatprep.subr.bf16.mxu0 0
        %3184 = vmatpush1.bf16.msra.mxu0 0
        %3185 = vmatprep.subr.bf16.mxu0 0
        %3186 = vmatpush1.bf16.msra.mxu0 0
        %3187 = vmatprep.subr.bf16.mxu0 0
        %3188 = vmatpush1.bf16.msra.mxu0 0
        %3189 = vmatprep.subr.bf16.mxu0 0
        %3190 = vmatpush1.bf16.msra.mxu0 0
        %3191 = vmatprep.subr.bf16.mxu0 0
        %3192 = vmatpush1.bf16.msra.mxu0 %v1477
        %3193 = vmatprep.subr.bf16.mxu0 0
        %3194 = vmatpush2.bf16.msra.mxu0 0
        %3195 = vmatprep.subr.bf16.mxu0 0
        %3196 = vmatpush2.bf16.msra.mxu0 0
        %3197 = vmatprep.subr.bf16.mxu0 0
        %3198 = vmatpush2.bf16.msra.mxu0 0
        %3199 = vmatprep.subr.bf16.mxu0 0
        %3200 = vmatpush2.bf16.msra.mxu0 0
        %3201 = vmatprep.subr.bf16.mxu0 0
        %3202 = vmatpush2.bf16.msra.mxu0 0
        %3203 = vmatprep.subr.bf16.mxu0 0
        %3204 = vmatpush2.bf16.msra.mxu0 0
        %3205 = vmatprep.subr.bf16.mxu0 0
        %3206 = vmatpush2.bf16.msra.mxu0 0
        %3207 = vmatprep.subr.bf16.mxu0 0
        %3208 = vmatpush2.bf16.msra.mxu0 0
        %3209 = vmatprep.mubr.bf16.mxu0 0
        %3210 = vmatmul.mubr.bf16.gmra.mxu0 %v3166
        %v3211 = vpop.f32.mrf.mxu0
        %v3212 = vadd.f32 0.0, %v3211
        %v3213 = vpop.f32.mrf.mxu0
        %v3214 = vpop.f32.mrf.mxu0
        %v3215 = vadd.f32 0.0, %v3214
        %v3216 = vpop.f32.mrf.mxu0
        %3217 = vmatprep.mubr.bf16.mxu0 0
        %3218 = vmatmul.mubr.bf16.gmra.mxu0 %v3169
        %v3219 = vpop.f32.mrf.mxu0
        %v3220 = vadd.f32 0.0, %v3219
        %v3221 = vpop.f32.mrf.mxu0
        %v3222 = vpop.f32.mrf.mxu0
        %v3223 = vadd.f32 0.0, %v3222
        %v3224 = vpop.f32.mrf.mxu0
        %3225 = vmatprep.mubr.bf16.mxu0 0
        %3226 = vmatmul.mubr.bf16.gmra.mxu0 %v3172
        %v3227 = vpop.f32.mrf.mxu0
        %v3228 = vadd.f32 0.0, %v3227
        %v3229 = vpop.f32.mrf.mxu0
        %v3230 = vpop.f32.mrf.mxu0
        %v3231 = vadd.f32 0.0, %v3230
        %v3232 = vpop.f32.mrf.mxu0
        %3233 = vmatprep.mubr.bf16.mxu0 0
        %3234 = vmatmul.mubr.bf16.gmra.mxu0 %v3175
        %v3235 = vpop.f32.mrf.mxu0
        %v3236 = vadd.f32 0.0, %v3235
        %v3237 = vpop.f32.mrf.mxu0
        %v3238 = vpop.f32.mrf.mxu0
        %v3239 = vadd.f32 0.0, %v3238
        %v3240 = vpop.f32.mrf.mxu0
        %3241 = vdwg.mxu0
        %v3242 = vmul.f32 %v3142, %v3212
        %v3243 = vmul.f32 %v3144, %v3215
        %v3244 = vmul.f32 %v3146, %v3220
        %v3245 = vmul.f32 %v3148, %v3223
        %v3246 = vmul.f32 %v3150, %v3228
        %v3247 = vmul.f32 %v3152, %v3231
        %v3248 = vmul.f32 %v3154, %v3236
        %v3249 = vmul.f32 %v3156, %v3239
        %v3250 = vpack.c.bf16 %v3243, %v3242
        %v3251 = vpack.c.bf16 %v3245, %v3244
        %v3252 = vpack.c.bf16 %v3247, %v3246
        %v3253 = vpack.c.bf16 %v3249, %v3248
        %v3262 = vunpack.c.l.b16 %v3157
        %v3263 = vunpack.c.l.b16 %v3158
        %v3264 = vunpack.c.l.b16 %v3159
        %v3265 = vunpack.c.l.b16 %v3160
        %v3266 = vunpack.c.l.b16 %v3161
        %v3267 = vunpack.c.l.b16 %v3162
        %v3268 = vunpack.c.l.b16 %v3163
        %v3269 = vunpack.c.l.b16 %v3164
        %v3270 = vpack.c.b16 %v3263, %v3262
        %v3271 = vpack.c.b16 %v3265, %v3264
        %v3272 = vpack.c.b16 %v3267, %v3266
        %v3273 = vpack.c.b16 %v3269, %v3268
        %v3275 = vsel %vm1013, %v3270, 0
        %v3278 = vsel %vm1013, %v3271, 0
        %v3281 = vsel %vm1013, %v3272, 0
        %v3284 = vsel %vm1013, %v3273, 0
        %3286 = vmatprep.subr.bf16.mxu0 0
        %3287 = vmatpush1.bf16.msra.mxu0 0
        %3288 = vmatprep.subr.bf16.mxu0 0
        %3289 = vmatpush1.bf16.msra.mxu0 0
        %3290 = vmatprep.subr.bf16.mxu0 0
        %3291 = vmatpush1.bf16.msra.mxu0 0
        %3292 = vmatprep.subr.bf16.mxu0 0
        %3293 = vmatpush1.bf16.msra.mxu0 0
        %3294 = vmatprep.subr.bf16.mxu0 0
        %3295 = vmatpush1.bf16.msra.mxu0 %v3253
        %3296 = vmatprep.subr.bf16.mxu0 0
        %3297 = vmatpush1.bf16.msra.mxu0 %v3252
        %3298 = vmatprep.subr.bf16.mxu0 0
        %3299 = vmatpush1.bf16.msra.mxu0 %v3251
        %3300 = vmatprep.subr.bf16.mxu0 0
        %3301 = vmatpush1.bf16.msra.mxu0 %v3250
        %3302 = vmatprep.subr.bf16.mxu0 0
        %3303 = vmatpush2.bf16.msra.mxu0 0
        %3304 = vmatprep.subr.bf16.mxu0 0
        %3305 = vmatpush2.bf16.msra.mxu0 0
        %3306 = vmatprep.subr.bf16.mxu0 0
        %3307 = vmatpush2.bf16.msra.mxu0 0
        %3308 = vmatprep.subr.bf16.mxu0 0
        %3309 = vmatpush2.bf16.msra.mxu0 0
        %3310 = vmatprep.subr.bf16.mxu0 0
        %3311 = vmatpush2.bf16.msra.mxu0 0
        %3312 = vmatprep.subr.bf16.mxu0 0
        %3313 = vmatpush2.bf16.msra.mxu0 0
        %3314 = vmatprep.subr.bf16.mxu0 0
        %3315 = vmatpush2.bf16.msra.mxu0 0
        %3316 = vmatprep.subr.bf16.mxu0 0
        %3317 = vmatpush2.bf16.msra.mxu0 0
        %3318 = vmatprep.mubr.bf16.mxu0 0
        %3319 = vmatmul.mubr.bf16.gmra.mxu0 %v3275
        %v3320 = vpop.f32.mrf.mxu0
        %v3321 = vadd.f32 0.0, %v3320
        %v3322 = vpop.f32.mrf.mxu0
        %v3323 = vpop.f32.mrf.mxu0
        %v3324 = vadd.f32 0.0, %v3323
        %v3325 = vpop.f32.mrf.mxu0
        %3326 = vmatprep.mubr.bf16.mxu0 0
        %3327 = vmatmul.mubr.bf16.gmra.mxu0 %v3278
        %v3328 = vpop.f32.mrf.mxu0
        %v3329 = vadd.f32 0.0, %v3328
        %v3330 = vpop.f32.mrf.mxu0
        %v3331 = vpop.f32.mrf.mxu0
        %v3332 = vadd.f32 0.0, %v3331
        %v3333 = vpop.f32.mrf.mxu0
        %3334 = vmatprep.mubr.bf16.mxu0 0
        %3335 = vmatmul.mubr.bf16.gmra.mxu0 %v3281
        %v3336 = vpop.f32.mrf.mxu0
        %v3337 = vadd.f32 0.0, %v3336
        %v3338 = vpop.f32.mrf.mxu0
        %v3339 = vpop.f32.mrf.mxu0
        %v3340 = vadd.f32 0.0, %v3339
        %v3341 = vpop.f32.mrf.mxu0
        %3342 = vmatprep.mubr.bf16.mxu0 0
        %3343 = vmatmul.mubr.bf16.gmra.mxu0 %v3284
        %v3344 = vpop.f32.mrf.mxu0
        %v3345 = vadd.f32 0.0, %v3344
        %v3346 = vpop.f32.mrf.mxu0
        %v3347 = vpop.f32.mrf.mxu0
        %v3348 = vadd.f32 0.0, %v3347
        %v3349 = vpop.f32.mrf.mxu0
        %3350 = vdwg.mxu0
        %v3351 = vld [vmem:[%s4 + $0x40] sm:$0xf]
        %v3352 = vld [vmem:[%s4 + $0x44] sm:$0xf]
        %v3353 = vld [vmem:[%s4 + $0x48] sm:$0xf]
        %v3354 = vld [vmem:[%s4 + $0x4c] sm:$0xf]
        %v3355 = vld [vmem:[%s4 + $0x50] sm:$0xf]
        %v3356 = vld [vmem:[%s4 + $0x54] sm:$0xf]
        %v3357 = vld [vmem:[%s4 + $0x58] sm:$0xf]
        %v3358 = vld [vmem:[%s4 + $0x5c] sm:$0xf]
        %v3367 = vunpack.c.l.b16 %v3351
        %v3368 = vunpack.c.l.b16 %v3352
        %v3369 = vunpack.c.l.b16 %v3353
        %v3370 = vunpack.c.l.b16 %v3354
        %v3371 = vunpack.c.l.b16 %v3355
        %v3372 = vunpack.c.l.b16 %v3356
        %v3373 = vunpack.c.l.b16 %v3357
        %v3374 = vunpack.c.l.b16 %v3358
        %v3375 = vpack.c.b16 %v3368, %v3367
        %v3376 = vpack.c.b16 %v3370, %v3369
        %v3377 = vpack.c.b16 %v3372, %v3371
        %v3378 = vpack.c.b16 %v3374, %v3373
        %v3380 = vsel %vm1373, %v3375, 0
        %v3383 = vsel %vm1373, %v3376, 0
        %v3386 = vsel %vm1373, %v3377, 0
        %v3389 = vsel %vm1373, %v3378, 0
        %3391 = vmatprep.subr.bf16.mxu0 0
        %3392 = vmatpush1.bf16.msra.mxu0 0
        %3393 = vmatprep.subr.bf16.mxu0 0
        %3394 = vmatpush1.bf16.msra.mxu0 0
        %3395 = vmatprep.subr.bf16.mxu0 0
        %3396 = vmatpush1.bf16.msra.mxu0 0
        %3397 = vmatprep.subr.bf16.mxu0 0
        %3398 = vmatpush1.bf16.msra.mxu0 0
        %3399 = vmatprep.subr.bf16.mxu0 0
        %3400 = vmatpush1.bf16.msra.mxu0 0
        %3401 = vmatprep.subr.bf16.mxu0 0
        %3402 = vmatpush1.bf16.msra.mxu0 0
        %3403 = vmatprep.subr.bf16.mxu0 0
        %3404 = vmatpush1.bf16.msra.mxu0 %v1391
        %3405 = vmatprep.subr.bf16.mxu0 0
        %3406 = vmatpush1.bf16.msra.mxu0 %v1370
        %3407 = vmatprep.subr.bf16.mxu0 0
        %3408 = vmatpush2.bf16.msra.mxu0 0
        %3409 = vmatprep.subr.bf16.mxu0 0
        %3410 = vmatpush2.bf16.msra.mxu0 0
        %3411 = vmatprep.subr.bf16.mxu0 0
        %3412 = vmatpush2.bf16.msra.mxu0 0
        %3413 = vmatprep.subr.bf16.mxu0 0
        %3414 = vmatpush2.bf16.msra.mxu0 0
        %3415 = vmatprep.subr.bf16.mxu0 0
        %3416 = vmatpush2.bf16.msra.mxu0 0
        %3417 = vmatprep.subr.bf16.mxu0 0
        %3418 = vmatpush2.bf16.msra.mxu0 0
        %3419 = vmatprep.subr.bf16.mxu0 0
        %3420 = vmatpush2.bf16.msra.mxu0 0
        %3421 = vmatprep.subr.bf16.mxu0 0
        %3422 = vmatpush2.bf16.msra.mxu0 0
        %3423 = vmatprep.mubr.bf16.mxu0 0
        %3424 = vmatmul.mubr.bf16.gmra.mxu0 %v3380
        %v3425 = vpop.f32.mrf.mxu0
        %v3426 = vadd.f32 0.0, %v3425
        %v3427 = vpop.f32.mrf.mxu0
        %v3428 = vpop.f32.mrf.mxu0
        %v3429 = vadd.f32 0.0, %v3428
        %v3430 = vpop.f32.mrf.mxu0
        %3431 = vmatprep.mubr.bf16.mxu0 0
        %3432 = vmatmul.mubr.bf16.gmra.mxu0 %v3383
        %v3433 = vpop.f32.mrf.mxu0
        %v3434 = vadd.f32 0.0, %v3433
        %v3435 = vpop.f32.mrf.mxu0
        %v3436 = vpop.f32.mrf.mxu0
        %v3437 = vadd.f32 0.0, %v3436
        %v3438 = vpop.f32.mrf.mxu0
        %3439 = vmatprep.mubr.bf16.mxu0 0
        %3440 = vmatmul.mubr.bf16.gmra.mxu0 %v3386
        %v3441 = vpop.f32.mrf.mxu0
        %v3442 = vadd.f32 0.0, %v3441
        %v3443 = vpop.f32.mrf.mxu0
        %v3444 = vpop.f32.mrf.mxu0
        %v3445 = vadd.f32 0.0, %v3444
        %v3446 = vpop.f32.mrf.mxu0
        %3447 = vmatprep.mubr.bf16.mxu0 0
        %3448 = vmatmul.mubr.bf16.gmra.mxu0 %v3389
        %v3449 = vpop.f32.mrf.mxu0
        %v3450 = vadd.f32 0.0, %v3449
        %v3451 = vpop.f32.mrf.mxu0
        %v3452 = vpop.f32.mrf.mxu0
        %v3453 = vadd.f32 0.0, %v3452
        %v3454 = vpop.f32.mrf.mxu0
        %3455 = vdwg.mxu0
        %v3456 = vmul.f32 %v3426, %v3126
        %v3457 = vmul.f32 %v3429, %v3128
        %v3458 = vmul.f32 %v3434, %v3130
        %v3459 = vmul.f32 %v3437, %v3132
        %v3460 = vmul.f32 %v3442, %v3134
        %v3461 = vmul.f32 %v3445, %v3136
        %v3462 = vmul.f32 %v3450, %v3138
        %v3463 = vmul.f32 %v3453, %v3140
        %v3464 = vadd.f32 %v3456, %v3321
        %v3465 = vadd.f32 %v3457, %v3324
        %v3466 = vadd.f32 %v3458, %v3329
        %v3467 = vadd.f32 %v3459, %v3332
        %v3468 = vadd.f32 %v3460, %v3337
        %v3469 = vadd.f32 %v3461, %v3340
        %v3470 = vadd.f32 %v3462, %v3345
        %v3471 = vadd.f32 %v3463, %v3348
        %v3472 = vmul.f32 %v3464, 0.1
        %v3473 = vmul.f32 %v3465, 0.1
        %v3474 = vmul.f32 %v3466, 0.1
        %v3475 = vmul.f32 %v3467, 0.1
        %v3476 = vmul.f32 %v3468, 0.1
        %v3477 = vmul.f32 %v3469, 0.1
        %v3478 = vmul.f32 %v3470, 0.1
        %v3479 = vmul.f32 %v3471, 0.1
        %v3480 = vmax.f32 %v3464, %v3472
        %v3481 = vmax.f32 %v3465, %v3473
        %v3482 = vmax.f32 %v3466, %v3474
        %v3483 = vmax.f32 %v3467, %v3475
        %v3484 = vmax.f32 %v3468, %v3476
        %v3485 = vmax.f32 %v3469, %v3477
        %v3486 = vmax.f32 %v3470, %v3478
        %v3487 = vmax.f32 %v3471, %v3479
        %v3488 = vpack.c.bf16 %v471, %v470
        %v3489 = vpack.c.bf16 %v473, %v472
        %v3490 = vpack.c.bf16 %v475, %v474
        %v3491 = vpack.c.bf16 %v477, %v476
        %v3493 = vsel %vm1462, %v3488, 0
        %v3496 = vsel %vm1462, %v3489, 0
        %v3499 = vsel %vm1462, %v3490, 0
        %v3502 = vsel %vm1462, %v3491, 0
        %3504 = vmatprep.subr.bf16.mxu0 0
        %3505 = vmatpush1.bf16.msra.mxu0 0
        %3506 = vmatprep.subr.bf16.mxu0 0
        %3507 = vmatpush1.bf16.msra.mxu0 0
        %3508 = vmatprep.subr.bf16.mxu0 0
        %3509 = vmatpush1.bf16.msra.mxu0 0
        %3510 = vmatprep.subr.bf16.mxu0 0
        %3511 = vmatpush1.bf16.msra.mxu0 0
        %3512 = vmatprep.subr.bf16.mxu0 0
        %3513 = vmatpush1.bf16.msra.mxu0 0
        %3514 = vmatprep.subr.bf16.mxu0 0
        %3515 = vmatpush1.bf16.msra.mxu0 0
        %3516 = vmatprep.subr.bf16.mxu0 0
        %3517 = vmatpush1.bf16.msra.mxu0 0
        %3518 = vmatprep.subr.bf16.mxu0 0
        %3519 = vmatpush1.bf16.msra.mxu0 %v1477
        %3520 = vmatprep.subr.bf16.mxu0 0
        %3521 = vmatpush2.bf16.msra.mxu0 0
        %3522 = vmatprep.subr.bf16.mxu0 0
        %3523 = vmatpush2.bf16.msra.mxu0 0
        %3524 = vmatprep.subr.bf16.mxu0 0
        %3525 = vmatpush2.bf16.msra.mxu0 0
        %3526 = vmatprep.subr.bf16.mxu0 0
        %3527 = vmatpush2.bf16.msra.mxu0 0
        %3528 = vmatprep.subr.bf16.mxu0 0
        %3529 = vmatpush2.bf16.msra.mxu0 0
        %3530 = vmatprep.subr.bf16.mxu0 0
        %3531 = vmatpush2.bf16.msra.mxu0 0
        %3532 = vmatprep.subr.bf16.mxu0 0
        %3533 = vmatpush2.bf16.msra.mxu0 0
        %3534 = vmatprep.subr.bf16.mxu0 0
        %3535 = vmatpush2.bf16.msra.mxu0 0
        %3536 = vmatprep.mubr.bf16.mxu0 0
        %3537 = vmatmul.mubr.bf16.gmra.mxu0 %v3493
        %v3538 = vpop.f32.mrf.mxu0
        %v3539 = vadd.f32 0.0, %v3538
        %v3540 = vpop.f32.mrf.mxu0
        %v3541 = vpop.f32.mrf.mxu0
        %v3542 = vadd.f32 0.0, %v3541
        %v3543 = vpop.f32.mrf.mxu0
        %3544 = vmatprep.mubr.bf16.mxu0 0
        %3545 = vmatmul.mubr.bf16.gmra.mxu0 %v3496
        %v3546 = vpop.f32.mrf.mxu0
        %v3547 = vadd.f32 0.0, %v3546
        %v3548 = vpop.f32.mrf.mxu0
        %v3549 = vpop.f32.mrf.mxu0
        %v3550 = vadd.f32 0.0, %v3549
        %v3551 = vpop.f32.mrf.mxu0
        %3552 = vmatprep.mubr.bf16.mxu0 0
        %3553 = vmatmul.mubr.bf16.gmra.mxu0 %v3499
        %v3554 = vpop.f32.mrf.mxu0
        %v3555 = vadd.f32 0.0, %v3554
        %v3556 = vpop.f32.mrf.mxu0
        %v3557 = vpop.f32.mrf.mxu0
        %v3558 = vadd.f32 0.0, %v3557
        %v3559 = vpop.f32.mrf.mxu0
        %3560 = vmatprep.mubr.bf16.mxu0 0
        %3561 = vmatmul.mubr.bf16.gmra.mxu0 %v3502
        %v3562 = vpop.f32.mrf.mxu0
        %v3563 = vadd.f32 0.0, %v3562
        %v3564 = vpop.f32.mrf.mxu0
        %v3565 = vpop.f32.mrf.mxu0
        %v3566 = vadd.f32 0.0, %v3565
        %v3567 = vpop.f32.mrf.mxu0
        %3568 = vdwg.mxu0
        %v3569 = vadd.f32 %v3480, %v3539
        %v3570 = vadd.f32 %v3481, %v3542
        %v3571 = vadd.f32 %v3482, %v3547
        %v3572 = vadd.f32 %v3483, %v3550
        %v3573 = vadd.f32 %v3484, %v3555
        %v3574 = vadd.f32 %v3485, %v3558
        %v3575 = vadd.f32 %v3486, %v3563
        %v3576 = vadd.f32 %v3487, %v3566
        %v3577 = vpack.c.bf16 %v3570, %v3569
        %v3578 = vpack.c.bf16 %v3572, %v3571
        %v3579 = vpack.c.bf16 %v3574, %v3573
        %v3580 = vpack.c.bf16 %v3576, %v3575
        %3581 = vmatprep.subr.bf16.mxu0 0
        %3582 = vmatpush1.bf16.xpose.msra.mxu0 0
        %3583 = vmatprep.subr.bf16.mxu0 0
        %3584 = vmatpush1.bf16.xpose.msra.mxu0 0
        %3585 = vmatprep.subr.bf16.mxu0 0
        %3586 = vmatpush1.bf16.xpose.msra.mxu0 0
        %3587 = vmatprep.subr.bf16.mxu0 0
        %3588 = vmatpush1.bf16.xpose.msra.mxu0 0
        %3589 = vmatprep.subr.bf16.mxu0 0
        %3590 = vmatpush1.bf16.xpose.msra.mxu0 0
        %3591 = vmatprep.subr.bf16.mxu0 0
        %3592 = vmatpush1.bf16.xpose.msra.mxu0 0
        %3593 = vmatprep.subr.bf16.mxu0 0
        %3594 = vmatpush1.bf16.xpose.msra.mxu0 0
        %3595 = vmatprep.subr.bf16.mxu0 0
        %3596 = vmatpush1.bf16.xpose.msra.mxu0 %v464
        %3597 = vmatprep.subr.bf16.mxu0 0
        %3598 = vmatpush2.bf16.xpose.msra.mxu0 0
        %3599 = vmatprep.subr.bf16.mxu0 0
        %3600 = vmatpush2.bf16.xpose.msra.mxu0 0
        %3601 = vmatprep.subr.bf16.mxu0 0
        %3602 = vmatpush2.bf16.xpose.msra.mxu0 0
        %3603 = vmatprep.subr.bf16.mxu0 0
        %3604 = vmatpush2.bf16.xpose.msra.mxu0 0
        %3605 = vmatprep.subr.bf16.mxu0 0
        %3606 = vmatpush2.bf16.xpose.msra.mxu0 0
        %3607 = vmatprep.subr.bf16.mxu0 0
        %3608 = vmatpush2.bf16.xpose.msra.mxu0 0
        %3609 = vmatprep.subr.bf16.mxu0 0
        %3610 = vmatpush2.bf16.xpose.msra.mxu0 0
        %3611 = vmatprep.subr.bf16.mxu0 0
        %3612 = vmatpush2.bf16.xpose.msra.mxu0 0
        %3613 = vmatprep.mubr.bf16.mxu0 0
        %3614 = vmatmul.mubr.bf16.gmra.mxu0 %v3577
        %v3615 = vpop.f32.mrf.mxu0
        %v3616 = vadd.f32 0.0, %v3615
        %v3617 = vpop.f32.mrf.mxu0
        %v3618 = vpop.f32.mrf.mxu0
        %v3619 = vadd.f32 0.0, %v3618
        %v3620 = vpop.f32.mrf.mxu0
        %3621 = vmatprep.mubr.bf16.mxu0 0
        %3622 = vmatmul.mubr.bf16.gmra.mxu0 %v3578
        %v3623 = vpop.f32.mrf.mxu0
        %v3624 = vadd.f32 0.0, %v3623
        %v3625 = vpop.f32.mrf.mxu0
        %v3626 = vpop.f32.mrf.mxu0
        %v3627 = vadd.f32 0.0, %v3626
        %v3628 = vpop.f32.mrf.mxu0
        %3629 = vmatprep.mubr.bf16.mxu0 0
        %3630 = vmatmul.mubr.bf16.gmra.mxu0 %v3579
        %v3631 = vpop.f32.mrf.mxu0
        %v3632 = vadd.f32 0.0, %v3631
        %v3633 = vpop.f32.mrf.mxu0
        %v3634 = vpop.f32.mrf.mxu0
        %v3635 = vadd.f32 0.0, %v3634
        %v3636 = vpop.f32.mrf.mxu0
        %3637 = vmatprep.mubr.bf16.mxu0 0
        %3638 = vmatmul.mubr.bf16.gmra.mxu0 %v3580
        %v3639 = vpop.f32.mrf.mxu0
        %v3640 = vadd.f32 0.0, %v3639
        %v3641 = vpop.f32.mrf.mxu0
        %v3642 = vpop.f32.mrf.mxu0
        %v3643 = vadd.f32 0.0, %v3642
        %v3644 = vpop.f32.mrf.mxu0
        %3645 = vdwg.mxu0
        %v3646 = vmul.f32 %v3616, 0.0625
        %v3647 = vmul.f32 %v3619, 0.0625
        %v3648 = vmul.f32 %v3624, 0.0625
        %v3649 = vmul.f32 %v3627, 0.0625
        %v3650 = vmul.f32 %v3632, 0.0625
        %v3651 = vmul.f32 %v3635, 0.0625
        %v3652 = vmul.f32 %v3640, 0.0625
        %v3653 = vmul.f32 %v3643, 0.0625
        %s3654 = scalar_lea.vmem %s6, 64
        %v3655 = vld [vmem:[%s3654] sm:$0xf]
        %v3656 = vld [vmem:[%s3654 + $0x4] sm:$0xf]
        %v3657 = vld [vmem:[%s3654 + $0x8] sm:$0xf]
        %v3658 = vld [vmem:[%s3654 + $0xc] sm:$0xf]
        %v3659 = vld [vmem:[%s3654 + $0x10] sm:$0xf]
        %v3660 = vld [vmem:[%s3654 + $0x14] sm:$0xf]
        %v3661 = vld [vmem:[%s3654 + $0x18] sm:$0xf]
        %v3662 = vld [vmem:[%s3654 + $0x1c] sm:$0xf]
        %v3663 = vld [vmem:[%s8 + $0x240] sm:$0xff]
        %v3664 = vld [vmem:[%s8 + $0x248] sm:$0xff]
        %v3665 = vld [vmem:[%s8 + $0x250] sm:$0xff]
        %v3666 = vld [vmem:[%s8 + $0x258] sm:$0xff]
        %v3667 = vld [vmem:[%s8 + $0x260] sm:$0xff]
        %v3668 = vld [vmem:[%s8 + $0x268] sm:$0xff]
        %v3669 = vld [vmem:[%s8 + $0x270] sm:$0xff]
        %v3670 = vld [vmem:[%s8 + $0x278] sm:$0xff]
        %3672 = vset.pattern.permute.xlu0 0
        %3673 = vperm.xlu0 %3672, %v3663
        %v3674 = vpop.permute.xlu0 %3673
        %3677 = vset.pattern.permute.xlu0 0
        %3678 = vperm.xlu0 %3677, %v3664
        %v3679 = vpop.permute.xlu0 %3678
        %3682 = vset.pattern.permute.xlu0 0
        %3683 = vperm.xlu0 %3682, %v3665
        %v3684 = vpop.permute.xlu0 %3683
        %3687 = vset.pattern.permute.xlu0 0
        %3688 = vperm.xlu0 %3687, %v3666
        %v3689 = vpop.permute.xlu0 %3688
        %3692 = vset.pattern.permute.xlu0 0
        %3693 = vperm.xlu0 %3692, %v3667
        %v3694 = vpop.permute.xlu0 %3693
        %3697 = vset.pattern.permute.xlu0 0
        %3698 = vperm.xlu0 %3697, %v3668
        %v3699 = vpop.permute.xlu0 %3698
        %3702 = vset.pattern.permute.xlu0 0
        %3703 = vperm.xlu0 %3702, %v3669
        %v3704 = vpop.permute.xlu0 %3703
        %3707 = vset.pattern.permute.xlu0 0
        %3708 = vperm.xlu0 %3707, %v3670
        %v3709 = vpop.permute.xlu0 %3708
        %v3719 = vunpack.c.l.b16 %v3655
        %v3720 = vunpack.c.l.b16 %v3656
        %v3721 = vunpack.c.l.b16 %v3657
        %v3722 = vunpack.c.l.b16 %v3658
        %v3723 = vunpack.c.l.b16 %v3659
        %v3724 = vunpack.c.l.b16 %v3660
        %v3725 = vunpack.c.l.b16 %v3661
        %v3726 = vunpack.c.l.b16 %v3662
        %v3727 = vpack.c.b16 %v3720, %v3719
        %v3728 = vpack.c.b16 %v3722, %v3721
        %v3729 = vpack.c.b16 %v3724, %v3723
        %v3730 = vpack.c.b16 %v3726, %v3725
        %v3732 = vsel %vm1013, %v3727, 0
        %v3735 = vsel %vm1013, %v3728, 0
        %v3738 = vsel %vm1013, %v3729, 0
        %v3741 = vsel %vm1013, %v3730, 0
        %3743 = vmatprep.subr.bf16.mxu0 0
        %3744 = vmatpush1.bf16.msra.mxu0 0
        %3745 = vmatprep.subr.bf16.mxu0 0
        %3746 = vmatpush1.bf16.msra.mxu0 0
        %3747 = vmatprep.subr.bf16.mxu0 0
        %3748 = vmatpush1.bf16.msra.mxu0 0
        %3749 = vmatprep.subr.bf16.mxu0 0
        %3750 = vmatpush1.bf16.msra.mxu0 0
        %3751 = vmatprep.subr.bf16.mxu0 0
        %3752 = vmatpush1.bf16.msra.mxu0 %v3580
        %3753 = vmatprep.subr.bf16.mxu0 0
        %3754 = vmatpush1.bf16.msra.mxu0 %v3579
        %3755 = vmatprep.subr.bf16.mxu0 0
        %3756 = vmatpush1.bf16.msra.mxu0 %v3578
        %3757 = vmatprep.subr.bf16.mxu0 0
        %3758 = vmatpush1.bf16.msra.mxu0 %v3577
        %3759 = vmatprep.subr.bf16.mxu0 0
        %3760 = vmatpush2.bf16.msra.mxu0 0
        %3761 = vmatprep.subr.bf16.mxu0 0
        %3762 = vmatpush2.bf16.msra.mxu0 0
        %3763 = vmatprep.subr.bf16.mxu0 0
        %3764 = vmatpush2.bf16.msra.mxu0 0
        %3765 = vmatprep.subr.bf16.mxu0 0
        %3766 = vmatpush2.bf16.msra.mxu0 0
        %3767 = vmatprep.subr.bf16.mxu0 0
        %3768 = vmatpush2.bf16.msra.mxu0 0
        %3769 = vmatprep.subr.bf16.mxu0 0
        %3770 = vmatpush2.bf16.msra.mxu0 0
        %3771 = vmatprep.subr.bf16.mxu0 0
        %3772 = vmatpush2.bf16.msra.mxu0 0
        %3773 = vmatprep.subr.bf16.mxu0 0
        %3774 = vmatpush2.bf16.msra.mxu0 0
        %3775 = vmatprep.mubr.bf16.mxu0 0
        %3776 = vmatmul.mubr.bf16.gmra.mxu0 %v3732
        %v3777 = vpop.f32.mrf.mxu0
        %v3778 = vadd.f32 %v3674, %v3777
        %v3779 = vpop.f32.mrf.mxu0
        %v3780 = vpop.f32.mrf.mxu0
        %v3781 = vadd.f32 %v3679, %v3780
        %v3782 = vpop.f32.mrf.mxu0
        %3783 = vmatprep.mubr.bf16.mxu0 0
        %3784 = vmatmul.mubr.bf16.gmra.mxu0 %v3735
        %v3785 = vpop.f32.mrf.mxu0
        %v3786 = vadd.f32 %v3684, %v3785
        %v3787 = vpop.f32.mrf.mxu0
        %v3788 = vpop.f32.mrf.mxu0
        %v3789 = vadd.f32 %v3689, %v3788
        %v3790 = vpop.f32.mrf.mxu0
        %3791 = vmatprep.mubr.bf16.mxu0 0
        %3792 = vmatmul.mubr.bf16.gmra.mxu0 %v3738
        %v3793 = vpop.f32.mrf.mxu0
        %v3794 = vadd.f32 %v3694, %v3793
        %v3795 = vpop.f32.mrf.mxu0
        %v3796 = vpop.f32.mrf.mxu0
        %v3797 = vadd.f32 %v3699, %v3796
        %v3798 = vpop.f32.mrf.mxu0
        %3799 = vmatprep.mubr.bf16.mxu0 0
        %3800 = vmatmul.mubr.bf16.gmra.mxu0 %v3741
        %v3801 = vpop.f32.mrf.mxu0
        %v3802 = vadd.f32 %v3704, %v3801
        %v3803 = vpop.f32.mrf.mxu0
        %v3804 = vpop.f32.mrf.mxu0
        %v3805 = vadd.f32 %v3709, %v3804
        %v3806 = vpop.f32.mrf.mxu0
        %3807 = vdwg.mxu0
        %v3808 = vmul.f32 %v3778, %v3126
        %v3809 = vmul.f32 %v3781, %v3128
        %v3810 = vmul.f32 %v3786, %v3130
        %v3811 = vmul.f32 %v3789, %v3132
        %v3812 = vmul.f32 %v3794, %v3134
        %v3813 = vmul.f32 %v3797, %v3136
        %v3814 = vmul.f32 %v3802, %v3138
        %v3815 = vmul.f32 %v3805, %v3140
        %v3816 = vadd.f32 %v3808, %v3321
        %v3817 = vadd.f32 %v3809, %v3324
        %v3818 = vadd.f32 %v3810, %v3329
        %v3819 = vadd.f32 %v3811, %v3332
        %v3820 = vadd.f32 %v3812, %v3337
        %v3821 = vadd.f32 %v3813, %v3340
        %v3822 = vadd.f32 %v3814, %v3345
        %v3823 = vadd.f32 %v3815, %v3348
        %v3824 = vmul.f32 %v3816, 0.1
        %v3825 = vmul.f32 %v3817, 0.1
        %v3826 = vmul.f32 %v3818, 0.1
        %v3827 = vmul.f32 %v3819, 0.1
        %v3828 = vmul.f32 %v3820, 0.1
        %v3829 = vmul.f32 %v3821, 0.1
        %v3830 = vmul.f32 %v3822, 0.1
        %v3831 = vmul.f32 %v3823, 0.1
        %v3832 = vmax.f32 %v3816, %v3824
        %v3833 = vmax.f32 %v3817, %v3825
        %v3834 = vmax.f32 %v3818, %v3826
        %v3835 = vmax.f32 %v3819, %v3827
        %v3836 = vmax.f32 %v3820, %v3828
        %v3837 = vmax.f32 %v3821, %v3829
        %v3838 = vmax.f32 %v3822, %v3830
        %v3839 = vmax.f32 %v3823, %v3831
        %s3840 = scalar_lea.vmem %s6, 96
        %v3841 = vld [vmem:[%s3840] sm:$0xf]
        %v3842 = vld [vmem:[%s3840 + $0x4] sm:$0xf]
        %v3843 = vld [vmem:[%s3840 + $0x8] sm:$0xf]
        %v3844 = vld [vmem:[%s3840 + $0xc] sm:$0xf]
        %v3845 = vld [vmem:[%s3840 + $0x10] sm:$0xf]
        %v3846 = vld [vmem:[%s3840 + $0x14] sm:$0xf]
        %v3847 = vld [vmem:[%s3840 + $0x18] sm:$0xf]
        %v3848 = vld [vmem:[%s3840 + $0x1c] sm:$0xf]
        %v3849 = vpack.c.bf16 %v3833, %v3832
        %v3850 = vpack.c.bf16 %v3835, %v3834
        %v3851 = vpack.c.bf16 %v3837, %v3836
        %v3852 = vpack.c.bf16 %v3839, %v3838
        %v3853 = vld [vmem:[%s8 + $0x280] sm:$0xff]
        %v3854 = vld [vmem:[%s8 + $0x288] sm:$0xff]
        %v3855 = vld [vmem:[%s8 + $0x290] sm:$0xff]
        %v3856 = vld [vmem:[%s8 + $0x298] sm:$0xff]
        %v3857 = vld [vmem:[%s8 + $0x2a0] sm:$0xff]
        %v3858 = vld [vmem:[%s8 + $0x2a8] sm:$0xff]
        %v3859 = vld [vmem:[%s8 + $0x2b0] sm:$0xff]
        %v3860 = vld [vmem:[%s8 + $0x2b8] sm:$0xff]
        %3862 = vset.pattern.permute.xlu0 0
        %3863 = vperm.xlu0 %3862, %v3853
        %v3864 = vpop.permute.xlu0 %3863
        %3867 = vset.pattern.permute.xlu0 0
        %3868 = vperm.xlu0 %3867, %v3854
        %v3869 = vpop.permute.xlu0 %3868
        %3872 = vset.pattern.permute.xlu0 0
        %3873 = vperm.xlu0 %3872, %v3855
        %v3874 = vpop.permute.xlu0 %3873
        %3877 = vset.pattern.permute.xlu0 0
        %3878 = vperm.xlu0 %3877, %v3856
        %v3879 = vpop.permute.xlu0 %3878
        %3882 = vset.pattern.permute.xlu0 0
        %3883 = vperm.xlu0 %3882, %v3857
        %v3884 = vpop.permute.xlu0 %3883
        %3887 = vset.pattern.permute.xlu0 0
        %3888 = vperm.xlu0 %3887, %v3858
        %v3889 = vpop.permute.xlu0 %3888
        %3892 = vset.pattern.permute.xlu0 0
        %3893 = vperm.xlu0 %3892, %v3859
        %v3894 = vpop.permute.xlu0 %3893
        %3897 = vset.pattern.permute.xlu0 0
        %3898 = vperm.xlu0 %3897, %v3860
        %v3899 = vpop.permute.xlu0 %3898
        %v3909 = vunpack.c.l.b16 %v3841
        %v3910 = vunpack.c.l.b16 %v3842
        %v3911 = vunpack.c.l.b16 %v3843
        %v3912 = vunpack.c.l.b16 %v3844
        %v3913 = vunpack.c.l.b16 %v3845
        %v3914 = vunpack.c.l.b16 %v3846
        %v3915 = vunpack.c.l.b16 %v3847
        %v3916 = vunpack.c.l.b16 %v3848
        %v3917 = vpack.c.b16 %v3910, %v3909
        %v3918 = vpack.c.b16 %v3912, %v3911
        %v3919 = vpack.c.b16 %v3914, %v3913
        %v3920 = vpack.c.b16 %v3916, %v3915
        %v3922 = vsel %vm1013, %v3917, 0
        %v3925 = vsel %vm1013, %v3918, 0
        %v3928 = vsel %vm1013, %v3919, 0
        %v3931 = vsel %vm1013, %v3920, 0
        %3933 = vmatprep.subr.bf16.mxu0 0
        %3934 = vmatpush1.bf16.msra.mxu0 0
        %3935 = vmatprep.subr.bf16.mxu0 0
        %3936 = vmatpush1.bf16.msra.mxu0 0
        %3937 = vmatprep.subr.bf16.mxu0 0
        %3938 = vmatpush1.bf16.msra.mxu0 0
        %3939 = vmatprep.subr.bf16.mxu0 0
        %3940 = vmatpush1.bf16.msra.mxu0 0
        %3941 = vmatprep.subr.bf16.mxu0 0
        %3942 = vmatpush1.bf16.msra.mxu0 %v3852
        %3943 = vmatprep.subr.bf16.mxu0 0
        %3944 = vmatpush1.bf16.msra.mxu0 %v3851
        %3945 = vmatprep.subr.bf16.mxu0 0
        %3946 = vmatpush1.bf16.msra.mxu0 %v3850
        %3947 = vmatprep.subr.bf16.mxu0 0
        %3948 = vmatpush1.bf16.msra.mxu0 %v3849
        %3949 = vmatprep.subr.bf16.mxu0 0
        %3950 = vmatpush2.bf16.msra.mxu0 0
        %3951 = vmatprep.subr.bf16.mxu0 0
        %3952 = vmatpush2.bf16.msra.mxu0 0
        %3953 = vmatprep.subr.bf16.mxu0 0
        %3954 = vmatpush2.bf16.msra.mxu0 0
        %3955 = vmatprep.subr.bf16.mxu0 0
        %3956 = vmatpush2.bf16.msra.mxu0 0
        %3957 = vmatprep.subr.bf16.mxu0 0
        %3958 = vmatpush2.bf16.msra.mxu0 0
        %3959 = vmatprep.subr.bf16.mxu0 0
        %3960 = vmatpush2.bf16.msra.mxu0 0
        %3961 = vmatprep.subr.bf16.mxu0 0
        %3962 = vmatpush2.bf16.msra.mxu0 0
        %3963 = vmatprep.subr.bf16.mxu0 0
        %3964 = vmatpush2.bf16.msra.mxu0 0
        %3965 = vmatprep.mubr.bf16.mxu0 0
        %3966 = vmatmul.mubr.bf16.gmra.mxu0 %v3922
        %v3967 = vpop.f32.mrf.mxu0
        %v3968 = vadd.f32 %v3864, %v3967
        %v3969 = vpop.f32.mrf.mxu0
        %v3970 = vpop.f32.mrf.mxu0
        %v3971 = vadd.f32 %v3869, %v3970
        %v3972 = vpop.f32.mrf.mxu0
        %3973 = vmatprep.mubr.bf16.mxu0 0
        %3974 = vmatmul.mubr.bf16.gmra.mxu0 %v3925
        %v3975 = vpop.f32.mrf.mxu0
        %v3976 = vadd.f32 %v3874, %v3975
        %v3977 = vpop.f32.mrf.mxu0
        %v3978 = vpop.f32.mrf.mxu0
        %v3979 = vadd.f32 %v3879, %v3978
        %v3980 = vpop.f32.mrf.mxu0
        %3981 = vmatprep.mubr.bf16.mxu0 0
        %3982 = vmatmul.mubr.bf16.gmra.mxu0 %v3928
        %v3983 = vpop.f32.mrf.mxu0
        %v3984 = vadd.f32 %v3884, %v3983
        %v3985 = vpop.f32.mrf.mxu0
        %v3986 = vpop.f32.mrf.mxu0
        %v3987 = vadd.f32 %v3889, %v3986
        %v3988 = vpop.f32.mrf.mxu0
        %3989 = vmatprep.mubr.bf16.mxu0 0
        %3990 = vmatmul.mubr.bf16.gmra.mxu0 %v3931
        %v3991 = vpop.f32.mrf.mxu0
        %v3992 = vadd.f32 %v3894, %v3991
        %v3993 = vpop.f32.mrf.mxu0
        %v3994 = vpop.f32.mrf.mxu0
        %v3995 = vadd.f32 %v3899, %v3994
        %v3996 = vpop.f32.mrf.mxu0
        %3997 = vdwg.mxu0
        %v3998 = vmul.f32 %v3968, 0.1
        %v3999 = vmul.f32 %v3971, 0.1
        %v4000 = vmul.f32 %v3976, 0.1
        %v4001 = vmul.f32 %v3979, 0.1
        %v4002 = vmul.f32 %v3984, 0.1
        %v4003 = vmul.f32 %v3987, 0.1
        %v4004 = vmul.f32 %v3992, 0.1
        %v4005 = vmul.f32 %v3995, 0.1
        %v4006 = vmax.f32 %v3968, %v3998
        %v4007 = vmax.f32 %v3971, %v3999
        %v4008 = vmax.f32 %v3976, %v4000
        %v4009 = vmax.f32 %v3979, %v4001
        %v4010 = vmax.f32 %v3984, %v4002
        %v4011 = vmax.f32 %v3987, %v4003
        %v4012 = vmax.f32 %v3992, %v4004
        %v4013 = vmax.f32 %v3995, %v4005
        %4014 = vrot.lane.b32.xlu0 %v4006, 120
        %v4015 = vpop.permute.xlu0 %4014
        %4016 = vrot.lane.b32.xlu0 %v4007, 120
        %v4017 = vpop.permute.xlu0 %4016
        %4018 = vrot.lane.b32.xlu0 %v4008, 120
        %v4019 = vpop.permute.xlu0 %4018
        %4020 = vrot.lane.b32.xlu0 %v4009, 120
        %v4021 = vpop.permute.xlu0 %4020
        %4022 = vrot.lane.b32.xlu0 %v4010, 120
        %v4023 = vpop.permute.xlu0 %4022
        %4024 = vrot.lane.b32.xlu0 %v4011, 120
        %v4025 = vpop.permute.xlu0 %4024
        %4026 = vrot.lane.b32.xlu0 %v4012, 120
        %v4027 = vpop.permute.xlu0 %4026
        %4028 = vrot.lane.b32.xlu0 %v4013, 120
        %v4029 = vpop.permute.xlu0 %4028
        %v4030 = vmax.f32 %v4006, %v4015
        %v4031 = vmax.f32 %v4007, %v4017
        %v4032 = vmax.f32 %v4008, %v4019
        %v4033 = vmax.f32 %v4009, %v4021
        %v4034 = vmax.f32 %v4010, %v4023
        %v4035 = vmax.f32 %v4011, %v4025
        %v4036 = vmax.f32 %v4012, %v4027
        %v4037 = vmax.f32 %v4013, %v4029
        %4038 = vrot.lane.b32.xlu0 %v4030, 124
        %v4039 = vpop.permute.xlu0 %4038
        %4040 = vrot.lane.b32.xlu0 %v4031, 124
        %v4041 = vpop.permute.xlu0 %4040
        %4042 = vrot.lane.b32.xlu0 %v4032, 124
        %v4043 = vpop.permute.xlu0 %4042
        %4044 = vrot.lane.b32.xlu0 %v4033, 124
        %v4045 = vpop.permute.xlu0 %4044
        %4046 = vrot.lane.b32.xlu0 %v4034, 124
        %v4047 = vpop.permute.xlu0 %4046
        %4048 = vrot.lane.b32.xlu0 %v4035, 124
        %v4049 = vpop.permute.xlu0 %4048
        %4050 = vrot.lane.b32.xlu0 %v4036, 124
        %v4051 = vpop.permute.xlu0 %4050
        %4052 = vrot.lane.b32.xlu0 %v4037, 124
        %v4053 = vpop.permute.xlu0 %4052
        %v4054 = vmax.f32 %v4030, %v4039
        %v4055 = vmax.f32 %v4031, %v4041
        %v4056 = vmax.f32 %v4032, %v4043
        %v4057 = vmax.f32 %v4033, %v4045
        %v4058 = vmax.f32 %v4034, %v4047
        %v4059 = vmax.f32 %v4035, %v4049
        %v4060 = vmax.f32 %v4036, %v4051
        %v4061 = vmax.f32 %v4037, %v4053
        %4062 = vrot.lane.b32.xlu0 %v4054, 126
        %v4063 = vpop.permute.xlu0 %4062
        %4064 = vrot.lane.b32.xlu0 %v4055, 126
        %v4065 = vpop.permute.xlu0 %4064
        %4066 = vrot.lane.b32.xlu0 %v4056, 126
        %v4067 = vpop.permute.xlu0 %4066
        %4068 = vrot.lane.b32.xlu0 %v4057, 126
        %v4069 = vpop.permute.xlu0 %4068
        %4070 = vrot.lane.b32.xlu0 %v4058, 126
        %v4071 = vpop.permute.xlu0 %4070
        %4072 = vrot.lane.b32.xlu0 %v4059, 126
        %v4073 = vpop.permute.xlu0 %4072
        %4074 = vrot.lane.b32.xlu0 %v4060, 126
        %v4075 = vpop.permute.xlu0 %4074
        %4076 = vrot.lane.b32.xlu0 %v4061, 126
        %v4077 = vpop.permute.xlu0 %4076
        %v4078 = vmax.f32 %v4054, %v4063
        %v4079 = vmax.f32 %v4055, %v4065
        %v4080 = vmax.f32 %v4056, %v4067
        %v4081 = vmax.f32 %v4057, %v4069
        %v4082 = vmax.f32 %v4058, %v4071
        %v4083 = vmax.f32 %v4059, %v4073
        %v4084 = vmax.f32 %v4060, %v4075
        %v4085 = vmax.f32 %v4061, %v4077
        %4086 = vrot.lane.b32.xlu0 %v4078, 127
        %v4087 = vpop.permute.xlu0 %4086
        %4088 = vrot.lane.b32.xlu0 %v4079, 127
        %v4089 = vpop.permute.xlu0 %4088
        %4090 = vrot.lane.b32.xlu0 %v4080, 127
        %v4091 = vpop.permute.xlu0 %4090
        %4092 = vrot.lane.b32.xlu0 %v4081, 127
        %v4093 = vpop.permute.xlu0 %4092
        %4094 = vrot.lane.b32.xlu0 %v4082, 127
        %v4095 = vpop.permute.xlu0 %4094
        %4096 = vrot.lane.b32.xlu0 %v4083, 127
        %v4097 = vpop.permute.xlu0 %4096
        %4098 = vrot.lane.b32.xlu0 %v4084, 127
        %v4099 = vpop.permute.xlu0 %4098
        %4100 = vrot.lane.b32.xlu0 %v4085, 127
        %v4101 = vpop.permute.xlu0 %4100
        %v4102 = vmax.f32 %v4078, %v4087
        %v4103 = vmax.f32 %v4079, %v4089
        %v4104 = vmax.f32 %v4080, %v4091
        %v4105 = vmax.f32 %v4081, %v4093
        %v4106 = vmax.f32 %v4082, %v4095
        %v4107 = vmax.f32 %v4083, %v4097
        %v4108 = vmax.f32 %v4084, %v4099
        %v4109 = vmax.f32 %v4085, %v4101
        %v4110 = vsel %vm2560, %v4102, 0.0
        %v4111 = vsel %vm2560, %v4103, 0.0
        %v4112 = vsel %vm2560, %v4104, 0.0
        %v4113 = vsel %vm2560, %v4105, 0.0
        %v4114 = vsel %vm2560, %v4106, 0.0
        %v4115 = vsel %vm2560, %v4107, 0.0
        %v4116 = vsel %vm2560, %v4108, 0.0
        %v4117 = vsel %vm2560, %v4109, 0.0
        %v4118 = vpack.c.bf16 %v4111, %v4110
        %v4119 = vpack.c.bf16 %v4113, %v4112
        %v4120 = vpack.c.bf16 %v4115, %v4114
        %v4121 = vpack.c.bf16 %v4117, %v4116
        %4122 = vmatprep.subr.bf16.mxu0 0
        %4123 = vmatpush1.bf16.xpose.msra.mxu0 0
        %4124 = vmatprep.subr.bf16.mxu0 0
        %4125 = vmatpush1.bf16.xpose.msra.mxu0 0
        %4126 = vmatprep.subr.bf16.mxu0 0
        %4127 = vmatpush1.bf16.xpose.msra.mxu0 0
        %4128 = vmatprep.subr.bf16.mxu0 0
        %4129 = vmatpush1.bf16.xpose.msra.mxu0 0
        %4130 = vmatprep.subr.bf16.mxu0 0
        %4131 = vmatpush1.bf16.xpose.msra.mxu0 0
        %4132 = vmatprep.subr.bf16.mxu0 0
        %4133 = vmatpush1.bf16.xpose.msra.mxu0 0
        %4134 = vmatprep.subr.bf16.mxu0 0
        %4135 = vmatpush1.bf16.xpose.msra.mxu0 0
        %4136 = vmatprep.subr.bf16.mxu0 0
        %4137 = vmatpush1.bf16.xpose.msra.mxu0 %v464
        %4138 = vmatprep.subr.bf16.mxu0 0
        %4139 = vmatpush2.bf16.xpose.msra.mxu0 0
        %4140 = vmatprep.subr.bf16.mxu0 0
        %4141 = vmatpush2.bf16.xpose.msra.mxu0 0
        %4142 = vmatprep.subr.bf16.mxu0 0
        %4143 = vmatpush2.bf16.xpose.msra.mxu0 0
        %4144 = vmatprep.subr.bf16.mxu0 0
        %4145 = vmatpush2.bf16.xpose.msra.mxu0 0
        %4146 = vmatprep.subr.bf16.mxu0 0
        %4147 = vmatpush2.bf16.xpose.msra.mxu0 0
        %4148 = vmatprep.subr.bf16.mxu0 0
        %4149 = vmatpush2.bf16.xpose.msra.mxu0 0
        %4150 = vmatprep.subr.bf16.mxu0 0
        %4151 = vmatpush2.bf16.xpose.msra.mxu0 0
        %4152 = vmatprep.subr.bf16.mxu0 0
        %4153 = vmatpush2.bf16.xpose.msra.mxu0 0
        %4154 = vmatprep.mubr.bf16.mxu0 0
        %4155 = vmatmul.mubr.bf16.gmra.mxu0 %v4118
        %v4156 = vpop.f32.mrf.mxu0
        %v4157 = vadd.f32 0.0, %v4156
        %v4158 = vpop.f32.mrf.mxu0
        %v4159 = vpop.f32.mrf.mxu0
        %v4160 = vadd.f32 0.0, %v4159
        %v4161 = vpop.f32.mrf.mxu0
        %4162 = vmatprep.mubr.bf16.mxu0 0
        %4163 = vmatmul.mubr.bf16.gmra.mxu0 %v4119
        %v4164 = vpop.f32.mrf.mxu0
        %v4165 = vadd.f32 0.0, %v4164
        %v4166 = vpop.f32.mrf.mxu0
        %v4167 = vpop.f32.mrf.mxu0
        %v4168 = vadd.f32 0.0, %v4167
        %v4169 = vpop.f32.mrf.mxu0
        %4170 = vmatprep.mubr.bf16.mxu0 0
        %4171 = vmatmul.mubr.bf16.gmra.mxu0 %v4120
        %v4172 = vpop.f32.mrf.mxu0
        %v4173 = vadd.f32 0.0, %v4172
        %v4174 = vpop.f32.mrf.mxu0
        %v4175 = vpop.f32.mrf.mxu0
        %v4176 = vadd.f32 0.0, %v4175
        %v4177 = vpop.f32.mrf.mxu0
        %4178 = vmatprep.mubr.bf16.mxu0 0
        %4179 = vmatmul.mubr.bf16.gmra.mxu0 %v4121
        %v4180 = vpop.f32.mrf.mxu0
        %v4181 = vadd.f32 0.0, %v4180
        %v4182 = vpop.f32.mrf.mxu0
        %v4183 = vpop.f32.mrf.mxu0
        %v4184 = vadd.f32 0.0, %v4183
        %v4185 = vpop.f32.mrf.mxu0
        %4186 = vdwg.mxu0
        %s4187 = scalar_lea.vmem %s6, 128
        %v4188 = vld [vmem:[%s4187] sm:$0xf]
        %v4189 = vld [vmem:[%s4187 + $0x4] sm:$0xf]
        %v4190 = vld [vmem:[%s4187 + $0x8] sm:$0xf]
        %v4191 = vld [vmem:[%s4187 + $0xc] sm:$0xf]
        %v4192 = vld [vmem:[%s4187 + $0x10] sm:$0xf]
        %v4193 = vld [vmem:[%s4187 + $0x14] sm:$0xf]
        %v4194 = vld [vmem:[%s4187 + $0x18] sm:$0xf]
        %v4195 = vld [vmem:[%s4187 + $0x1c] sm:$0xf]
        %v4196 = vpack.c.bf16 %v4160, %v4157
        %v4197 = vpack.c.bf16 %v4168, %v4165
        %v4198 = vpack.c.bf16 %v4176, %v4173
        %v4199 = vpack.c.bf16 %v4184, %v4181
        %v4200 = vld [vmem:[%s8 + $0x2c0] sm:$0xff]
        %v4201 = vld [vmem:[%s8 + $0x2c8] sm:$0xff]
        %v4202 = vld [vmem:[%s8 + $0x2d0] sm:$0xff]
        %v4203 = vld [vmem:[%s8 + $0x2d8] sm:$0xff]
        %v4204 = vld [vmem:[%s8 + $0x2e0] sm:$0xff]
        %v4205 = vld [vmem:[%s8 + $0x2e8] sm:$0xff]
        %v4206 = vld [vmem:[%s8 + $0x2f0] sm:$0xff]
        %v4207 = vld [vmem:[%s8 + $0x2f8] sm:$0xff]
        %4209 = vset.pattern.permute.xlu0 0
        %4210 = vperm.xlu0 %4209, %v4200
        %v4211 = vpop.permute.xlu0 %4210
        %4214 = vset.pattern.permute.xlu0 0
        %4215 = vperm.xlu0 %4214, %v4201
        %v4216 = vpop.permute.xlu0 %4215
        %4219 = vset.pattern.permute.xlu0 0
        %4220 = vperm.xlu0 %4219, %v4202
        %v4221 = vpop.permute.xlu0 %4220
        %4224 = vset.pattern.permute.xlu0 0
        %4225 = vperm.xlu0 %4224, %v4203
        %v4226 = vpop.permute.xlu0 %4225
        %4229 = vset.pattern.permute.xlu0 0
        %4230 = vperm.xlu0 %4229, %v4204
        %v4231 = vpop.permute.xlu0 %4230
        %4234 = vset.pattern.permute.xlu0 0
        %4235 = vperm.xlu0 %4234, %v4205
        %v4236 = vpop.permute.xlu0 %4235
        %4239 = vset.pattern.permute.xlu0 0
        %4240 = vperm.xlu0 %4239, %v4206
        %v4241 = vpop.permute.xlu0 %4240
        %4244 = vset.pattern.permute.xlu0 0
        %4245 = vperm.xlu0 %4244, %v4207
        %v4246 = vpop.permute.xlu0 %4245
        %v4256 = vunpack.c.l.b16 %v4188
        %v4257 = vunpack.c.l.b16 %v4189
        %v4258 = vunpack.c.l.b16 %v4190
        %v4259 = vunpack.c.l.b16 %v4191
        %v4260 = vunpack.c.l.b16 %v4192
        %v4261 = vunpack.c.l.b16 %v4193
        %v4262 = vunpack.c.l.b16 %v4194
        %v4263 = vunpack.c.l.b16 %v4195
        %v4264 = vpack.c.b16 %v4257, %v4256
        %v4265 = vpack.c.b16 %v4259, %v4258
        %v4266 = vpack.c.b16 %v4261, %v4260
        %v4267 = vpack.c.b16 %v4263, %v4262
        %v4269 = vsel %vm1013, %v4264, 0
        %v4272 = vsel %vm1013, %v4265, 0
        %v4275 = vsel %vm1013, %v4266, 0
        %v4278 = vsel %vm1013, %v4267, 0
        %4280 = vmatprep.subr.bf16.mxu0 0
        %4281 = vmatpush1.bf16.msra.mxu0 0
        %4282 = vmatprep.subr.bf16.mxu0 0
        %4283 = vmatpush1.bf16.msra.mxu0 0
        %4284 = vmatprep.subr.bf16.mxu0 0
        %4285 = vmatpush1.bf16.msra.mxu0 0
        %4286 = vmatprep.subr.bf16.mxu0 0
        %4287 = vmatpush1.bf16.msra.mxu0 0
        %4288 = vmatprep.subr.bf16.mxu0 0
        %4289 = vmatpush1.bf16.msra.mxu0 %v4199
        %4290 = vmatprep.subr.bf16.mxu0 0
        %4291 = vmatpush1.bf16.msra.mxu0 %v4198
        %4292 = vmatprep.subr.bf16.mxu0 0
        %4293 = vmatpush1.bf16.msra.mxu0 %v4197
        %4294 = vmatprep.subr.bf16.mxu0 0
        %4295 = vmatpush1.bf16.msra.mxu0 %v4196
        %4296 = vmatprep.subr.bf16.mxu0 0
        %4297 = vmatpush2.bf16.msra.mxu0 0
        %4298 = vmatprep.subr.bf16.mxu0 0
        %4299 = vmatpush2.bf16.msra.mxu0 0
        %4300 = vmatprep.subr.bf16.mxu0 0
        %4301 = vmatpush2.bf16.msra.mxu0 0
        %4302 = vmatprep.subr.bf16.mxu0 0
        %4303 = vmatpush2.bf16.msra.mxu0 0
        %4304 = vmatprep.subr.bf16.mxu0 0
        %4305 = vmatpush2.bf16.msra.mxu0 0
        %4306 = vmatprep.subr.bf16.mxu0 0
        %4307 = vmatpush2.bf16.msra.mxu0 0
        %4308 = vmatprep.subr.bf16.mxu0 0
        %4309 = vmatpush2.bf16.msra.mxu0 0
        %4310 = vmatprep.subr.bf16.mxu0 0
        %4311 = vmatpush2.bf16.msra.mxu0 0
        %4312 = vmatprep.mubr.bf16.mxu0 0
        %4313 = vmatmul.mubr.bf16.gmra.mxu0 %v4269
        %v4314 = vpop.f32.mrf.mxu0
        %v4315 = vadd.f32 %v4211, %v4314
        %v4316 = vpop.f32.mrf.mxu0
        %v4317 = vpop.f32.mrf.mxu0
        %v4318 = vadd.f32 %v4216, %v4317
        %v4319 = vpop.f32.mrf.mxu0
        %4320 = vmatprep.mubr.bf16.mxu0 0
        %4321 = vmatmul.mubr.bf16.gmra.mxu0 %v4272
        %v4322 = vpop.f32.mrf.mxu0
        %v4323 = vadd.f32 %v4221, %v4322
        %v4324 = vpop.f32.mrf.mxu0
        %v4325 = vpop.f32.mrf.mxu0
        %v4326 = vadd.f32 %v4226, %v4325
        %v4327 = vpop.f32.mrf.mxu0
        %4328 = vmatprep.mubr.bf16.mxu0 0
        %4329 = vmatmul.mubr.bf16.gmra.mxu0 %v4275
        %v4330 = vpop.f32.mrf.mxu0
        %v4331 = vadd.f32 %v4231, %v4330
        %v4332 = vpop.f32.mrf.mxu0
        %v4333 = vpop.f32.mrf.mxu0
        %v4334 = vadd.f32 %v4236, %v4333
        %v4335 = vpop.f32.mrf.mxu0
        %4336 = vmatprep.mubr.bf16.mxu0 0
        %4337 = vmatmul.mubr.bf16.gmra.mxu0 %v4278
        %v4338 = vpop.f32.mrf.mxu0
        %v4339 = vadd.f32 %v4241, %v4338
        %v4340 = vpop.f32.mrf.mxu0
        %v4341 = vpop.f32.mrf.mxu0
        %v4342 = vadd.f32 %v4246, %v4341
        %v4343 = vpop.f32.mrf.mxu0
        %4344 = vdwg.mxu0
        %v4345 = vmul.f32 %v4315, 0.1
        %v4346 = vmul.f32 %v4318, 0.1
        %v4347 = vmul.f32 %v4323, 0.1
        %v4348 = vmul.f32 %v4326, 0.1
        %v4349 = vmul.f32 %v4331, 0.1
        %v4350 = vmul.f32 %v4334, 0.1
        %v4351 = vmul.f32 %v4339, 0.1
        %v4352 = vmul.f32 %v4342, 0.1
        %v4353 = vmax.f32 %v4315, %v4345
        %v4354 = vmax.f32 %v4318, %v4346
        %v4355 = vmax.f32 %v4323, %v4347
        %v4356 = vmax.f32 %v4326, %v4348
        %v4357 = vmax.f32 %v4331, %v4349
        %v4358 = vmax.f32 %v4334, %v4350
        %v4359 = vmax.f32 %v4339, %v4351
        %v4360 = vmax.f32 %v4342, %v4352
        %v4361 = vadd.f32 %v4353, %v3646
        %v4362 = vadd.f32 %v4354, %v3647
        %v4363 = vadd.f32 %v4355, %v3648
        %v4364 = vadd.f32 %v4356, %v3649
        %v4365 = vadd.f32 %v4357, %v3650
        %v4366 = vadd.f32 %v4358, %v3651
        %v4367 = vadd.f32 %v4359, %v3652
        %v4368 = vadd.f32 %v4360, %v3653
        %v4369 = vld [vmem:[%s9] sm:$0xf]
        %v4370 = vpack.c.bf16 %v4362, %v4361
        %v4371 = vpack.c.bf16 %v4364, %v4363
        %v4372 = vpack.c.bf16 %v4366, %v4365
        %v4373 = vpack.c.bf16 %v4368, %v4367
        %v4374 = vld [vmem:[%s10] sm:$0xff]
        %4376 = vset.pattern.permute.xlu0 0
        %4377 = vperm.xlu0 %4376, %v4374
        %v4378 = vpop.permute.xlu0 %4377
        %v4381 = vsel %vm1013, %v4369, 0
        %4383 = vmatprep.subr.bf16.mxu0 0
        %4384 = vmatpush1.bf16.msra.mxu0 0
        %4385 = vmatprep.subr.bf16.mxu0 0
        %4386 = vmatpush1.bf16.msra.mxu0 0
        %4387 = vmatprep.subr.bf16.mxu0 0
        %4388 = vmatpush1.bf16.msra.mxu0 0
        %4389 = vmatprep.subr.bf16.mxu0 0
        %4390 = vmatpush1.bf16.msra.mxu0 0
        %4391 = vmatprep.subr.bf16.mxu0 0
        %4392 = vmatpush1.bf16.msra.mxu0 %v4373
        %4393 = vmatprep.subr.bf16.mxu0 0
        %4394 = vmatpush1.bf16.msra.mxu0 %v4372
        %4395 = vmatprep.subr.bf16.mxu0 0
        %4396 = vmatpush1.bf16.msra.mxu0 %v4371
        %4397 = vmatprep.subr.bf16.mxu0 0
        %4398 = vmatpush1.bf16.msra.mxu0 %v4370
        %4399 = vmatprep.subr.bf16.mxu0 0
        %4400 = vmatpush2.bf16.msra.mxu0 0
        %4401 = vmatprep.subr.bf16.mxu0 0
        %4402 = vmatpush2.bf16.msra.mxu0 0
        %4403 = vmatprep.subr.bf16.mxu0 0
        %4404 = vmatpush2.bf16.msra.mxu0 0
        %4405 = vmatprep.subr.bf16.mxu0 0
        %4406 = vmatpush2.bf16.msra.mxu0 0
        %4407 = vmatprep.subr.bf16.mxu0 0
        %4408 = vmatpush2.bf16.msra.mxu0 0
        %4409 = vmatprep.subr.bf16.mxu0 0
        %4410 = vmatpush2.bf16.msra.mxu0 0
        %4411 = vmatprep.subr.bf16.mxu0 0
        %4412 = vmatpush2.bf16.msra.mxu0 0
        %4413 = vmatprep.subr.bf16.mxu0 0
        %4414 = vmatpush2.bf16.msra.mxu0 0
        %4415 = vmatprep.mubr.bf16.mxu0 0
        %4416 = vmatmul.mubr.bf16.gmra.mxu0 %v4381
        %v4417 = vpop.f32.mrf.mxu0
        %v4418 = vadd.f32 %v4378, %v4417
        %v4419 = vpop.f32.mrf.mxu0
        %v4420 = vpop.f32.mrf.mxu0
        %v4421 = vpop.f32.mrf.mxu0
        %4422 = vdwg.mxu0
        %4423 = vxpose.xlu0.b32.start [1/16] %v4361, 128
        %4424 = vxpose.xlu0.b32.cont [2/16] %v4362, 128
        %4425 = vxpose.xlu0.b32.cont [3/16] %v4363, 128
        %4426 = vxpose.xlu0.b32.cont [4/16] %v4364, 128
        %4427 = vxpose.xlu0.b32.cont [5/16] %v4365, 128
        %4428 = vxpose.xlu0.b32.cont [6/16] %v4366, 128
        %4429 = vxpose.xlu0.b32.cont [7/16] %v4367, 128
        %4430 = vxpose.xlu0.b32.cont [8/16] %v4368, 128
        %4431 = vxpose.xlu0.b32.cont [9/16] %v4418, 128
        %4432 = vxpose.xlu0.b32.cont [10/16] 0.0, 128
        %4433 = vxpose.xlu0.b32.cont [11/16] 0.0, 128
        %4434 = vxpose.xlu0.b32.cont [12/16] 0.0, 128
        %4435 = vxpose.xlu0.b32.cont [13/16] 0.0, 128
        %4436 = vxpose.xlu0.b32.cont [14/16] 0.0, 128
        %4437 = vxpose.xlu0.b32.cont [15/16] 0.0, 128
        %4438 = vxpose.xlu0.b32.end [16/16] 0.0, 128
        %v4439 = vpop.trf.xlu0
        %v4440 = vpop.trf.xlu0
        %v4441 = vpop.trf.xlu0
        %v4442 = vpop.trf.xlu0
        %v4443 = vpop.trf.xlu0
        %v4444 = vpop.trf.xlu0
        %v4445 = vpop.trf.xlu0
        %v4446 = vpop.trf.xlu0
        %v4447 = vpop.trf.xlu0
        %v4448 = vpop.trf.xlu0
        %v4449 = vpop.trf.xlu0
        %v4450 = vpop.trf.xlu0
        %v4451 = vpop.trf.xlu0
        %v4452 = vpop.trf.xlu0
        %v4453 = vpop.trf.xlu0
        %v4454 = vpop.trf.xlu0
        %vm4455 = vcmask 588800
        %4456 = vst.msk [vmem:[%s462] sm:$0xff] %vm4455, %v4439
        %p4457 = scmp.lt.s32.totalorder %s23, 1
        %s4458 = scalar_select %p4457, %s23, 1
        %s4459 = smul.addr %s4458, 8
        %s4460 = scalar_lea.vmem %s12, %s4459
        // Predicated region
        $region110: #{hand_model_forward.2} parent=104 // pred_check
          %p4461 = pneg %p298
        $region111: #{hand_model_forward.2} parent=104 // pred_check_branch
          %4463 = sbr.rel (%p4461) target = $region113
        $region112: #{hand_model_forward.2} parent=104 // pred_region
          _
        $region113: #{hand_model_forward.2} parent=104 // pred_fallthru
          _
      $region105: #{hand_model_forward.2} parent=5 // pred_fallthru
        _
      %p4464 = scmp.le.s32.totalorder 2, %s18
      // Predicated region
      $region114: #{hand_model_forward.2} parent=5 // pred_check
        %p4465 = pneg %p4464
      $region115: #{hand_model_forward.2} parent=5 // pred_check_branch
        %4467 = sbr.rel (%p4465) target = $region117
      $region116: #{hand_model_forward.2} parent=5 // pred_region
        %s4468 = ssub.s32 %s18, 2
        // Predicated region
        $region118: #{hand_model_forward.2} parent=116 // pred_check
          %p4469 = pneg %p304
        $region119: #{hand_model_forward.2} parent=116 // pred_check_branch
          %4471 = sbr.rel (%p4469) target = $region121
        $region120: #{hand_model_forward.2} parent=116 // pred_region
          %p4472 = scmp.lt.s32.totalorder %s24, 1
          %s4473 = scalar_select %p4472, %s24, 1
          %s4474 = smul.addr %s4473, 8
          %s4475 = scalar_lea.vmem %s12, %s4474
        $region121: #{hand_model_forward.2} parent=116 // pred_fallthru
          _
      $region117: #{hand_model_forward.2} parent=5 // pred_fallthru
        _
    $region6: #{hand_model_forward.2} parent=1 // loop_footer
      %s22 = sadd.s32 1, %s18
    $region7: #{hand_model_forward.2} parent=1 // loop_footer_branch
      %17 = sbr.rel target = $region3
    $region8: #{hand_model_forward.2} parent=1 // loop_exit
      _

</llo_original>
